<compile_context>
chip_gen: v5e
topology: v5e:2x2
jax: 0.10.0
libtpu: 0.0.40
codegen_flags: <defaults>
</compile_context>

<pallas_src>
import functools

import jax
import jax.numpy as jnp
from jax.experimental import pallas as pl
from jax.experimental.pallas import tpu as pltpu
import numpy as np


# ----------------------------------------------------------------------------
# Fused Pallas kernel: 3-layer bi-LSTM + output Linear, one call.
# ----------------------------------------------------------------------------
def _ext_fused_kernel(*refs, num_layers, hidden_size, seq_len, batch):
    H, T, B, L = hidden_size, seq_len, batch, num_layers

    x_ref = refs[0]                        # [T*B, Din0]  (time-major, flattened)
    layer_refs = refs[1:1 + 3 * L]         # per layer: (w_ih_p, b_p, w_hh_p)
    w_out_ref = refs[1 + 3 * L]            # [2H, O]
    b_out_ref = refs[2 + 3 * L]            # [1, O]
    out_ref = refs[3 + 3 * L]              # [T*B, O]
    h_buf = refs[4 + 3 * L]                # scratch [T*B, 2H] (inter-layer acts)

    def lstm_cell(g, c_prev):
        i = jax.nn.sigmoid(g[:, 0 * H:1 * H])
        f = jax.nn.sigmoid(g[:, 1 * H:2 * H])
        gg = jnp.tanh(g[:, 2 * H:3 * H])
        o = jax.nn.sigmoid(g[:, 3 * H:4 * H])
        c = f * c_prev + i * gg
        h = o * jnp.tanh(c)
        return h, c

    layer_in = x_ref[...]                  # [T*B, Din] value (layer 0 input)

    for l in range(L):
        w_ih_ref, b_ref, w_hh_ref = layer_refs[3 * l:3 * l + 3]

        # Hoisted input projection for BOTH directions: one big MXU matmul
        # over the whole sequence, bias added once.
        gx = (jnp.dot(layer_in, w_ih_ref[...],
                      preferred_element_type=jnp.float32)
              + b_ref[...])                # [T*B, 8H]

        w_hh_f = w_hh_ref[0]               # [H, 4H]  (resident across all steps)
        w_hh_b = w_hh_ref[1]               # [H, 4H]

        h_f = jnp.zeros((B, H), jnp.float32)
        c_f = jnp.zeros((B, H), jnp.float32)
        h_b = jnp.zeros((B, H), jnp.float32)
        c_b = jnp.zeros((B, H), jnp.float32)

        # Fully unrolled time loop: fwd processes t = s, bwd processes t = T-1-s.
        for s in range(T):
            t_rev = T - 1 - s
            g_f = gx[s * B:(s + 1) * B, 0:4 * H] + jnp.dot(
                h_f, w_hh_f, preferred_element_type=jnp.float32)
            g_b = gx[t_rev * B:(t_rev + 1) * B, 4 * H:8 * H] + jnp.dot(
                h_b, w_hh_b, preferred_element_type=jnp.float32)

            h_f, c_f = lstm_cell(g_f, c_f)
            h_b, c_b = lstm_cell(g_b, c_b)

            # Static-index stores into the VMEM activation buffer.
            h_buf[s * B:(s + 1) * B, 0:H] = h_f
            h_buf[t_rev * B:(t_rev + 1) * B, H:2 * H] = h_b

        layer_in = h_buf[...]              # [T*B, 2H] snapshot for next layer

    # Final Linear fused into the same kernel: [T*B, 2H] @ [2H, O] + b.
    y = (jnp.dot(layer_in, w_out_ref[...], preferred_element_type=jnp.float32)
         + b_out_ref[...])
    out_ref[...] = y.astype(out_ref.dtype)


# ----------------------------------------------------------------------------
# Parameter init (mirrors nn.LSTM / nn.Linear shapes; stored transposed/packed)
# ----------------------------------------------------------------------------
def init_ext_params(key, input_size, hidden_size, num_layer, output_size):
    H = hidden_size
    k_lstm = 1.0 / float(H) ** 0.5
    params = {"lstm": []}
    for layer in range(num_layer):
        d_in = input_size if layer == 0 else 2 * H
        w_ih_dirs, b_dirs, w_hh_dirs = [], [], []
        for _direction in range(2):        # forward, backward
            key, k1, k2, k3, k4 = jax.random.split(key, 5)
            w_ih = jax.random.uniform(k1, (d_in, 4 * H), jnp.float32,
                                      -k_lstm, k_lstm)
            w_hh = jax.random.uniform(k2, (H, 4 * H), jnp.float32,
                                      -k_lstm, k_lstm)
            b_ih = jax.random.uniform(k3, (1, 4 * H), jnp.float32,
                                      -k_lstm, k_lstm)
            b_hh = jax.random.uniform(k4, (1, 4 * H), jnp.float32,
                                      -k_lstm, k_lstm)
            w_ih_dirs.append(w_ih)
            w_hh_dirs.append(w_hh)
            b_dirs.append(b_ih + b_hh)     # combined bias (PyTorch adds both)
        w_ih_p = jnp.concatenate(w_ih_dirs, axis=1)   # [Din, 8H]  fwd | bwd
        b_p = jnp.concatenate(b_dirs, axis=1)         # [1,   8H]
        w_hh_p = jnp.stack(w_hh_dirs, axis=0)         # [2, H, 4H]
        params["lstm"].append((w_ih_p, b_p, w_hh_p))

    key, k1, k2 = jax.random.split(key, 3)
    k_lin = 1.0 / float(2 * H) ** 0.5
    params["w_out"] = jax.random.uniform(k1, (2 * H, output_size), jnp.float32,
                                         -k_lin, k_lin)
    params["b_out"] = jax.random.uniform(k2, (1, output_size), jnp.float32,
                                         -k_lin, k_lin)
    return params


# ----------------------------------------------------------------------------
# Public wrapper: x [B, T, input_size] -> [B, T, output_size]
# ----------------------------------------------------------------------------
def ext_forward(x, params):
    B, T, Din = x.shape
    L = len(params["lstm"])
    H = params["lstm"][0][2].shape[1]
    O = params["w_out"].shape[1]

    # One tiny transpose+reshape to time-major flat rows (t, b); reused by the
    # whole fused kernel.
    x_tm = jnp.transpose(x, (1, 0, 2)).reshape(T * B, Din).astype(jnp.float32)

    inputs = [x_tm]
    for (w_ih_p, b_p, w_hh_p) in params["lstm"]:
        inputs += [w_ih_p, b_p, w_hh_p]
    inputs += [params["w_out"], params["b_out"]]

    kernel = functools.partial(_ext_fused_kernel, num_layers=L,
                               hidden_size=H, seq_len=T, batch=B)
    vmem = pl.BlockSpec(memory_space=pltpu.MemorySpace.VMEM)
    out = pl.pallas_call(
        kernel,
        out_shape=jax.ShapeDtypeStruct((T * B, O), jnp.float32),
        in_specs=[vmem] * len(inputs),
        out_specs=vmem,
        scratch_shapes=[pltpu.VMEM((T * B, 2 * H), jnp.float32)],
    )(*inputs)

    return jnp.transpose(out.reshape(T, B, O), (1, 0, 2))


# ----------------------------------------------------------------------------
# Pure-JAX reference (no Pallas) for correctness checking.
# ----------------------------------------------------------------------------
def _ext_reference(x, params):
    B, T, _ = x.shape
    h_seq = jnp.transpose(x, (1, 0, 2)).astype(jnp.float32)   # [T, B, Din]
    for (w_ih_p, b_p, w_hh_p) in params["lstm"]:
        H = w_hh_p.shape[1]
        outs = []
        for d in range(2):
            w_ih = w_ih_p[:, d * 4 * H:(d + 1) * 4 * H]
            b = b_p[:, d * 4 * H:(d + 1) * 4 * H]
            w_hh = w_hh_p[d]
            xs = h_seq if d == 0 else h_seq[::-1]
            h = jnp.zeros((B, H), jnp.float32)
            c = jnp.zeros((B, H), jnp.float32)
            ys = []
            for t in range(T):
                g = xs[t] @ w_ih + h @ w_hh + b
                i = jax.nn.sigmoid(g[:, 0:H])
                f = jax.nn.sigmoid(g[:, H:2 * H])
                gg = jnp.tanh(g[:, 2 * H:3 * H])
                o = jax.nn.sigmoid(g[:, 3 * H:4 * H])
                c = f * c + i * gg
                h = o * jnp.tanh(c)
                ys.append(h)
            y = jnp.stack(ys, axis=0)                         # [T, B, H]
            if d == 1:
                y = y[::-1]
            outs.append(y)
        h_seq = jnp.concatenate(outs, axis=-1)                # [T, B, 2H]
    y = h_seq @ params["w_out"] + params["b_out"]             # [T, B, O]
    return jnp.transpose(y, (1, 0, 2))                        # [B, T, O]


# ----------------------------------------------------------------------------
if __name__ == "__main__":
    # Small shapes consistent with the module's constructor knobs.
    batch, seq = 2, 8
    input_size, hidden_size, num_layer, output_size = 16, 32, 3, 12

    key = jax.random.PRNGKey(0)
    key, pkey, xkey = jax.random.split(key, 3)
    params = init_ext_params(pkey, input_size, hidden_size, num_layer,
                             output_size)
    x = jax.random.normal(xkey, (batch, seq, input_size), jnp.float32)

    y = ext_forward(x, params)
    jax.block_until_ready(y)
    assert y.shape == (batch, seq, output_size), y.shape

    y_ref = _ext_reference(x, params)
    np.testing.assert_allclose(np.asarray(y), np.asarray(y_ref),
                               atol=2e-4, rtol=2e-4)
    print("KERNEL_OK")
</pallas_src>

<mosaic_0001>
module attributes {stable_mosaic.version = 11 : i64} {
  func.func @_ext_fused_kernel(%arg0: memref<16x16xf32, #tpu.memory_space<vmem>>, %arg1: memref<16x256xf32, #tpu.memory_space<vmem>>, %arg2: memref<1x256xf32, #tpu.memory_space<vmem>>, %arg3: memref<2x32x128xf32, #tpu.memory_space<vmem>>, %arg4: memref<64x256xf32, #tpu.memory_space<vmem>>, %arg5: memref<1x256xf32, #tpu.memory_space<vmem>>, %arg6: memref<2x32x128xf32, #tpu.memory_space<vmem>>, %arg7: memref<64x256xf32, #tpu.memory_space<vmem>>, %arg8: memref<1x256xf32, #tpu.memory_space<vmem>>, %arg9: memref<2x32x128xf32, #tpu.memory_space<vmem>>, %arg10: memref<64x12xf32, #tpu.memory_space<vmem>>, %arg11: memref<1x12xf32, #tpu.memory_space<vmem>>, %arg12: memref<16x12xf32, #tpu.memory_space<vmem>>, %arg13: memref<16x64xf32, #tpu.memory_space<vmem>>) attributes {dimension_semantics = [], scalar_prefetch = 0 : i64, scratch_operands = 1 : i64, tpu.core_type = #tpu.core_type<tc>} {
    %c0 = arith.constant 0 : index
    %c0_0 = arith.constant 0 : index
    %0 = vector.load %arg0[%c0, %c0_0] : memref<16x16xf32, #tpu.memory_space<vmem>>, vector<16x16xf32>
    %c0_1 = arith.constant 0 : index
    %c0_2 = arith.constant 0 : index
    %1 = vector.load %arg1[%c0_1, %c0_2] : memref<16x256xf32, #tpu.memory_space<vmem>>, vector<16x256xf32>
    %cst = arith.constant dense<0.000000e+00> : vector<16x256xf32>
    %2 = tpu.matmul %0, %1, %cst {dimension_numbers = #tpu.dot_dimension_numbers<[1], [0], [0], [1], [0, 0, 1, 1], [], []>} : vector<16x16xf32>, vector<16x256xf32>, vector<16x256xf32> -> vector<16x256xf32>
    %c0_3 = arith.constant 0 : index
    %c0_4 = arith.constant 0 : index
    %3 = vector.load %arg2[%c0_3, %c0_4] : memref<1x256xf32, #tpu.memory_space<vmem>>, vector<1x256xf32>
    %4 = vector.broadcast %3 : vector<1x256xf32> to vector<16x256xf32>
    %5 = arith.addf %2, %4 : vector<16x256xf32>
    %c0_5 = arith.constant 0 : index
    %c0_6 = arith.constant 0 : index
    %c0_7 = arith.constant 0 : index
    %6 = vector.load %arg3[%c0_5, %c0_6, %c0_7] : memref<2x32x128xf32, #tpu.memory_space<vmem>>, vector<1x32x128xf32>
    %7 = vector.shape_cast %6 : vector<1x32x128xf32> to vector<32x128xf32>
    %c1 = arith.constant 1 : index
    %c0_8 = arith.constant 0 : index
    %c0_9 = arith.constant 0 : index
    %8 = vector.load %arg3[%c1, %c0_8, %c0_9] : memref<2x32x128xf32, #tpu.memory_space<vmem>>, vector<1x32x128xf32>
    %9 = vector.shape_cast %8 : vector<1x32x128xf32> to vector<32x128xf32>
    %cst_10 = arith.constant 0.000000e+00 : f32
    %10 = vector.broadcast %cst_10 : f32 to vector<2x32xf32>
    %cst_11 = arith.constant 0.000000e+00 : f32
    %11 = vector.broadcast %cst_11 : f32 to vector<2x32xf32>
    %cst_12 = arith.constant 0.000000e+00 : f32
    %12 = vector.broadcast %cst_12 : f32 to vector<2x32xf32>
    %cst_13 = arith.constant 0.000000e+00 : f32
    %13 = vector.broadcast %cst_13 : f32 to vector<2x32xf32>
    %14 = vector.extract_strided_slice %5 {offsets = [0, 0], sizes = [2, 128], strides = [1, 1]} : vector<16x256xf32> to vector<2x128xf32>
    %cst_14 = arith.constant dense<0.000000e+00> : vector<2x128xf32>
    %15 = tpu.matmul %10, %7, %cst_14 {dimension_numbers = #tpu.dot_dimension_numbers<[1], [0], [0], [1], [0, 0, 1, 1], [], []>} : vector<2x32xf32>, vector<32x128xf32>, vector<2x128xf32> -> vector<2x128xf32>
    %16 = arith.addf %14, %15 : vector<2x128xf32>
    %17 = vector.extract_strided_slice %5 {offsets = [14, 128], sizes = [2, 128], strides = [1, 1]} : vector<16x256xf32> to vector<2x128xf32>
    %cst_15 = arith.constant dense<0.000000e+00> : vector<2x128xf32>
    %18 = tpu.matmul %12, %9, %cst_15 {dimension_numbers = #tpu.dot_dimension_numbers<[1], [0], [0], [1], [0, 0, 1, 1], [], []>} : vector<2x32xf32>, vector<32x128xf32>, vector<2x128xf32> -> vector<2x128xf32>
    %19 = arith.addf %17, %18 : vector<2x128xf32>
    %20 = vector.extract_strided_slice %16 {offsets = [0, 0], sizes = [2, 32], strides = [1, 1]} : vector<2x128xf32> to vector<2x32xf32>
    %21 = arith.negf %20 : vector<2x32xf32>
    %22 = math.exp %21 : vector<2x32xf32>
    %cst_16 = arith.constant 1.000000e+00 : f32
    %23 = vector.broadcast %cst_16 : f32 to vector<2x32xf32>
    %24 = arith.addf %23, %22 : vector<2x32xf32>
    %25 = arith.divf %23, %24 : vector<2x32xf32>
    %26 = vector.extract_strided_slice %16 {offsets = [0, 32], sizes = [2, 32], strides = [1, 1]} : vector<2x128xf32> to vector<2x32xf32>
    %27 = arith.negf %26 : vector<2x32xf32>
    %28 = math.exp %27 : vector<2x32xf32>
    %cst_17 = arith.constant 1.000000e+00 : f32
    %29 = vector.broadcast %cst_17 : f32 to vector<2x32xf32>
    %30 = arith.addf %29, %28 : vector<2x32xf32>
    %31 = arith.divf %29, %30 : vector<2x32xf32>
    %32 = vector.extract_strided_slice %16 {offsets = [0, 64], sizes = [2, 32], strides = [1, 1]} : vector<2x128xf32> to vector<2x32xf32>
    %33 = math.tanh %32 : vector<2x32xf32>
    %34 = vector.extract_strided_slice %16 {offsets = [0, 96], sizes = [2, 32], strides = [1, 1]} : vector<2x128xf32> to vector<2x32xf32>
    %35 = arith.negf %34 : vector<2x32xf32>
    %36 = math.exp %35 : vector<2x32xf32>
    %cst_18 = arith.constant 1.000000e+00 : f32
    %37 = vector.broadcast %cst_18 : f32 to vector<2x32xf32>
    %38 = arith.addf %37, %36 : vector<2x32xf32>
    %39 = arith.divf %37, %38 : vector<2x32xf32>
    %40 = arith.mulf %31, %11 : vector<2x32xf32>
    %41 = arith.mulf %25, %33 : vector<2x32xf32>
    %42 = arith.addf %40, %41 : vector<2x32xf32>
    %43 = math.tanh %42 : vector<2x32xf32>
    %44 = arith.mulf %39, %43 : vector<2x32xf32>
    %45 = vector.extract_strided_slice %19 {offsets = [0, 0], sizes = [2, 32], strides = [1, 1]} : vector<2x128xf32> to vector<2x32xf32>
    %46 = arith.negf %45 : vector<2x32xf32>
    %47 = math.exp %46 : vector<2x32xf32>
    %cst_19 = arith.constant 1.000000e+00 : f32
    %48 = vector.broadcast %cst_19 : f32 to vector<2x32xf32>
    %49 = arith.addf %48, %47 : vector<2x32xf32>
    %50 = arith.divf %48, %49 : vector<2x32xf32>
    %51 = vector.extract_strided_slice %19 {offsets = [0, 32], sizes = [2, 32], strides = [1, 1]} : vector<2x128xf32> to vector<2x32xf32>
    %52 = arith.negf %51 : vector<2x32xf32>
    %53 = math.exp %52 : vector<2x32xf32>
    %cst_20 = arith.constant 1.000000e+00 : f32
    %54 = vector.broadcast %cst_20 : f32 to vector<2x32xf32>
    %55 = arith.addf %54, %53 : vector<2x32xf32>
    %56 = arith.divf %54, %55 : vector<2x32xf32>
    %57 = vector.extract_strided_slice %19 {offsets = [0, 64], sizes = [2, 32], strides = [1, 1]} : vector<2x128xf32> to vector<2x32xf32>
    %58 = math.tanh %57 : vector<2x32xf32>
    %59 = vector.extract_strided_slice %19 {offsets = [0, 96], sizes = [2, 32], strides = [1, 1]} : vector<2x128xf32> to vector<2x32xf32>
    %60 = arith.negf %59 : vector<2x32xf32>
    %61 = math.exp %60 : vector<2x32xf32>
    %cst_21 = arith.constant 1.000000e+00 : f32
    %62 = vector.broadcast %cst_21 : f32 to vector<2x32xf32>
    %63 = arith.addf %62, %61 : vector<2x32xf32>
    %64 = arith.divf %62, %63 : vector<2x32xf32>
    %65 = arith.mulf %56, %13 : vector<2x32xf32>
    %66 = arith.mulf %50, %58 : vector<2x32xf32>
    %67 = arith.addf %65, %66 : vector<2x32xf32>
    %68 = math.tanh %67 : vector<2x32xf32>
    %69 = arith.mulf %64, %68 : vector<2x32xf32>
    %c0_22 = arith.constant 0 : index
    %c0_23 = arith.constant 0 : index
    %70 = vector.load %arg13[%c0_22, %c0_23] : memref<16x64xf32, #tpu.memory_space<vmem>>, vector<2x32xf32>
    tpu.vector_store %arg13[%c0_22, %c0_23], %44 {strides = array<i32>} : memref<16x64xf32, #tpu.memory_space<vmem>>, vector<2x32xf32>,
    %c14 = arith.constant 14 : index
    %c32 = arith.constant 32 : index
    %71 = vector.load %arg13[%c14, %c32] : memref<16x64xf32, #tpu.memory_space<vmem>>, vector<2x32xf32>
    tpu.vector_store %arg13[%c14, %c32], %69 {strides = array<i32>} : memref<16x64xf32, #tpu.memory_space<vmem>>, vector<2x32xf32>,
    %72 = vector.extract_strided_slice %5 {offsets = [2, 0], sizes = [2, 128], strides = [1, 1]} : vector<16x256xf32> to vector<2x128xf32>
    %cst_24 = arith.constant dense<0.000000e+00> : vector<2x128xf32>
    %73 = tpu.matmul %44, %7, %cst_24 {dimension_numbers = #tpu.dot_dimension_numbers<[1], [0], [0], [1], [0, 0, 1, 1], [], []>} : vector<2x32xf32>, vector<32x128xf32>, vector<2x128xf32> -> vector<2x128xf32>
    %74 = arith.addf %72, %73 : vector<2x128xf32>
    %75 = vector.extract_strided_slice %5 {offsets = [12, 128], sizes = [2, 128], strides = [1, 1]} : vector<16x256xf32> to vector<2x128xf32>
    %cst_25 = arith.constant dense<0.000000e+00> : vector<2x128xf32>
    %76 = tpu.matmul %69, %9, %cst_25 {dimension_numbers = #tpu.dot_dimension_numbers<[1], [0], [0], [1], [0, 0, 1, 1], [], []>} : vector<2x32xf32>, vector<32x128xf32>, vector<2x128xf32> -> vector<2x128xf32>
    %77 = arith.addf %75, %76 : vector<2x128xf32>
    %78 = vector.extract_strided_slice %74 {offsets = [0, 0], sizes = [2, 32], strides = [1, 1]} : vector<2x128xf32> to vector<2x32xf32>
    %79 = arith.negf %78 : vector<2x32xf32>
    %80 = math.exp %79 : vector<2x32xf32>
    %cst_26 = arith.constant 1.000000e+00 : f32
    %81 = vector.broadcast %cst_26 : f32 to vector<2x32xf32>
    %82 = arith.addf %81, %80 : vector<2x32xf32>
    %83 = arith.divf %81, %82 : vector<2x32xf32>
    %84 = vector.extract_strided_slice %74 {offsets = [0, 32], sizes = [2, 32], strides = [1, 1]} : vector<2x128xf32> to vector<2x32xf32>
    %85 = arith.negf %84 : vector<2x32xf32>
    %86 = math.exp %85 : vector<2x32xf32>
    %cst_27 = arith.constant 1.000000e+00 : f32
    %87 = vector.broadcast %cst_27 : f32 to vector<2x32xf32>
    %88 = arith.addf %87, %86 : vector<2x32xf32>
    %89 = arith.divf %87, %88 : vector<2x32xf32>
    %90 = vector.extract_strided_slice %74 {offsets = [0, 64], sizes = [2, 32], strides = [1, 1]} : vector<2x128xf32> to vector<2x32xf32>
    %91 = math.tanh %90 : vector<2x32xf32>
    %92 = vector.extract_strided_slice %74 {offsets = [0, 96], sizes = [2, 32], strides = [1, 1]} : vector<2x128xf32> to vector<2x32xf32>
    %93 = arith.negf %92 : vector<2x32xf32>
    %94 = math.exp %93 : vector<2x32xf32>
    %cst_28 = arith.constant 1.000000e+00 : f32
    %95 = vector.broadcast %cst_28 : f32 to vector<2x32xf32>
    %96 = arith.addf %95, %94 : vector<2x32xf32>
    %97 = arith.divf %95, %96 : vector<2x32xf32>
    %98 = arith.mulf %89, %42 : vector<2x32xf32>
    %99 = arith.mulf %83, %91 : vector<2x32xf32>
    %100 = arith.addf %98, %99 : vector<2x32xf32>
    %101 = math.tanh %100 : vector<2x32xf32>
    %102 = arith.mulf %97, %101 : vector<2x32xf32>
    %103 = vector.extract_strided_slice %77 {offsets = [0, 0], sizes = [2, 32], strides = [1, 1]} : vector<2x128xf32> to vector<2x32xf32>
    %104 = arith.negf %103 : vector<2x32xf32>
    %105 = math.exp %104 : vector<2x32xf32>
    %cst_29 = arith.constant 1.000000e+00 : f32
    %106 = vector.broadcast %cst_29 : f32 to vector<2x32xf32>
    %107 = arith.addf %106, %105 : vector<2x32xf32>
    %108 = arith.divf %106, %107 : vector<2x32xf32>
    %109 = vector.extract_strided_slice %77 {offsets = [0, 32], sizes = [2, 32], strides = [1, 1]} : vector<2x128xf32> to vector<2x32xf32>
    %110 = arith.negf %109 : vector<2x32xf32>
    %111 = math.exp %110 : vector<2x32xf32>
    %cst_30 = arith.constant 1.000000e+00 : f32
    %112 = vector.broadcast %cst_30 : f32 to vector<2x32xf32>
    %113 = arith.addf %112, %111 : vector<2x32xf32>
    %114 = arith.divf %112, %113 : vector<2x32xf32>
    %115 = vector.extract_strided_slice %77 {offsets = [0, 64], sizes = [2, 32], strides = [1, 1]} : vector<2x128xf32> to vector<2x32xf32>
    %116 = math.tanh %115 : vector<2x32xf32>
    %117 = vector.extract_strided_slice %77 {offsets = [0, 96], sizes = [2, 32], strides = [1, 1]} : vector<2x128xf32> to vector<2x32xf32>
    %118 = arith.negf %117 : vector<2x32xf32>
    %119 = math.exp %118 : vector<2x32xf32>
    %cst_31 = arith.constant 1.000000e+00 : f32
    %120 = vector.broadcast %cst_31 : f32 to vector<2x32xf32>
    %121 = arith.addf %120, %119 : vector<2x32xf32>
    %122 = arith.divf %120, %121 : vector<2x32xf32>
    %123 = arith.mulf %114, %67 : vector<2x32xf32>
    %124 = arith.mulf %108, %116 : vector<2x32xf32>
    %125 = arith.addf %123, %124 : vector<2x32xf32>
    %126 = math.tanh %125 : vector<2x32xf32>
    %127 = arith.mulf %122, %126 : vector<2x32xf32>
    %c2 = arith.constant 2 : index
    %c0_32 = arith.constant 0 : index
    %128 = vector.load %arg13[%c2, %c0_32] : memref<16x64xf32, #tpu.memory_space<vmem>>, vector<2x32xf32>
    tpu.vector_store %arg13[%c2, %c0_32], %102 {strides = array<i32>} : memref<16x64xf32, #tpu.memory_space<vmem>>, vector<2x32xf32>,
    %c12 = arith.constant 12 : index
    %c32_33 = arith.constant 32 : index
    %129 = vector.load %arg13[%c12, %c32_33] : memref<16x64xf32, #tpu.memory_space<vmem>>, vector<2x32xf32>
    tpu.vector_store %arg13[%c12, %c32_33], %127 {strides = array<i32>} : memref<16x64xf32, #tpu.memory_space<vmem>>, vector<2x32xf32>,
    %130 = vector.extract_strided_slice %5 {offsets = [4, 0], sizes = [2, 128], strides = [1, 1]} : vector<16x256xf32> to vector<2x128xf32>
    %cst_34 = arith.constant dense<0.000000e+00> : vector<2x128xf32>
    %131 = tpu.matmul %102, %7, %cst_34 {dimension_numbers = #tpu.dot_dimension_numbers<[1], [0], [0], [1], [0, 0, 1, 1], [], []>} : vector<2x32xf32>, vector<32x128xf32>, vector<2x128xf32> -> vector<2x128xf32>
    %132 = arith.addf %130, %131 : vector<2x128xf32>
    %133 = vector.extract_strided_slice %5 {offsets = [10, 128], sizes = [2, 128], strides = [1, 1]} : vector<16x256xf32> to vector<2x128xf32>
    %cst_35 = arith.constant dense<0.000000e+00> : vector<2x128xf32>
    %134 = tpu.matmul %127, %9, %cst_35 {dimension_numbers = #tpu.dot_dimension_numbers<[1], [0], [0], [1], [0, 0, 1, 1], [], []>} : vector<2x32xf32>, vector<32x128xf32>, vector<2x128xf32> -> vector<2x128xf32>
    %135 = arith.addf %133, %134 : vector<2x128xf32>
    %136 = vector.extract_strided_slice %132 {offsets = [0, 0], sizes = [2, 32], strides = [1, 1]} : vector<2x128xf32> to vector<2x32xf32>
    %137 = arith.negf %136 : vector<2x32xf32>
    %138 = math.exp %137 : vector<2x32xf32>
    %cst_36 = arith.constant 1.000000e+00 : f32
    %139 = vector.broadcast %cst_36 : f32 to vector<2x32xf32>
    %140 = arith.addf %139, %138 : vector<2x32xf32>
    %141 = arith.divf %139, %140 : vector<2x32xf32>
    %142 = vector.extract_strided_slice %132 {offsets = [0, 32], sizes = [2, 32], strides = [1, 1]} : vector<2x128xf32> to vector<2x32xf32>
    %143 = arith.negf %142 : vector<2x32xf32>
    %144 = math.exp %143 : vector<2x32xf32>
    %cst_37 = arith.constant 1.000000e+00 : f32
    %145 = vector.broadcast %cst_37 : f32 to vector<2x32xf32>
    %146 = arith.addf %145, %144 : vector<2x32xf32>
    %147 = arith.divf %145, %146 : vector<2x32xf32>
    %148 = vector.extract_strided_slice %132 {offsets = [0, 64], sizes = [2, 32], strides = [1, 1]} : vector<2x128xf32> to vector<2x32xf32>
    %149 = math.tanh %148 : vector<2x32xf32>
    %150 = vector.extract_strided_slice %132 {offsets = [0, 96], sizes = [2, 32], strides = [1, 1]} : vector<2x128xf32> to vector<2x32xf32>
    %151 = arith.negf %150 : vector<2x32xf32>
    %152 = math.exp %151 : vector<2x32xf32>
    %cst_38 = arith.constant 1.000000e+00 : f32
    %153 = vector.broadcast %cst_38 : f32 to vector<2x32xf32>
    %154 = arith.addf %153, %152 : vector<2x32xf32>
    %155 = arith.divf %153, %154 : vector<2x32xf32>
    %156 = arith.mulf %147, %100 : vector<2x32xf32>
    %157 = arith.mulf %141, %149 : vector<2x32xf32>
    %158 = arith.addf %156, %157 : vector<2x32xf32>
    %159 = math.tanh %158 : vector<2x32xf32>
    %160 = arith.mulf %155, %159 : vector<2x32xf32>
    %161 = vector.extract_strided_slice %135 {offsets = [0, 0], sizes = [2, 32], strides = [1, 1]} : vector<2x128xf32> to vector<2x32xf32>
    %162 = arith.negf %161 : vector<2x32xf32>
    %163 = math.exp %162 : vector<2x32xf32>
    %cst_39 = arith.constant 1.000000e+00 : f32
    %164 = vector.broadcast %cst_39 : f32 to vector<2x32xf32>
    %165 = arith.addf %164, %163 : vector<2x32xf32>
    %166 = arith.divf %164, %165 : vector<2x32xf32>
    %167 = vector.extract_strided_slice %135 {offsets = [0, 32], sizes = [2, 32], strides = [1, 1]} : vector<2x128xf32> to vector<2x32xf32>
    %168 = arith.negf %167 : vector<2x32xf32>
    %169 = math.exp %168 : vector<2x32xf32>
    %cst_40 = arith.constant 1.000000e+00 : f32
    %170 = vector.broadcast %cst_40 : f32 to vector<2x32xf32>
    %171 = arith.addf %170, %169 : vector<2x32xf32>
    %172 = arith.divf %170, %171 : vector<2x32xf32>
    %173 = vector.extract_strided_slice %135 {offsets = [0, 64], sizes = [2, 32], strides = [1, 1]} : vector<2x128xf32> to vector<2x32xf32>
    %174 = math.tanh %173 : vector<2x32xf32>
    %175 = vector.extract_strided_slice %135 {offsets = [0, 96], sizes = [2, 32], strides = [1, 1]} : vector<2x128xf32> to vector<2x32xf32>
    %176 = arith.negf %175 : vector<2x32xf32>
    %177 = math.exp %176 : vector<2x32xf32>
    %cst_41 = arith.constant 1.000000e+00 : f32
    %178 = vector.broadcast %cst_41 : f32 to vector<2x32xf32>
    %179 = arith.addf %178, %177 : vector<2x32xf32>
    %180 = arith.divf %178, %179 : vector<2x32xf32>
    %181 = arith.mulf %172, %125 : vector<2x32xf32>
    %182 = arith.mulf %166, %174 : vector<2x32xf32>
    %183 = arith.addf %181, %182 : vector<2x32xf32>
    %184 = math.tanh %183 : vector<2x32xf32>
    %185 = arith.mulf %180, %184 : vector<2x32xf32>
    %c4 = arith.constant 4 : index
    %c0_42 = arith.constant 0 : index
    %186 = vector.load %arg13[%c4, %c0_42] : memref<16x64xf32, #tpu.memory_space<vmem>>, vector<2x32xf32>
    tpu.vector_store %arg13[%c4, %c0_42], %160 {strides = array<i32>} : memref<16x64xf32, #tpu.memory_space<vmem>>, vector<2x32xf32>,
    %c10 = arith.constant 10 : index
    %c32_43 = arith.constant 32 : index
    %187 = vector.load %arg13[%c10, %c32_43] : memref<16x64xf32, #tpu.memory_space<vmem>>, vector<2x32xf32>
    tpu.vector_store %arg13[%c10, %c32_43], %185 {strides = array<i32>} : memref<16x64xf32, #tpu.memory_space<vmem>>, vector<2x32xf32>,
    %188 = vector.extract_strided_slice %5 {offsets = [6, 0], sizes = [2, 128], strides = [1, 1]} : vector<16x256xf32> to vector<2x128xf32>
    %cst_44 = arith.constant dense<0.000000e+00> : vector<2x128xf32>
    %189 = tpu.matmul %160, %7, %cst_44 {dimension_numbers = #tpu.dot_dimension_numbers<[1], [0], [0], [1], [0, 0, 1, 1], [], []>} : vector<2x32xf32>, vector<32x128xf32>, vector<2x128xf32> -> vector<2x128xf32>
    %190 = arith.addf %188, %189 : vector<2x128xf32>
    %191 = vector.extract_strided_slice %5 {offsets = [8, 128], sizes = [2, 128], strides = [1, 1]} : vector<16x256xf32> to vector<2x128xf32>
    %cst_45 = arith.constant dense<0.000000e+00> : vector<2x128xf32>
    %192 = tpu.matmul %185, %9, %cst_45 {dimension_numbers = #tpu.dot_dimension_numbers<[1], [0], [0], [1], [0, 0, 1, 1], [], []>} : vector<2x32xf32>, vector<32x128xf32>, vector<2x128xf32> -> vector<2x128xf32>
    %193 = arith.addf %191, %192 : vector<2x128xf32>
    %194 = vector.extract_strided_slice %190 {offsets = [0, 0], sizes = [2, 32], strides = [1, 1]} : vector<2x128xf32> to vector<2x32xf32>
    %195 = arith.negf %194 : vector<2x32xf32>
    %196 = math.exp %195 : vector<2x32xf32>
    %cst_46 = arith.constant 1.000000e+00 : f32
    %197 = vector.broadcast %cst_46 : f32 to vector<2x32xf32>
    %198 = arith.addf %197, %196 : vector<2x32xf32>
    %199 = arith.divf %197, %198 : vector<2x32xf32>
    %200 = vector.extract_strided_slice %190 {offsets = [0, 32], sizes = [2, 32], strides = [1, 1]} : vector<2x128xf32> to vector<2x32xf32>
    %201 = arith.negf %200 : vector<2x32xf32>
    %202 = math.exp %201 : vector<2x32xf32>
    %cst_47 = arith.constant 1.000000e+00 : f32
    %203 = vector.broadcast %cst_47 : f32 to vector<2x32xf32>
    %204 = arith.addf %203, %202 : vector<2x32xf32>
    %205 = arith.divf %203, %204 : vector<2x32xf32>
    %206 = vector.extract_strided_slice %190 {offsets = [0, 64], sizes = [2, 32], strides = [1, 1]} : vector<2x128xf32> to vector<2x32xf32>
    %207 = math.tanh %206 : vector<2x32xf32>
    %208 = vector.extract_strided_slice %190 {offsets = [0, 96], sizes = [2, 32], strides = [1, 1]} : vector<2x128xf32> to vector<2x32xf32>
    %209 = arith.negf %208 : vector<2x32xf32>
    %210 = math.exp %209 : vector<2x32xf32>
    %cst_48 = arith.constant 1.000000e+00 : f32
    %211 = vector.broadcast %cst_48 : f32 to vector<2x32xf32>
    %212 = arith.addf %211, %210 : vector<2x32xf32>
    %213 = arith.divf %211, %212 : vector<2x32xf32>
    %214 = arith.mulf %205, %158 : vector<2x32xf32>
    %215 = arith.mulf %199, %207 : vector<2x32xf32>
    %216 = arith.addf %214, %215 : vector<2x32xf32>
    %217 = math.tanh %216 : vector<2x32xf32>
    %218 = arith.mulf %213, %217 : vector<2x32xf32>
    %219 = vector.extract_strided_slice %193 {offsets = [0, 0], sizes = [2, 32], strides = [1, 1]} : vector<2x128xf32> to vector<2x32xf32>
    %220 = arith.negf %219 : vector<2x32xf32>
    %221 = math.exp %220 : vector<2x32xf32>
    %cst_49 = arith.constant 1.000000e+00 : f32
    %222 = vector.broadcast %cst_49 : f32 to vector<2x32xf32>
    %223 = arith.addf %222, %221 : vector<2x32xf32>
    %224 = arith.divf %222, %223 : vector<2x32xf32>
    %225 = vector.extract_strided_slice %193 {offsets = [0, 32], sizes = [2, 32], strides = [1, 1]} : vector<2x128xf32> to vector<2x32xf32>
    %226 = arith.negf %225 : vector<2x32xf32>
    %227 = math.exp %226 : vector<2x32xf32>
    %cst_50 = arith.constant 1.000000e+00 : f32
    %228 = vector.broadcast %cst_50 : f32 to vector<2x32xf32>
    %229 = arith.addf %228, %227 : vector<2x32xf32>
    %230 = arith.divf %228, %229 : vector<2x32xf32>
    %231 = vector.extract_strided_slice %193 {offsets = [0, 64], sizes = [2, 32], strides = [1, 1]} : vector<2x128xf32> to vector<2x32xf32>
    %232 = math.tanh %231 : vector<2x32xf32>
    %233 = vector.extract_strided_slice %193 {offsets = [0, 96], sizes = [2, 32], strides = [1, 1]} : vector<2x128xf32> to vector<2x32xf32>
    %234 = arith.negf %233 : vector<2x32xf32>
    %235 = math.exp %234 : vector<2x32xf32>
    %cst_51 = arith.constant 1.000000e+00 : f32
    %236 = vector.broadcast %cst_51 : f32 to vector<2x32xf32>
    %237 = arith.addf %236, %235 : vector<2x32xf32>
    %238 = arith.divf %236, %237 : vector<2x32xf32>
    %239 = arith.mulf %230, %183 : vector<2x32xf32>
    %240 = arith.mulf %224, %232 : vector<2x32xf32>
    %241 = arith.addf %239, %240 : vector<2x32xf32>
    %242 = math.tanh %241 : vector<2x32xf32>
    %243 = arith.mulf %238, %242 : vector<2x32xf32>
    %c6 = arith.constant 6 : index
    %c0_52 = arith.constant 0 : index
    %244 = vector.load %arg13[%c6, %c0_52] : memref<16x64xf32, #tpu.memory_space<vmem>>, vector<2x32xf32>
    tpu.vector_store %arg13[%c6, %c0_52], %218 {strides = array<i32>} : memref<16x64xf32, #tpu.memory_space<vmem>>, vector<2x32xf32>,
    %c8 = arith.constant 8 : index
    %c32_53 = arith.constant 32 : index
    %245 = vector.load %arg13[%c8, %c32_53] : memref<16x64xf32, #tpu.memory_space<vmem>>, vector<2x32xf32>
    tpu.vector_store %arg13[%c8, %c32_53], %243 {strides = array<i32>} : memref<16x64xf32, #tpu.memory_space<vmem>>, vector<2x32xf32>,
    %246 = vector.extract_strided_slice %5 {offsets = [8, 0], sizes = [2, 128], strides = [1, 1]} : vector<16x256xf32> to vector<2x128xf32>
    %cst_54 = arith.constant dense<0.000000e+00> : vector<2x128xf32>
    %247 = tpu.matmul %218, %7, %cst_54 {dimension_numbers = #tpu.dot_dimension_numbers<[1], [0], [0], [1], [0, 0, 1, 1], [], []>} : vector<2x32xf32>, vector<32x128xf32>, vector<2x128xf32> -> vector<2x128xf32>
    %248 = arith.addf %246, %247 : vector<2x128xf32>
    %249 = vector.extract_strided_slice %5 {offsets = [6, 128], sizes = [2, 128], strides = [1, 1]} : vector<16x256xf32> to vector<2x128xf32>
    %cst_55 = arith.constant dense<0.000000e+00> : vector<2x128xf32>
    %250 = tpu.matmul %243, %9, %cst_55 {dimension_numbers = #tpu.dot_dimension_numbers<[1], [0], [0], [1], [0, 0, 1, 1], [], []>} : vector<2x32xf32>, vector<32x128xf32>, vector<2x128xf32> -> vector<2x128xf32>
    %251 = arith.addf %249, %250 : vector<2x128xf32>
    %252 = vector.extract_strided_slice %248 {offsets = [0, 0], sizes = [2, 32], strides = [1, 1]} : vector<2x128xf32> to vector<2x32xf32>
    %253 = arith.negf %252 : vector<2x32xf32>
    %254 = math.exp %253 : vector<2x32xf32>
    %cst_56 = arith.constant 1.000000e+00 : f32
    %255 = vector.broadcast %cst_56 : f32 to vector<2x32xf32>
    %256 = arith.addf %255, %254 : vector<2x32xf32>
    %257 = arith.divf %255, %256 : vector<2x32xf32>
    %258 = vector.extract_strided_slice %248 {offsets = [0, 32], sizes = [2, 32], strides = [1, 1]} : vector<2x128xf32> to vector<2x32xf32>
    %259 = arith.negf %258 : vector<2x32xf32>
    %260 = math.exp %259 : vector<2x32xf32>
    %cst_57 = arith.constant 1.000000e+00 : f32
    %261 = vector.broadcast %cst_57 : f32 to vector<2x32xf32>
    %262 = arith.addf %261, %260 : vector<2x32xf32>
    %263 = arith.divf %261, %262 : vector<2x32xf32>
    %264 = vector.extract_strided_slice %248 {offsets = [0, 64], sizes = [2, 32], strides = [1, 1]} : vector<2x128xf32> to vector<2x32xf32>
    %265 = math.tanh %264 : vector<2x32xf32>
    %266 = vector.extract_strided_slice %248 {offsets = [0, 96], sizes = [2, 32], strides = [1, 1]} : vector<2x128xf32> to vector<2x32xf32>
    %267 = arith.negf %266 : vector<2x32xf32>
    %268 = math.exp %267 : vector<2x32xf32>
    %cst_58 = arith.constant 1.000000e+00 : f32
    %269 = vector.broadcast %cst_58 : f32 to vector<2x32xf32>
    %270 = arith.addf %269, %268 : vector<2x32xf32>
    %271 = arith.divf %269, %270 : vector<2x32xf32>
    %272 = arith.mulf %263, %216 : vector<2x32xf32>
    %273 = arith.mulf %257, %265 : vector<2x32xf32>
    %274 = arith.addf %272, %273 : vector<2x32xf32>
    %275 = math.tanh %274 : vector<2x32xf32>
    %276 = arith.mulf %271, %275 : vector<2x32xf32>
    %277 = vector.extract_strided_slice %251 {offsets = [0, 0], sizes = [2, 32], strides = [1, 1]} : vector<2x128xf32> to vector<2x32xf32>
    %278 = arith.negf %277 : vector<2x32xf32>
    %279 = math.exp %278 : vector<2x32xf32>
    %cst_59 = arith.constant 1.000000e+00 : f32
    %280 = vector.broadcast %cst_59 : f32 to vector<2x32xf32>
    %281 = arith.addf %280, %279 : vector<2x32xf32>
    %282 = arith.divf %280, %281 : vector<2x32xf32>
    %283 = vector.extract_strided_slice %251 {offsets = [0, 32], sizes = [2, 32], strides = [1, 1]} : vector<2x128xf32> to vector<2x32xf32>
    %284 = arith.negf %283 : vector<2x32xf32>
    %285 = math.exp %284 : vector<2x32xf32>
    %cst_60 = arith.constant 1.000000e+00 : f32
    %286 = vector.broadcast %cst_60 : f32 to vector<2x32xf32>
    %287 = arith.addf %286, %285 : vector<2x32xf32>
    %288 = arith.divf %286, %287 : vector<2x32xf32>
    %289 = vector.extract_strided_slice %251 {offsets = [0, 64], sizes = [2, 32], strides = [1, 1]} : vector<2x128xf32> to vector<2x32xf32>
    %290 = math.tanh %289 : vector<2x32xf32>
    %291 = vector.extract_strided_slice %251 {offsets = [0, 96], sizes = [2, 32], strides = [1, 1]} : vector<2x128xf32> to vector<2x32xf32>
    %292 = arith.negf %291 : vector<2x32xf32>
    %293 = math.exp %292 : vector<2x32xf32>
    %cst_61 = arith.constant 1.000000e+00 : f32
    %294 = vector.broadcast %cst_61 : f32 to vector<2x32xf32>
    %295 = arith.addf %294, %293 : vector<2x32xf32>
    %296 = arith.divf %294, %295 : vector<2x32xf32>
    %297 = arith.mulf %288, %241 : vector<2x32xf32>
    %298 = arith.mulf %282, %290 : vector<2x32xf32>
    %299 = arith.addf %297, %298 : vector<2x32xf32>
    %300 = math.tanh %299 : vector<2x32xf32>
    %301 = arith.mulf %296, %300 : vector<2x32xf32>
    %c8_62 = arith.constant 8 : index
    %c0_63 = arith.constant 0 : index
    %302 = vector.load %arg13[%c8_62, %c0_63] : memref<16x64xf32, #tpu.memory_space<vmem>>, vector<2x32xf32>
    tpu.vector_store %arg13[%c8_62, %c0_63], %276 {strides = array<i32>} : memref<16x64xf32, #tpu.memory_space<vmem>>, vector<2x32xf32>,
    %c6_64 = arith.constant 6 : index
    %c32_65 = arith.constant 32 : index
    %303 = vector.load %arg13[%c6_64, %c32_65] : memref<16x64xf32, #tpu.memory_space<vmem>>, vector<2x32xf32>
    tpu.vector_store %arg13[%c6_64, %c32_65], %301 {strides = array<i32>} : memref<16x64xf32, #tpu.memory_space<vmem>>, vector<2x32xf32>,
    %304 = vector.extract_strided_slice %5 {offsets = [10, 0], sizes = [2, 128], strides = [1, 1]} : vector<16x256xf32> to vector<2x128xf32>
    %cst_66 = arith.constant dense<0.000000e+00> : vector<2x128xf32>
    %305 = tpu.matmul %276, %7, %cst_66 {dimension_numbers = #tpu.dot_dimension_numbers<[1], [0], [0], [1], [0, 0, 1, 1], [], []>} : vector<2x32xf32>, vector<32x128xf32>, vector<2x128xf32> -> vector<2x128xf32>
    %306 = arith.addf %304, %305 : vector<2x128xf32>
    %307 = vector.extract_strided_slice %5 {offsets = [4, 128], sizes = [2, 128], strides = [1, 1]} : vector<16x256xf32> to vector<2x128xf32>
    %cst_67 = arith.constant dense<0.000000e+00> : vector<2x128xf32>
    %308 = tpu.matmul %301, %9, %cst_67 {dimension_numbers = #tpu.dot_dimension_numbers<[1], [0], [0], [1], [0, 0, 1, 1], [], []>} : vector<2x32xf32>, vector<32x128xf32>, vector<2x128xf32> -> vector<2x128xf32>
    %309 = arith.addf %307, %308 : vector<2x128xf32>
    %310 = vector.extract_strided_slice %306 {offsets = [0, 0], sizes = [2, 32], strides = [1, 1]} : vector<2x128xf32> to vector<2x32xf32>
    %311 = arith.negf %310 : vector<2x32xf32>
    %312 = math.exp %311 : vector<2x32xf32>
    %cst_68 = arith.constant 1.000000e+00 : f32
    %313 = vector.broadcast %cst_68 : f32 to vector<2x32xf32>
    %314 = arith.addf %313, %312 : vector<2x32xf32>
    %315 = arith.divf %313, %314 : vector<2x32xf32>
    %316 = vector.extract_strided_slice %306 {offsets = [0, 32], sizes = [2, 32], strides = [1, 1]} : vector<2x128xf32> to vector<2x32xf32>
    %317 = arith.negf %316 : vector<2x32xf32>
    %318 = math.exp %317 : vector<2x32xf32>
    %cst_69 = arith.constant 1.000000e+00 : f32
    %319 = vector.broadcast %cst_69 : f32 to vector<2x32xf32>
    %320 = arith.addf %319, %318 : vector<2x32xf32>
    %321 = arith.divf %319, %320 : vector<2x32xf32>
    %322 = vector.extract_strided_slice %306 {offsets = [0, 64], sizes = [2, 32], strides = [1, 1]} : vector<2x128xf32> to vector<2x32xf32>
    %323 = math.tanh %322 : vector<2x32xf32>
    %324 = vector.extract_strided_slice %306 {offsets = [0, 96], sizes = [2, 32], strides = [1, 1]} : vector<2x128xf32> to vector<2x32xf32>
    %325 = arith.negf %324 : vector<2x32xf32>
    %326 = math.exp %325 : vector<2x32xf32>
    %cst_70 = arith.constant 1.000000e+00 : f32
    %327 = vector.broadcast %cst_70 : f32 to vector<2x32xf32>
    %328 = arith.addf %327, %326 : vector<2x32xf32>
    %329 = arith.divf %327, %328 : vector<2x32xf32>
    %330 = arith.mulf %321, %274 : vector<2x32xf32>
    %331 = arith.mulf %315, %323 : vector<2x32xf32>
    %332 = arith.addf %330, %331 : vector<2x32xf32>
    %333 = math.tanh %332 : vector<2x32xf32>
    %334 = arith.mulf %329, %333 : vector<2x32xf32>
    %335 = vector.extract_strided_slice %309 {offsets = [0, 0], sizes = [2, 32], strides = [1, 1]} : vector<2x128xf32> to vector<2x32xf32>
    %336 = arith.negf %335 : vector<2x32xf32>
    %337 = math.exp %336 : vector<2x32xf32>
    %cst_71 = arith.constant 1.000000e+00 : f32
    %338 = vector.broadcast %cst_71 : f32 to vector<2x32xf32>
    %339 = arith.addf %338, %337 : vector<2x32xf32>
    %340 = arith.divf %338, %339 : vector<2x32xf32>
    %341 = vector.extract_strided_slice %309 {offsets = [0, 32], sizes = [2, 32], strides = [1, 1]} : vector<2x128xf32> to vector<2x32xf32>
    %342 = arith.negf %341 : vector<2x32xf32>
    %343 = math.exp %342 : vector<2x32xf32>
    %cst_72 = arith.constant 1.000000e+00 : f32
    %344 = vector.broadcast %cst_72 : f32 to vector<2x32xf32>
    %345 = arith.addf %344, %343 : vector<2x32xf32>
    %346 = arith.divf %344, %345 : vector<2x32xf32>
    %347 = vector.extract_strided_slice %309 {offsets = [0, 64], sizes = [2, 32], strides = [1, 1]} : vector<2x128xf32> to vector<2x32xf32>
    %348 = math.tanh %347 : vector<2x32xf32>
    %349 = vector.extract_strided_slice %309 {offsets = [0, 96], sizes = [2, 32], strides = [1, 1]} : vector<2x128xf32> to vector<2x32xf32>
    %350 = arith.negf %349 : vector<2x32xf32>
    %351 = math.exp %350 : vector<2x32xf32>
    %cst_73 = arith.constant 1.000000e+00 : f32
    %352 = vector.broadcast %cst_73 : f32 to vector<2x32xf32>
    %353 = arith.addf %352, %351 : vector<2x32xf32>
    %354 = arith.divf %352, %353 : vector<2x32xf32>
    %355 = arith.mulf %346, %299 : vector<2x32xf32>
    %356 = arith.mulf %340, %348 : vector<2x32xf32>
    %357 = arith.addf %355, %356 : vector<2x32xf32>
    %358 = math.tanh %357 : vector<2x32xf32>
    %359 = arith.mulf %354, %358 : vector<2x32xf32>
    %c10_74 = arith.constant 10 : index
    %c0_75 = arith.constant 0 : index
    %360 = vector.load %arg13[%c10_74, %c0_75] : memref<16x64xf32, #tpu.memory_space<vmem>>, vector<2x32xf32>
    tpu.vector_store %arg13[%c10_74, %c0_75], %334 {strides = array<i32>} : memref<16x64xf32, #tpu.memory_space<vmem>>, vector<2x32xf32>,
    %c4_76 = arith.constant 4 : index
    %c32_77 = arith.constant 32 : index
    %361 = vector.load %arg13[%c4_76, %c32_77] : memref<16x64xf32, #tpu.memory_space<vmem>>, vector<2x32xf32>
    tpu.vector_store %arg13[%c4_76, %c32_77], %359 {strides = array<i32>} : memref<16x64xf32, #tpu.memory_space<vmem>>, vector<2x32xf32>,
    %362 = vector.extract_strided_slice %5 {offsets = [12, 0], sizes = [2, 128], strides = [1, 1]} : vector<16x256xf32> to vector<2x128xf32>
    %cst_78 = arith.constant dense<0.000000e+00> : vector<2x128xf32>
    %363 = tpu.matmul %334, %7, %cst_78 {dimension_numbers = #tpu.dot_dimension_numbers<[1], [0], [0], [1], [0, 0, 1, 1], [], []>} : vector<2x32xf32>, vector<32x128xf32>, vector<2x128xf32> -> vector<2x128xf32>
    %364 = arith.addf %362, %363 : vector<2x128xf32>
    %365 = vector.extract_strided_slice %5 {offsets = [2, 128], sizes = [2, 128], strides = [1, 1]} : vector<16x256xf32> to vector<2x128xf32>
    %cst_79 = arith.constant dense<0.000000e+00> : vector<2x128xf32>
    %366 = tpu.matmul %359, %9, %cst_79 {dimension_numbers = #tpu.dot_dimension_numbers<[1], [0], [0], [1], [0, 0, 1, 1], [], []>} : vector<2x32xf32>, vector<32x128xf32>, vector<2x128xf32> -> vector<2x128xf32>
    %367 = arith.addf %365, %366 : vector<2x128xf32>
    %368 = vector.extract_strided_slice %364 {offsets = [0, 0], sizes = [2, 32], strides = [1, 1]} : vector<2x128xf32> to vector<2x32xf32>
    %369 = arith.negf %368 : vector<2x32xf32>
    %370 = math.exp %369 : vector<2x32xf32>
    %cst_80 = arith.constant 1.000000e+00 : f32
    %371 = vector.broadcast %cst_80 : f32 to vector<2x32xf32>
    %372 = arith.addf %371, %370 : vector<2x32xf32>
    %373 = arith.divf %371, %372 : vector<2x32xf32>
    %374 = vector.extract_strided_slice %364 {offsets = [0, 32], sizes = [2, 32], strides = [1, 1]} : vector<2x128xf32> to vector<2x32xf32>
    %375 = arith.negf %374 : vector<2x32xf32>
    %376 = math.exp %375 : vector<2x32xf32>
    %cst_81 = arith.constant 1.000000e+00 : f32
    %377 = vector.broadcast %cst_81 : f32 to vector<2x32xf32>
    %378 = arith.addf %377, %376 : vector<2x32xf32>
    %379 = arith.divf %377, %378 : vector<2x32xf32>
    %380 = vector.extract_strided_slice %364 {offsets = [0, 64], sizes = [2, 32], strides = [1, 1]} : vector<2x128xf32> to vector<2x32xf32>
    %381 = math.tanh %380 : vector<2x32xf32>
    %382 = vector.extract_strided_slice %364 {offsets = [0, 96], sizes = [2, 32], strides = [1, 1]} : vector<2x128xf32> to vector<2x32xf32>
    %383 = arith.negf %382 : vector<2x32xf32>
    %384 = math.exp %383 : vector<2x32xf32>
    %cst_82 = arith.constant 1.000000e+00 : f32
    %385 = vector.broadcast %cst_82 : f32 to vector<2x32xf32>
    %386 = arith.addf %385, %384 : vector<2x32xf32>
    %387 = arith.divf %385, %386 : vector<2x32xf32>
    %388 = arith.mulf %379, %332 : vector<2x32xf32>
    %389 = arith.mulf %373, %381 : vector<2x32xf32>
    %390 = arith.addf %388, %389 : vector<2x32xf32>
    %391 = math.tanh %390 : vector<2x32xf32>
    %392 = arith.mulf %387, %391 : vector<2x32xf32>
    %393 = vector.extract_strided_slice %367 {offsets = [0, 0], sizes = [2, 32], strides = [1, 1]} : vector<2x128xf32> to vector<2x32xf32>
    %394 = arith.negf %393 : vector<2x32xf32>
    %395 = math.exp %394 : vector<2x32xf32>
    %cst_83 = arith.constant 1.000000e+00 : f32
    %396 = vector.broadcast %cst_83 : f32 to vector<2x32xf32>
    %397 = arith.addf %396, %395 : vector<2x32xf32>
    %398 = arith.divf %396, %397 : vector<2x32xf32>
    %399 = vector.extract_strided_slice %367 {offsets = [0, 32], sizes = [2, 32], strides = [1, 1]} : vector<2x128xf32> to vector<2x32xf32>
    %400 = arith.negf %399 : vector<2x32xf32>
    %401 = math.exp %400 : vector<2x32xf32>
    %cst_84 = arith.constant 1.000000e+00 : f32
    %402 = vector.broadcast %cst_84 : f32 to vector<2x32xf32>
    %403 = arith.addf %402, %401 : vector<2x32xf32>
    %404 = arith.divf %402, %403 : vector<2x32xf32>
    %405 = vector.extract_strided_slice %367 {offsets = [0, 64], sizes = [2, 32], strides = [1, 1]} : vector<2x128xf32> to vector<2x32xf32>
    %406 = math.tanh %405 : vector<2x32xf32>
    %407 = vector.extract_strided_slice %367 {offsets = [0, 96], sizes = [2, 32], strides = [1, 1]} : vector<2x128xf32> to vector<2x32xf32>
    %408 = arith.negf %407 : vector<2x32xf32>
    %409 = math.exp %408 : vector<2x32xf32>
    %cst_85 = arith.constant 1.000000e+00 : f32
    %410 = vector.broadcast %cst_85 : f32 to vector<2x32xf32>
    %411 = arith.addf %410, %409 : vector<2x32xf32>
    %412 = arith.divf %410, %411 : vector<2x32xf32>
    %413 = arith.mulf %404, %357 : vector<2x32xf32>
    %414 = arith.mulf %398, %406 : vector<2x32xf32>
    %415 = arith.addf %413, %414 : vector<2x32xf32>
    %416 = math.tanh %415 : vector<2x32xf32>
    %417 = arith.mulf %412, %416 : vector<2x32xf32>
    %c12_86 = arith.constant 12 : index
    %c0_87 = arith.constant 0 : index
    %418 = vector.load %arg13[%c12_86, %c0_87] : memref<16x64xf32, #tpu.memory_space<vmem>>, vector<2x32xf32>
    tpu.vector_store %arg13[%c12_86, %c0_87], %392 {strides = array<i32>} : memref<16x64xf32, #tpu.memory_space<vmem>>, vector<2x32xf32>,
    %c2_88 = arith.constant 2 : index
    %c32_89 = arith.constant 32 : index
    %419 = vector.load %arg13[%c2_88, %c32_89] : memref<16x64xf32, #tpu.memory_space<vmem>>, vector<2x32xf32>
    tpu.vector_store %arg13[%c2_88, %c32_89], %417 {strides = array<i32>} : memref<16x64xf32, #tpu.memory_space<vmem>>, vector<2x32xf32>,
    %420 = vector.extract_strided_slice %5 {offsets = [14, 0], sizes = [2, 128], strides = [1, 1]} : vector<16x256xf32> to vector<2x128xf32>
    %cst_90 = arith.constant dense<0.000000e+00> : vector<2x128xf32>
    %421 = tpu.matmul %392, %7, %cst_90 {dimension_numbers = #tpu.dot_dimension_numbers<[1], [0], [0], [1], [0, 0, 1, 1], [], []>} : vector<2x32xf32>, vector<32x128xf32>, vector<2x128xf32> -> vector<2x128xf32>
    %422 = arith.addf %420, %421 : vector<2x128xf32>
    %423 = vector.extract_strided_slice %5 {offsets = [0, 128], sizes = [2, 128], strides = [1, 1]} : vector<16x256xf32> to vector<2x128xf32>
    %cst_91 = arith.constant dense<0.000000e+00> : vector<2x128xf32>
    %424 = tpu.matmul %417, %9, %cst_91 {dimension_numbers = #tpu.dot_dimension_numbers<[1], [0], [0], [1], [0, 0, 1, 1], [], []>} : vector<2x32xf32>, vector<32x128xf32>, vector<2x128xf32> -> vector<2x128xf32>
    %425 = arith.addf %423, %424 : vector<2x128xf32>
    %426 = vector.extract_strided_slice %422 {offsets = [0, 0], sizes = [2, 32], strides = [1, 1]} : vector<2x128xf32> to vector<2x32xf32>
    %427 = arith.negf %426 : vector<2x32xf32>
    %428 = math.exp %427 : vector<2x32xf32>
    %cst_92 = arith.constant 1.000000e+00 : f32
    %429 = vector.broadcast %cst_92 : f32 to vector<2x32xf32>
    %430 = arith.addf %429, %428 : vector<2x32xf32>
    %431 = arith.divf %429, %430 : vector<2x32xf32>
    %432 = vector.extract_strided_slice %422 {offsets = [0, 32], sizes = [2, 32], strides = [1, 1]} : vector<2x128xf32> to vector<2x32xf32>
    %433 = arith.negf %432 : vector<2x32xf32>
    %434 = math.exp %433 : vector<2x32xf32>
    %cst_93 = arith.constant 1.000000e+00 : f32
    %435 = vector.broadcast %cst_93 : f32 to vector<2x32xf32>
    %436 = arith.addf %435, %434 : vector<2x32xf32>
    %437 = arith.divf %435, %436 : vector<2x32xf32>
    %438 = vector.extract_strided_slice %422 {offsets = [0, 64], sizes = [2, 32], strides = [1, 1]} : vector<2x128xf32> to vector<2x32xf32>
    %439 = math.tanh %438 : vector<2x32xf32>
    %440 = vector.extract_strided_slice %422 {offsets = [0, 96], sizes = [2, 32], strides = [1, 1]} : vector<2x128xf32> to vector<2x32xf32>
    %441 = arith.negf %440 : vector<2x32xf32>
    %442 = math.exp %441 : vector<2x32xf32>
    %cst_94 = arith.constant 1.000000e+00 : f32
    %443 = vector.broadcast %cst_94 : f32 to vector<2x32xf32>
    %444 = arith.addf %443, %442 : vector<2x32xf32>
    %445 = arith.divf %443, %444 : vector<2x32xf32>
    %446 = arith.mulf %437, %390 : vector<2x32xf32>
    %447 = arith.mulf %431, %439 : vector<2x32xf32>
    %448 = arith.addf %446, %447 : vector<2x32xf32>
    %449 = math.tanh %448 : vector<2x32xf32>
    %450 = arith.mulf %445, %449 : vector<2x32xf32>
    %451 = vector.extract_strided_slice %425 {offsets = [0, 0], sizes = [2, 32], strides = [1, 1]} : vector<2x128xf32> to vector<2x32xf32>
    %452 = arith.negf %451 : vector<2x32xf32>
    %453 = math.exp %452 : vector<2x32xf32>
    %cst_95 = arith.constant 1.000000e+00 : f32
    %454 = vector.broadcast %cst_95 : f32 to vector<2x32xf32>
    %455 = arith.addf %454, %453 : vector<2x32xf32>
    %456 = arith.divf %454, %455 : vector<2x32xf32>
    %457 = vector.extract_strided_slice %425 {offsets = [0, 32], sizes = [2, 32], strides = [1, 1]} : vector<2x128xf32> to vector<2x32xf32>
    %458 = arith.negf %457 : vector<2x32xf32>
    %459 = math.exp %458 : vector<2x32xf32>
    %cst_96 = arith.constant 1.000000e+00 : f32
    %460 = vector.broadcast %cst_96 : f32 to vector<2x32xf32>
    %461 = arith.addf %460, %459 : vector<2x32xf32>
    %462 = arith.divf %460, %461 : vector<2x32xf32>
    %463 = vector.extract_strided_slice %425 {offsets = [0, 64], sizes = [2, 32], strides = [1, 1]} : vector<2x128xf32> to vector<2x32xf32>
    %464 = math.tanh %463 : vector<2x32xf32>
    %465 = vector.extract_strided_slice %425 {offsets = [0, 96], sizes = [2, 32], strides = [1, 1]} : vector<2x128xf32> to vector<2x32xf32>
    %466 = arith.negf %465 : vector<2x32xf32>
    %467 = math.exp %466 : vector<2x32xf32>
    %cst_97 = arith.constant 1.000000e+00 : f32
    %468 = vector.broadcast %cst_97 : f32 to vector<2x32xf32>
    %469 = arith.addf %468, %467 : vector<2x32xf32>
    %470 = arith.divf %468, %469 : vector<2x32xf32>
    %471 = arith.mulf %462, %415 : vector<2x32xf32>
    %472 = arith.mulf %456, %464 : vector<2x32xf32>
    %473 = arith.addf %471, %472 : vector<2x32xf32>
    %474 = math.tanh %473 : vector<2x32xf32>
    %475 = arith.mulf %470, %474 : vector<2x32xf32>
    %c14_98 = arith.constant 14 : index
    %c0_99 = arith.constant 0 : index
    %476 = vector.load %arg13[%c14_98, %c0_99] : memref<16x64xf32, #tpu.memory_space<vmem>>, vector<2x32xf32>
    tpu.vector_store %arg13[%c14_98, %c0_99], %450 {strides = array<i32>} : memref<16x64xf32, #tpu.memory_space<vmem>>, vector<2x32xf32>,
    %c0_100 = arith.constant 0 : index
    %c32_101 = arith.constant 32 : index
    %477 = vector.load %arg13[%c0_100, %c32_101] : memref<16x64xf32, #tpu.memory_space<vmem>>, vector<2x32xf32>
    tpu.vector_store %arg13[%c0_100, %c32_101], %475 {strides = array<i32>} : memref<16x64xf32, #tpu.memory_space<vmem>>, vector<2x32xf32>,
    %c0_102 = arith.constant 0 : index
    %c0_103 = arith.constant 0 : index
    %478 = vector.load %arg13[%c0_102, %c0_103] : memref<16x64xf32, #tpu.memory_space<vmem>>, vector<16x64xf32>
    %c0_104 = arith.constant 0 : index
    %c0_105 = arith.constant 0 : index
    %479 = vector.load %arg4[%c0_104, %c0_105] : memref<64x256xf32, #tpu.memory_space<vmem>>, vector<64x256xf32>
    %cst_106 = arith.constant dense<0.000000e+00> : vector<16x256xf32>
    %480 = tpu.matmul %478, %479, %cst_106 {dimension_numbers = #tpu.dot_dimension_numbers<[1], [0], [0], [1], [0, 0, 1, 1], [], []>} : vector<16x64xf32>, vector<64x256xf32>, vector<16x256xf32> -> vector<16x256xf32>
    %c0_107 = arith.constant 0 : index
    %c0_108 = arith.constant 0 : index
    %481 = vector.load %arg5[%c0_107, %c0_108] : memref<1x256xf32, #tpu.memory_space<vmem>>, vector<1x256xf32>
    %482 = vector.broadcast %481 : vector<1x256xf32> to vector<16x256xf32>
    %483 = arith.addf %480, %482 : vector<16x256xf32>
    %c0_109 = arith.constant 0 : index
    %c0_110 = arith.constant 0 : index
    %c0_111 = arith.constant 0 : index
    %484 = vector.load %arg6[%c0_109, %c0_110, %c0_111] : memref<2x32x128xf32, #tpu.memory_space<vmem>>, vector<1x32x128xf32>
    %485 = vector.shape_cast %484 : vector<1x32x128xf32> to vector<32x128xf32>
    %c1_112 = arith.constant 1 : index
    %c0_113 = arith.constant 0 : index
    %c0_114 = arith.constant 0 : index
    %486 = vector.load %arg6[%c1_112, %c0_113, %c0_114] : memref<2x32x128xf32, #tpu.memory_space<vmem>>, vector<1x32x128xf32>
    %487 = vector.shape_cast %486 : vector<1x32x128xf32> to vector<32x128xf32>
    %cst_115 = arith.constant 0.000000e+00 : f32
    %488 = vector.broadcast %cst_115 : f32 to vector<2x32xf32>
    %cst_116 = arith.constant 0.000000e+00 : f32
    %489 = vector.broadcast %cst_116 : f32 to vector<2x32xf32>
    %cst_117 = arith.constant 0.000000e+00 : f32
    %490 = vector.broadcast %cst_117 : f32 to vector<2x32xf32>
    %cst_118 = arith.constant 0.000000e+00 : f32
    %491 = vector.broadcast %cst_118 : f32 to vector<2x32xf32>
    %492 = vector.extract_strided_slice %483 {offsets = [0, 0], sizes = [2, 128], strides = [1, 1]} : vector<16x256xf32> to vector<2x128xf32>
    %cst_119 = arith.constant dense<0.000000e+00> : vector<2x128xf32>
    %493 = tpu.matmul %488, %485, %cst_119 {dimension_numbers = #tpu.dot_dimension_numbers<[1], [0], [0], [1], [0, 0, 1, 1], [], []>} : vector<2x32xf32>, vector<32x128xf32>, vector<2x128xf32> -> vector<2x128xf32>
    %494 = arith.addf %492, %493 : vector<2x128xf32>
    %495 = vector.extract_strided_slice %483 {offsets = [14, 128], sizes = [2, 128], strides = [1, 1]} : vector<16x256xf32> to vector<2x128xf32>
    %cst_120 = arith.constant dense<0.000000e+00> : vector<2x128xf32>
    %496 = tpu.matmul %490, %487, %cst_120 {dimension_numbers = #tpu.dot_dimension_numbers<[1], [0], [0], [1], [0, 0, 1, 1], [], []>} : vector<2x32xf32>, vector<32x128xf32>, vector<2x128xf32> -> vector<2x128xf32>
    %497 = arith.addf %495, %496 : vector<2x128xf32>
    %498 = vector.extract_strided_slice %494 {offsets = [0, 0], sizes = [2, 32], strides = [1, 1]} : vector<2x128xf32> to vector<2x32xf32>
    %499 = arith.negf %498 : vector<2x32xf32>
    %500 = math.exp %499 : vector<2x32xf32>
    %cst_121 = arith.constant 1.000000e+00 : f32
    %501 = vector.broadcast %cst_121 : f32 to vector<2x32xf32>
    %502 = arith.addf %501, %500 : vector<2x32xf32>
    %503 = arith.divf %501, %502 : vector<2x32xf32>
    %504 = vector.extract_strided_slice %494 {offsets = [0, 32], sizes = [2, 32], strides = [1, 1]} : vector<2x128xf32> to vector<2x32xf32>
    %505 = arith.negf %504 : vector<2x32xf32>
    %506 = math.exp %505 : vector<2x32xf32>
    %cst_122 = arith.constant 1.000000e+00 : f32
    %507 = vector.broadcast %cst_122 : f32 to vector<2x32xf32>
    %508 = arith.addf %507, %506 : vector<2x32xf32>
    %509 = arith.divf %507, %508 : vector<2x32xf32>
    %510 = vector.extract_strided_slice %494 {offsets = [0, 64], sizes = [2, 32], strides = [1, 1]} : vector<2x128xf32> to vector<2x32xf32>
    %511 = math.tanh %510 : vector<2x32xf32>
    %512 = vector.extract_strided_slice %494 {offsets = [0, 96], sizes = [2, 32], strides = [1, 1]} : vector<2x128xf32> to vector<2x32xf32>
    %513 = arith.negf %512 : vector<2x32xf32>
    %514 = math.exp %513 : vector<2x32xf32>
    %cst_123 = arith.constant 1.000000e+00 : f32
    %515 = vector.broadcast %cst_123 : f32 to vector<2x32xf32>
    %516 = arith.addf %515, %514 : vector<2x32xf32>
    %517 = arith.divf %515, %516 : vector<2x32xf32>
    %518 = arith.mulf %509, %489 : vector<2x32xf32>
    %519 = arith.mulf %503, %511 : vector<2x32xf32>
    %520 = arith.addf %518, %519 : vector<2x32xf32>
    %521 = math.tanh %520 : vector<2x32xf32>
    %522 = arith.mulf %517, %521 : vector<2x32xf32>
    %523 = vector.extract_strided_slice %497 {offsets = [0, 0], sizes = [2, 32], strides = [1, 1]} : vector<2x128xf32> to vector<2x32xf32>
    %524 = arith.negf %523 : vector<2x32xf32>
    %525 = math.exp %524 : vector<2x32xf32>
    %cst_124 = arith.constant 1.000000e+00 : f32
    %526 = vector.broadcast %cst_124 : f32 to vector<2x32xf32>
    %527 = arith.addf %526, %525 : vector<2x32xf32>
    %528 = arith.divf %526, %527 : vector<2x32xf32>
    %529 = vector.extract_strided_slice %497 {offsets = [0, 32], sizes = [2, 32], strides = [1, 1]} : vector<2x128xf32> to vector<2x32xf32>
    %530 = arith.negf %529 : vector<2x32xf32>
    %531 = math.exp %530 : vector<2x32xf32>
    %cst_125 = arith.constant 1.000000e+00 : f32
    %532 = vector.broadcast %cst_125 : f32 to vector<2x32xf32>
    %533 = arith.addf %532, %531 : vector<2x32xf32>
    %534 = arith.divf %532, %533 : vector<2x32xf32>
    %535 = vector.extract_strided_slice %497 {offsets = [0, 64], sizes = [2, 32], strides = [1, 1]} : vector<2x128xf32> to vector<2x32xf32>
    %536 = math.tanh %535 : vector<2x32xf32>
    %537 = vector.extract_strided_slice %497 {offsets = [0, 96], sizes = [2, 32], strides = [1, 1]} : vector<2x128xf32> to vector<2x32xf32>
    %538 = arith.negf %537 : vector<2x32xf32>
    %539 = math.exp %538 : vector<2x32xf32>
    %cst_126 = arith.constant 1.000000e+00 : f32
    %540 = vector.broadcast %cst_126 : f32 to vector<2x32xf32>
    %541 = arith.addf %540, %539 : vector<2x32xf32>
    %542 = arith.divf %540, %541 : vector<2x32xf32>
    %543 = arith.mulf %534, %491 : vector<2x32xf32>
    %544 = arith.mulf %528, %536 : vector<2x32xf32>
    %545 = arith.addf %543, %544 : vector<2x32xf32>
    %546 = math.tanh %545 : vector<2x32xf32>
    %547 = arith.mulf %542, %546 : vector<2x32xf32>
    %c0_127 = arith.constant 0 : index
    %c0_128 = arith.constant 0 : index
    %548 = vector.load %arg13[%c0_127, %c0_128] : memref<16x64xf32, #tpu.memory_space<vmem>>, vector<2x32xf32>
    tpu.vector_store %arg13[%c0_127, %c0_128], %522 {strides = array<i32>} : memref<16x64xf32, #tpu.memory_space<vmem>>, vector<2x32xf32>,
    %c14_129 = arith.constant 14 : index
    %c32_130 = arith.constant 32 : index
    %549 = vector.load %arg13[%c14_129, %c32_130] : memref<16x64xf32, #tpu.memory_space<vmem>>, vector<2x32xf32>
    tpu.vector_store %arg13[%c14_129, %c32_130], %547 {strides = array<i32>} : memref<16x64xf32, #tpu.memory_space<vmem>>, vector<2x32xf32>,
    %550 = vector.extract_strided_slice %483 {offsets = [2, 0], sizes = [2, 128], strides = [1, 1]} : vector<16x256xf32> to vector<2x128xf32>
    %cst_131 = arith.constant dense<0.000000e+00> : vector<2x128xf32>
    %551 = tpu.matmul %522, %485, %cst_131 {dimension_numbers = #tpu.dot_dimension_numbers<[1], [0], [0], [1], [0, 0, 1, 1], [], []>} : vector<2x32xf32>, vector<32x128xf32>, vector<2x128xf32> -> vector<2x128xf32>
    %552 = arith.addf %550, %551 : vector<2x128xf32>
    %553 = vector.extract_strided_slice %483 {offsets = [12, 128], sizes = [2, 128], strides = [1, 1]} : vector<16x256xf32> to vector<2x128xf32>
    %cst_132 = arith.constant dense<0.000000e+00> : vector<2x128xf32>
    %554 = tpu.matmul %547, %487, %cst_132 {dimension_numbers = #tpu.dot_dimension_numbers<[1], [0], [0], [1], [0, 0, 1, 1], [], []>} : vector<2x32xf32>, vector<32x128xf32>, vector<2x128xf32> -> vector<2x128xf32>
    %555 = arith.addf %553, %554 : vector<2x128xf32>
    %556 = vector.extract_strided_slice %552 {offsets = [0, 0], sizes = [2, 32], strides = [1, 1]} : vector<2x128xf32> to vector<2x32xf32>
    %557 = arith.negf %556 : vector<2x32xf32>
    %558 = math.exp %557 : vector<2x32xf32>
    %cst_133 = arith.constant 1.000000e+00 : f32
    %559 = vector.broadcast %cst_133 : f32 to vector<2x32xf32>
    %560 = arith.addf %559, %558 : vector<2x32xf32>
    %561 = arith.divf %559, %560 : vector<2x32xf32>
    %562 = vector.extract_strided_slice %552 {offsets = [0, 32], sizes = [2, 32], strides = [1, 1]} : vector<2x128xf32> to vector<2x32xf32>
    %563 = arith.negf %562 : vector<2x32xf32>
    %564 = math.exp %563 : vector<2x32xf32>
    %cst_134 = arith.constant 1.000000e+00 : f32
    %565 = vector.broadcast %cst_134 : f32 to vector<2x32xf32>
    %566 = arith.addf %565, %564 : vector<2x32xf32>
    %567 = arith.divf %565, %566 : vector<2x32xf32>
    %568 = vector.extract_strided_slice %552 {offsets = [0, 64], sizes = [2, 32], strides = [1, 1]} : vector<2x128xf32> to vector<2x32xf32>
    %569 = math.tanh %568 : vector<2x32xf32>
    %570 = vector.extract_strided_slice %552 {offsets = [0, 96], sizes = [2, 32], strides = [1, 1]} : vector<2x128xf32> to vector<2x32xf32>
    %571 = arith.negf %570 : vector<2x32xf32>
    %572 = math.exp %571 : vector<2x32xf32>
    %cst_135 = arith.constant 1.000000e+00 : f32
    %573 = vector.broadcast %cst_135 : f32 to vector<2x32xf32>
    %574 = arith.addf %573, %572 : vector<2x32xf32>
    %575 = arith.divf %573, %574 : vector<2x32xf32>
    %576 = arith.mulf %567, %520 : vector<2x32xf32>
    %577 = arith.mulf %561, %569 : vector<2x32xf32>
    %578 = arith.addf %576, %577 : vector<2x32xf32>
    %579 = math.tanh %578 : vector<2x32xf32>
    %580 = arith.mulf %575, %579 : vector<2x32xf32>
    %581 = vector.extract_strided_slice %555 {offsets = [0, 0], sizes = [2, 32], strides = [1, 1]} : vector<2x128xf32> to vector<2x32xf32>
    %582 = arith.negf %581 : vector<2x32xf32>
    %583 = math.exp %582 : vector<2x32xf32>
    %cst_136 = arith.constant 1.000000e+00 : f32
    %584 = vector.broadcast %cst_136 : f32 to vector<2x32xf32>
    %585 = arith.addf %584, %583 : vector<2x32xf32>
    %586 = arith.divf %584, %585 : vector<2x32xf32>
    %587 = vector.extract_strided_slice %555 {offsets = [0, 32], sizes = [2, 32], strides = [1, 1]} : vector<2x128xf32> to vector<2x32xf32>
    %588 = arith.negf %587 : vector<2x32xf32>
    %589 = math.exp %588 : vector<2x32xf32>
    %cst_137 = arith.constant 1.000000e+00 : f32
    %590 = vector.broadcast %cst_137 : f32 to vector<2x32xf32>
    %591 = arith.addf %590, %589 : vector<2x32xf32>
    %592 = arith.divf %590, %591 : vector<2x32xf32>
    %593 = vector.extract_strided_slice %555 {offsets = [0, 64], sizes = [2, 32], strides = [1, 1]} : vector<2x128xf32> to vector<2x32xf32>
    %594 = math.tanh %593 : vector<2x32xf32>
    %595 = vector.extract_strided_slice %555 {offsets = [0, 96], sizes = [2, 32], strides = [1, 1]} : vector<2x128xf32> to vector<2x32xf32>
    %596 = arith.negf %595 : vector<2x32xf32>
    %597 = math.exp %596 : vector<2x32xf32>
    %cst_138 = arith.constant 1.000000e+00 : f32
    %598 = vector.broadcast %cst_138 : f32 to vector<2x32xf32>
    %599 = arith.addf %598, %597 : vector<2x32xf32>
    %600 = arith.divf %598, %599 : vector<2x32xf32>
    %601 = arith.mulf %592, %545 : vector<2x32xf32>
    %602 = arith.mulf %586, %594 : vector<2x32xf32>
    %603 = arith.addf %601, %602 : vector<2x32xf32>
    %604 = math.tanh %603 : vector<2x32xf32>
    %605 = arith.mulf %600, %604 : vector<2x32xf32>
    %c2_139 = arith.constant 2 : index
    %c0_140 = arith.constant 0 : index
    %606 = vector.load %arg13[%c2_139, %c0_140] : memref<16x64xf32, #tpu.memory_space<vmem>>, vector<2x32xf32>
    tpu.vector_store %arg13[%c2_139, %c0_140], %580 {strides = array<i32>} : memref<16x64xf32, #tpu.memory_space<vmem>>, vector<2x32xf32>,
    %c12_141 = arith.constant 12 : index
    %c32_142 = arith.constant 32 : index
    %607 = vector.load %arg13[%c12_141, %c32_142] : memref<16x64xf32, #tpu.memory_space<vmem>>, vector<2x32xf32>
    tpu.vector_store %arg13[%c12_141, %c32_142], %605 {strides = array<i32>} : memref<16x64xf32, #tpu.memory_space<vmem>>, vector<2x32xf32>,
    %608 = vector.extract_strided_slice %483 {offsets = [4, 0], sizes = [2, 128], strides = [1, 1]} : vector<16x256xf32> to vector<2x128xf32>
    %cst_143 = arith.constant dense<0.000000e+00> : vector<2x128xf32>
    %609 = tpu.matmul %580, %485, %cst_143 {dimension_numbers = #tpu.dot_dimension_numbers<[1], [0], [0], [1], [0, 0, 1, 1], [], []>} : vector<2x32xf32>, vector<32x128xf32>, vector<2x128xf32> -> vector<2x128xf32>
    %610 = arith.addf %608, %609 : vector<2x128xf32>
    %611 = vector.extract_strided_slice %483 {offsets = [10, 128], sizes = [2, 128], strides = [1, 1]} : vector<16x256xf32> to vector<2x128xf32>
    %cst_144 = arith.constant dense<0.000000e+00> : vector<2x128xf32>
    %612 = tpu.matmul %605, %487, %cst_144 {dimension_numbers = #tpu.dot_dimension_numbers<[1], [0], [0], [1], [0, 0, 1, 1], [], []>} : vector<2x32xf32>, vector<32x128xf32>, vector<2x128xf32> -> vector<2x128xf32>
    %613 = arith.addf %611, %612 : vector<2x128xf32>
    %614 = vector.extract_strided_slice %610 {offsets = [0, 0], sizes = [2, 32], strides = [1, 1]} : vector<2x128xf32> to vector<2x32xf32>
    %615 = arith.negf %614 : vector<2x32xf32>
    %616 = math.exp %615 : vector<2x32xf32>
    %cst_145 = arith.constant 1.000000e+00 : f32
    %617 = vector.broadcast %cst_145 : f32 to vector<2x32xf32>
    %618 = arith.addf %617, %616 : vector<2x32xf32>
    %619 = arith.divf %617, %618 : vector<2x32xf32>
    %620 = vector.extract_strided_slice %610 {offsets = [0, 32], sizes = [2, 32], strides = [1, 1]} : vector<2x128xf32> to vector<2x32xf32>
    %621 = arith.negf %620 : vector<2x32xf32>
    %622 = math.exp %621 : vector<2x32xf32>
    %cst_146 = arith.constant 1.000000e+00 : f32
    %623 = vector.broadcast %cst_146 : f32 to vector<2x32xf32>
    %624 = arith.addf %623, %622 : vector<2x32xf32>
    %625 = arith.divf %623, %624 : vector<2x32xf32>
    %626 = vector.extract_strided_slice %610 {offsets = [0, 64], sizes = [2, 32], strides = [1, 1]} : vector<2x128xf32> to vector<2x32xf32>
    %627 = math.tanh %626 : vector<2x32xf32>
    %628 = vector.extract_strided_slice %610 {offsets = [0, 96], sizes = [2, 32], strides = [1, 1]} : vector<2x128xf32> to vector<2x32xf32>
    %629 = arith.negf %628 : vector<2x32xf32>
    %630 = math.exp %629 : vector<2x32xf32>
    %cst_147 = arith.constant 1.000000e+00 : f32
    %631 = vector.broadcast %cst_147 : f32 to vector<2x32xf32>
    %632 = arith.addf %631, %630 : vector<2x32xf32>
    %633 = arith.divf %631, %632 : vector<2x32xf32>
    %634 = arith.mulf %625, %578 : vector<2x32xf32>
    %635 = arith.mulf %619, %627 : vector<2x32xf32>
    %636 = arith.addf %634, %635 : vector<2x32xf32>
    %637 = math.tanh %636 : vector<2x32xf32>
    %638 = arith.mulf %633, %637 : vector<2x32xf32>
    %639 = vector.extract_strided_slice %613 {offsets = [0, 0], sizes = [2, 32], strides = [1, 1]} : vector<2x128xf32> to vector<2x32xf32>
    %640 = arith.negf %639 : vector<2x32xf32>
    %641 = math.exp %640 : vector<2x32xf32>
    %cst_148 = arith.constant 1.000000e+00 : f32
    %642 = vector.broadcast %cst_148 : f32 to vector<2x32xf32>
    %643 = arith.addf %642, %641 : vector<2x32xf32>
    %644 = arith.divf %642, %643 : vector<2x32xf32>
    %645 = vector.extract_strided_slice %613 {offsets = [0, 32], sizes = [2, 32], strides = [1, 1]} : vector<2x128xf32> to vector<2x32xf32>
    %646 = arith.negf %645 : vector<2x32xf32>
    %647 = math.exp %646 : vector<2x32xf32>
    %cst_149 = arith.constant 1.000000e+00 : f32
    %648 = vector.broadcast %cst_149 : f32 to vector<2x32xf32>
    %649 = arith.addf %648, %647 : vector<2x32xf32>
    %650 = arith.divf %648, %649 : vector<2x32xf32>
    %651 = vector.extract_strided_slice %613 {offsets = [0, 64], sizes = [2, 32], strides = [1, 1]} : vector<2x128xf32> to vector<2x32xf32>
    %652 = math.tanh %651 : vector<2x32xf32>
    %653 = vector.extract_strided_slice %613 {offsets = [0, 96], sizes = [2, 32], strides = [1, 1]} : vector<2x128xf32> to vector<2x32xf32>
    %654 = arith.negf %653 : vector<2x32xf32>
    %655 = math.exp %654 : vector<2x32xf32>
    %cst_150 = arith.constant 1.000000e+00 : f32
    %656 = vector.broadcast %cst_150 : f32 to vector<2x32xf32>
    %657 = arith.addf %656, %655 : vector<2x32xf32>
    %658 = arith.divf %656, %657 : vector<2x32xf32>
    %659 = arith.mulf %650, %603 : vector<2x32xf32>
    %660 = arith.mulf %644, %652 : vector<2x32xf32>
    %661 = arith.addf %659, %660 : vector<2x32xf32>
    %662 = math.tanh %661 : vector<2x32xf32>
    %663 = arith.mulf %658, %662 : vector<2x32xf32>
    %c4_151 = arith.constant 4 : index
    %c0_152 = arith.constant 0 : index
    %664 = vector.load %arg13[%c4_151, %c0_152] : memref<16x64xf32, #tpu.memory_space<vmem>>, vector<2x32xf32>
    tpu.vector_store %arg13[%c4_151, %c0_152], %638 {strides = array<i32>} : memref<16x64xf32, #tpu.memory_space<vmem>>, vector<2x32xf32>,
    %c10_153 = arith.constant 10 : index
    %c32_154 = arith.constant 32 : index
    %665 = vector.load %arg13[%c10_153, %c32_154] : memref<16x64xf32, #tpu.memory_space<vmem>>, vector<2x32xf32>
    tpu.vector_store %arg13[%c10_153, %c32_154], %663 {strides = array<i32>} : memref<16x64xf32, #tpu.memory_space<vmem>>, vector<2x32xf32>,
    %666 = vector.extract_strided_slice %483 {offsets = [6, 0], sizes = [2, 128], strides = [1, 1]} : vector<16x256xf32> to vector<2x128xf32>
    %cst_155 = arith.constant dense<0.000000e+00> : vector<2x128xf32>
    %667 = tpu.matmul %638, %485, %cst_155 {dimension_numbers = #tpu.dot_dimension_numbers<[1], [0], [0], [1], [0, 0, 1, 1], [], []>} : vector<2x32xf32>, vector<32x128xf32>, vector<2x128xf32> -> vector<2x128xf32>
    %668 = arith.addf %666, %667 : vector<2x128xf32>
    %669 = vector.extract_strided_slice %483 {offsets = [8, 128], sizes = [2, 128], strides = [1, 1]} : vector<16x256xf32> to vector<2x128xf32>
    %cst_156 = arith.constant dense<0.000000e+00> : vector<2x128xf32>
    %670 = tpu.matmul %663, %487, %cst_156 {dimension_numbers = #tpu.dot_dimension_numbers<[1], [0], [0], [1], [0, 0, 1, 1], [], []>} : vector<2x32xf32>, vector<32x128xf32>, vector<2x128xf32> -> vector<2x128xf32>
    %671 = arith.addf %669, %670 : vector<2x128xf32>
    %672 = vector.extract_strided_slice %668 {offsets = [0, 0], sizes = [2, 32], strides = [1, 1]} : vector<2x128xf32> to vector<2x32xf32>
    %673 = arith.negf %672 : vector<2x32xf32>
    %674 = math.exp %673 : vector<2x32xf32>
    %cst_157 = arith.constant 1.000000e+00 : f32
    %675 = vector.broadcast %cst_157 : f32 to vector<2x32xf32>
    %676 = arith.addf %675, %674 : vector<2x32xf32>
    %677 = arith.divf %675, %676 : vector<2x32xf32>
    %678 = vector.extract_strided_slice %668 {offsets = [0, 32], sizes = [2, 32], strides = [1, 1]} : vector<2x128xf32> to vector<2x32xf32>
    %679 = arith.negf %678 : vector<2x32xf32>
    %680 = math.exp %679 : vector<2x32xf32>
    %cst_158 = arith.constant 1.000000e+00 : f32
    %681 = vector.broadcast %cst_158 : f32 to vector<2x32xf32>
    %682 = arith.addf %681, %680 : vector<2x32xf32>
    %683 = arith.divf %681, %682 : vector<2x32xf32>
    %684 = vector.extract_strided_slice %668 {offsets = [0, 64], sizes = [2, 32], strides = [1, 1]} : vector<2x128xf32> to vector<2x32xf32>
    %685 = math.tanh %684 : vector<2x32xf32>
    %686 = vector.extract_strided_slice %668 {offsets = [0, 96], sizes = [2, 32], strides = [1, 1]} : vector<2x128xf32> to vector<2x32xf32>
    %687 = arith.negf %686 : vector<2x32xf32>
    %688 = math.exp %687 : vector<2x32xf32>
    %cst_159 = arith.constant 1.000000e+00 : f32
    %689 = vector.broadcast %cst_159 : f32 to vector<2x32xf32>
    %690 = arith.addf %689, %688 : vector<2x32xf32>
    %691 = arith.divf %689, %690 : vector<2x32xf32>
    %692 = arith.mulf %683, %636 : vector<2x32xf32>
    %693 = arith.mulf %677, %685 : vector<2x32xf32>
    %694 = arith.addf %692, %693 : vector<2x32xf32>
    %695 = math.tanh %694 : vector<2x32xf32>
    %696 = arith.mulf %691, %695 : vector<2x32xf32>
    %697 = vector.extract_strided_slice %671 {offsets = [0, 0], sizes = [2, 32], strides = [1, 1]} : vector<2x128xf32> to vector<2x32xf32>
    %698 = arith.negf %697 : vector<2x32xf32>
    %699 = math.exp %698 : vector<2x32xf32>
    %cst_160 = arith.constant 1.000000e+00 : f32
    %700 = vector.broadcast %cst_160 : f32 to vector<2x32xf32>
    %701 = arith.addf %700, %699 : vector<2x32xf32>
    %702 = arith.divf %700, %701 : vector<2x32xf32>
    %703 = vector.extract_strided_slice %671 {offsets = [0, 32], sizes = [2, 32], strides = [1, 1]} : vector<2x128xf32> to vector<2x32xf32>
    %704 = arith.negf %703 : vector<2x32xf32>
    %705 = math.exp %704 : vector<2x32xf32>
    %cst_161 = arith.constant 1.000000e+00 : f32
    %706 = vector.broadcast %cst_161 : f32 to vector<2x32xf32>
    %707 = arith.addf %706, %705 : vector<2x32xf32>
    %708 = arith.divf %706, %707 : vector<2x32xf32>
    %709 = vector.extract_strided_slice %671 {offsets = [0, 64], sizes = [2, 32], strides = [1, 1]} : vector<2x128xf32> to vector<2x32xf32>
    %710 = math.tanh %709 : vector<2x32xf32>
    %711 = vector.extract_strided_slice %671 {offsets = [0, 96], sizes = [2, 32], strides = [1, 1]} : vector<2x128xf32> to vector<2x32xf32>
    %712 = arith.negf %711 : vector<2x32xf32>
    %713 = math.exp %712 : vector<2x32xf32>
    %cst_162 = arith.constant 1.000000e+00 : f32
    %714 = vector.broadcast %cst_162 : f32 to vector<2x32xf32>
    %715 = arith.addf %714, %713 : vector<2x32xf32>
    %716 = arith.divf %714, %715 : vector<2x32xf32>
    %717 = arith.mulf %708, %661 : vector<2x32xf32>
    %718 = arith.mulf %702, %710 : vector<2x32xf32>
    %719 = arith.addf %717, %718 : vector<2x32xf32>
    %720 = math.tanh %719 : vector<2x32xf32>
    %721 = arith.mulf %716, %720 : vector<2x32xf32>
    %c6_163 = arith.constant 6 : index
    %c0_164 = arith.constant 0 : index
    %722 = vector.load %arg13[%c6_163, %c0_164] : memref<16x64xf32, #tpu.memory_space<vmem>>, vector<2x32xf32>
    tpu.vector_store %arg13[%c6_163, %c0_164], %696 {strides = array<i32>} : memref<16x64xf32, #tpu.memory_space<vmem>>, vector<2x32xf32>,
    %c8_165 = arith.constant 8 : index
    %c32_166 = arith.constant 32 : index
    %723 = vector.load %arg13[%c8_165, %c32_166] : memref<16x64xf32, #tpu.memory_space<vmem>>, vector<2x32xf32>
    tpu.vector_store %arg13[%c8_165, %c32_166], %721 {strides = array<i32>} : memref<16x64xf32, #tpu.memory_space<vmem>>, vector<2x32xf32>,
    %724 = vector.extract_strided_slice %483 {offsets = [8, 0], sizes = [2, 128], strides = [1, 1]} : vector<16x256xf32> to vector<2x128xf32>
    %cst_167 = arith.constant dense<0.000000e+00> : vector<2x128xf32>
    %725 = tpu.matmul %696, %485, %cst_167 {dimension_numbers = #tpu.dot_dimension_numbers<[1], [0], [0], [1], [0, 0, 1, 1], [], []>} : vector<2x32xf32>, vector<32x128xf32>, vector<2x128xf32> -> vector<2x128xf32>
    %726 = arith.addf %724, %725 : vector<2x128xf32>
    %727 = vector.extract_strided_slice %483 {offsets = [6, 128], sizes = [2, 128], strides = [1, 1]} : vector<16x256xf32> to vector<2x128xf32>
    %cst_168 = arith.constant dense<0.000000e+00> : vector<2x128xf32>
    %728 = tpu.matmul %721, %487, %cst_168 {dimension_numbers = #tpu.dot_dimension_numbers<[1], [0], [0], [1], [0, 0, 1, 1], [], []>} : vector<2x32xf32>, vector<32x128xf32>, vector<2x128xf32> -> vector<2x128xf32>
    %729 = arith.addf %727, %728 : vector<2x128xf32>
    %730 = vector.extract_strided_slice %726 {offsets = [0, 0], sizes = [2, 32], strides = [1, 1]} : vector<2x128xf32> to vector<2x32xf32>
    %731 = arith.negf %730 : vector<2x32xf32>
    %732 = math.exp %731 : vector<2x32xf32>
    %cst_169 = arith.constant 1.000000e+00 : f32
    %733 = vector.broadcast %cst_169 : f32 to vector<2x32xf32>
    %734 = arith.addf %733, %732 : vector<2x32xf32>
    %735 = arith.divf %733, %734 : vector<2x32xf32>
    %736 = vector.extract_strided_slice %726 {offsets = [0, 32], sizes = [2, 32], strides = [1, 1]} : vector<2x128xf32> to vector<2x32xf32>
    %737 = arith.negf %736 : vector<2x32xf32>
    %738 = math.exp %737 : vector<2x32xf32>
    %cst_170 = arith.constant 1.000000e+00 : f32
    %739 = vector.broadcast %cst_170 : f32 to vector<2x32xf32>
    %740 = arith.addf %739, %738 : vector<2x32xf32>
    %741 = arith.divf %739, %740 : vector<2x32xf32>
    %742 = vector.extract_strided_slice %726 {offsets = [0, 64], sizes = [2, 32], strides = [1, 1]} : vector<2x128xf32> to vector<2x32xf32>
    %743 = math.tanh %742 : vector<2x32xf32>
    %744 = vector.extract_strided_slice %726 {offsets = [0, 96], sizes = [2, 32], strides = [1, 1]} : vector<2x128xf32> to vector<2x32xf32>
    %745 = arith.negf %744 : vector<2x32xf32>
    %746 = math.exp %745 : vector<2x32xf32>
    %cst_171 = arith.constant 1.000000e+00 : f32
    %747 = vector.broadcast %cst_171 : f32 to vector<2x32xf32>
    %748 = arith.addf %747, %746 : vector<2x32xf32>
    %749 = arith.divf %747, %748 : vector<2x32xf32>
    %750 = arith.mulf %741, %694 : vector<2x32xf32>
    %751 = arith.mulf %735, %743 : vector<2x32xf32>
    %752 = arith.addf %750, %751 : vector<2x32xf32>
    %753 = math.tanh %752 : vector<2x32xf32>
    %754 = arith.mulf %749, %753 : vector<2x32xf32>
    %755 = vector.extract_strided_slice %729 {offsets = [0, 0], sizes = [2, 32], strides = [1, 1]} : vector<2x128xf32> to vector<2x32xf32>
    %756 = arith.negf %755 : vector<2x32xf32>
    %757 = math.exp %756 : vector<2x32xf32>
    %cst_172 = arith.constant 1.000000e+00 : f32
    %758 = vector.broadcast %cst_172 : f32 to vector<2x32xf32>
    %759 = arith.addf %758, %757 : vector<2x32xf32>
    %760 = arith.divf %758, %759 : vector<2x32xf32>
    %761 = vector.extract_strided_slice %729 {offsets = [0, 32], sizes = [2, 32], strides = [1, 1]} : vector<2x128xf32> to vector<2x32xf32>
    %762 = arith.negf %761 : vector<2x32xf32>
    %763 = math.exp %762 : vector<2x32xf32>
    %cst_173 = arith.constant 1.000000e+00 : f32
    %764 = vector.broadcast %cst_173 : f32 to vector<2x32xf32>
    %765 = arith.addf %764, %763 : vector<2x32xf32>
    %766 = arith.divf %764, %765 : vector<2x32xf32>
    %767 = vector.extract_strided_slice %729 {offsets = [0, 64], sizes = [2, 32], strides = [1, 1]} : vector<2x128xf32> to vector<2x32xf32>
    %768 = math.tanh %767 : vector<2x32xf32>
    %769 = vector.extract_strided_slice %729 {offsets = [0, 96], sizes = [2, 32], strides = [1, 1]} : vector<2x128xf32> to vector<2x32xf32>
    %770 = arith.negf %769 : vector<2x32xf32>
    %771 = math.exp %770 : vector<2x32xf32>
    %cst_174 = arith.constant 1.000000e+00 : f32
    %772 = vector.broadcast %cst_174 : f32 to vector<2x32xf32>
    %773 = arith.addf %772, %771 : vector<2x32xf32>
    %774 = arith.divf %772, %773 : vector<2x32xf32>
    %775 = arith.mulf %766, %719 : vector<2x32xf32>
    %776 = arith.mulf %760, %768 : vector<2x32xf32>
    %777 = arith.addf %775, %776 : vector<2x32xf32>
    %778 = math.tanh %777 : vector<2x32xf32>
    %779 = arith.mulf %774, %778 : vector<2x32xf32>
    %c8_175 = arith.constant 8 : index
    %c0_176 = arith.constant 0 : index
    %780 = vector.load %arg13[%c8_175, %c0_176] : memref<16x64xf32, #tpu.memory_space<vmem>>, vector<2x32xf32>
    tpu.vector_store %arg13[%c8_175, %c0_176], %754 {strides = array<i32>} : memref<16x64xf32, #tpu.memory_space<vmem>>, vector<2x32xf32>,
    %c6_177 = arith.constant 6 : index
    %c32_178 = arith.constant 32 : index
    %781 = vector.load %arg13[%c6_177, %c32_178] : memref<16x64xf32, #tpu.memory_space<vmem>>, vector<2x32xf32>
    tpu.vector_store %arg13[%c6_177, %c32_178], %779 {strides = array<i32>} : memref<16x64xf32, #tpu.memory_space<vmem>>, vector<2x32xf32>,
    %782 = vector.extract_strided_slice %483 {offsets = [10, 0], sizes = [2, 128], strides = [1, 1]} : vector<16x256xf32> to vector<2x128xf32>
    %cst_179 = arith.constant dense<0.000000e+00> : vector<2x128xf32>
    %783 = tpu.matmul %754, %485, %cst_179 {dimension_numbers = #tpu.dot_dimension_numbers<[1], [0], [0], [1], [0, 0, 1, 1], [], []>} : vector<2x32xf32>, vector<32x128xf32>, vector<2x128xf32> -> vector<2x128xf32>
    %784 = arith.addf %782, %783 : vector<2x128xf32>
    %785 = vector.extract_strided_slice %483 {offsets = [4, 128], sizes = [2, 128], strides = [1, 1]} : vector<16x256xf32> to vector<2x128xf32>
    %cst_180 = arith.constant dense<0.000000e+00> : vector<2x128xf32>
    %786 = tpu.matmul %779, %487, %cst_180 {dimension_numbers = #tpu.dot_dimension_numbers<[1], [0], [0], [1], [0, 0, 1, 1], [], []>} : vector<2x32xf32>, vector<32x128xf32>, vector<2x128xf32> -> vector<2x128xf32>
    %787 = arith.addf %785, %786 : vector<2x128xf32>
    %788 = vector.extract_strided_slice %784 {offsets = [0, 0], sizes = [2, 32], strides = [1, 1]} : vector<2x128xf32> to vector<2x32xf32>
    %789 = arith.negf %788 : vector<2x32xf32>
    %790 = math.exp %789 : vector<2x32xf32>
    %cst_181 = arith.constant 1.000000e+00 : f32
    %791 = vector.broadcast %cst_181 : f32 to vector<2x32xf32>
    %792 = arith.addf %791, %790 : vector<2x32xf32>
    %793 = arith.divf %791, %792 : vector<2x32xf32>
    %794 = vector.extract_strided_slice %784 {offsets = [0, 32], sizes = [2, 32], strides = [1, 1]} : vector<2x128xf32> to vector<2x32xf32>
    %795 = arith.negf %794 : vector<2x32xf32>
    %796 = math.exp %795 : vector<2x32xf32>
    %cst_182 = arith.constant 1.000000e+00 : f32
    %797 = vector.broadcast %cst_182 : f32 to vector<2x32xf32>
    %798 = arith.addf %797, %796 : vector<2x32xf32>
    %799 = arith.divf %797, %798 : vector<2x32xf32>
    %800 = vector.extract_strided_slice %784 {offsets = [0, 64], sizes = [2, 32], strides = [1, 1]} : vector<2x128xf32> to vector<2x32xf32>
    %801 = math.tanh %800 : vector<2x32xf32>
    %802 = vector.extract_strided_slice %784 {offsets = [0, 96], sizes = [2, 32], strides = [1, 1]} : vector<2x128xf32> to vector<2x32xf32>
    %803 = arith.negf %802 : vector<2x32xf32>
    %804 = math.exp %803 : vector<2x32xf32>
    %cst_183 = arith.constant 1.000000e+00 : f32
    %805 = vector.broadcast %cst_183 : f32 to vector<2x32xf32>
    %806 = arith.addf %805, %804 : vector<2x32xf32>
    %807 = arith.divf %805, %806 : vector<2x32xf32>
    %808 = arith.mulf %799, %752 : vector<2x32xf32>
    %809 = arith.mulf %793, %801 : vector<2x32xf32>
    %810 = arith.addf %808, %809 : vector<2x32xf32>
    %811 = math.tanh %810 : vector<2x32xf32>
    %812 = arith.mulf %807, %811 : vector<2x32xf32>
    %813 = vector.extract_strided_slice %787 {offsets = [0, 0], sizes = [2, 32], strides = [1, 1]} : vector<2x128xf32> to vector<2x32xf32>
    %814 = arith.negf %813 : vector<2x32xf32>
    %815 = math.exp %814 : vector<2x32xf32>
    %cst_184 = arith.constant 1.000000e+00 : f32
    %816 = vector.broadcast %cst_184 : f32 to vector<2x32xf32>
    %817 = arith.addf %816, %815 : vector<2x32xf32>
    %818 = arith.divf %816, %817 : vector<2x32xf32>
    %819 = vector.extract_strided_slice %787 {offsets = [0, 32], sizes = [2, 32], strides = [1, 1]} : vector<2x128xf32> to vector<2x32xf32>
    %820 = arith.negf %819 : vector<2x32xf32>
    %821 = math.exp %820 : vector<2x32xf32>
    %cst_185 = arith.constant 1.000000e+00 : f32
    %822 = vector.broadcast %cst_185 : f32 to vector<2x32xf32>
    %823 = arith.addf %822, %821 : vector<2x32xf32>
    %824 = arith.divf %822, %823 : vector<2x32xf32>
    %825 = vector.extract_strided_slice %787 {offsets = [0, 64], sizes = [2, 32], strides = [1, 1]} : vector<2x128xf32> to vector<2x32xf32>
    %826 = math.tanh %825 : vector<2x32xf32>
    %827 = vector.extract_strided_slice %787 {offsets = [0, 96], sizes = [2, 32], strides = [1, 1]} : vector<2x128xf32> to vector<2x32xf32>
    %828 = arith.negf %827 : vector<2x32xf32>
    %829 = math.exp %828 : vector<2x32xf32>
    %cst_186 = arith.constant 1.000000e+00 : f32
    %830 = vector.broadcast %cst_186 : f32 to vector<2x32xf32>
    %831 = arith.addf %830, %829 : vector<2x32xf32>
    %832 = arith.divf %830, %831 : vector<2x32xf32>
    %833 = arith.mulf %824, %777 : vector<2x32xf32>
    %834 = arith.mulf %818, %826 : vector<2x32xf32>
    %835 = arith.addf %833, %834 : vector<2x32xf32>
    %836 = math.tanh %835 : vector<2x32xf32>
    %837 = arith.mulf %832, %836 : vector<2x32xf32>
    %c10_187 = arith.constant 10 : index
    %c0_188 = arith.constant 0 : index
    %838 = vector.load %arg13[%c10_187, %c0_188] : memref<16x64xf32, #tpu.memory_space<vmem>>, vector<2x32xf32>
    tpu.vector_store %arg13[%c10_187, %c0_188], %812 {strides = array<i32>} : memref<16x64xf32, #tpu.memory_space<vmem>>, vector<2x32xf32>,
    %c4_189 = arith.constant 4 : index
    %c32_190 = arith.constant 32 : index
    %839 = vector.load %arg13[%c4_189, %c32_190] : memref<16x64xf32, #tpu.memory_space<vmem>>, vector<2x32xf32>
    tpu.vector_store %arg13[%c4_189, %c32_190], %837 {strides = array<i32>} : memref<16x64xf32, #tpu.memory_space<vmem>>, vector<2x32xf32>,
    %840 = vector.extract_strided_slice %483 {offsets = [12, 0], sizes = [2, 128], strides = [1, 1]} : vector<16x256xf32> to vector<2x128xf32>
    %cst_191 = arith.constant dense<0.000000e+00> : vector<2x128xf32>
    %841 = tpu.matmul %812, %485, %cst_191 {dimension_numbers = #tpu.dot_dimension_numbers<[1], [0], [0], [1], [0, 0, 1, 1], [], []>} : vector<2x32xf32>, vector<32x128xf32>, vector<2x128xf32> -> vector<2x128xf32>
    %842 = arith.addf %840, %841 : vector<2x128xf32>
    %843 = vector.extract_strided_slice %483 {offsets = [2, 128], sizes = [2, 128], strides = [1, 1]} : vector<16x256xf32> to vector<2x128xf32>
    %cst_192 = arith.constant dense<0.000000e+00> : vector<2x128xf32>
    %844 = tpu.matmul %837, %487, %cst_192 {dimension_numbers = #tpu.dot_dimension_numbers<[1], [0], [0], [1], [0, 0, 1, 1], [], []>} : vector<2x32xf32>, vector<32x128xf32>, vector<2x128xf32> -> vector<2x128xf32>
    %845 = arith.addf %843, %844 : vector<2x128xf32>
    %846 = vector.extract_strided_slice %842 {offsets = [0, 0], sizes = [2, 32], strides = [1, 1]} : vector<2x128xf32> to vector<2x32xf32>
    %847 = arith.negf %846 : vector<2x32xf32>
    %848 = math.exp %847 : vector<2x32xf32>
    %cst_193 = arith.constant 1.000000e+00 : f32
    %849 = vector.broadcast %cst_193 : f32 to vector<2x32xf32>
    %850 = arith.addf %849, %848 : vector<2x32xf32>
    %851 = arith.divf %849, %850 : vector<2x32xf32>
    %852 = vector.extract_strided_slice %842 {offsets = [0, 32], sizes = [2, 32], strides = [1, 1]} : vector<2x128xf32> to vector<2x32xf32>
    %853 = arith.negf %852 : vector<2x32xf32>
    %854 = math.exp %853 : vector<2x32xf32>
    %cst_194 = arith.constant 1.000000e+00 : f32
    %855 = vector.broadcast %cst_194 : f32 to vector<2x32xf32>
    %856 = arith.addf %855, %854 : vector<2x32xf32>
    %857 = arith.divf %855, %856 : vector<2x32xf32>
    %858 = vector.extract_strided_slice %842 {offsets = [0, 64], sizes = [2, 32], strides = [1, 1]} : vector<2x128xf32> to vector<2x32xf32>
    %859 = math.tanh %858 : vector<2x32xf32>
    %860 = vector.extract_strided_slice %842 {offsets = [0, 96], sizes = [2, 32], strides = [1, 1]} : vector<2x128xf32> to vector<2x32xf32>
    %861 = arith.negf %860 : vector<2x32xf32>
    %862 = math.exp %861 : vector<2x32xf32>
    %cst_195 = arith.constant 1.000000e+00 : f32
    %863 = vector.broadcast %cst_195 : f32 to vector<2x32xf32>
    %864 = arith.addf %863, %862 : vector<2x32xf32>
    %865 = arith.divf %863, %864 : vector<2x32xf32>
    %866 = arith.mulf %857, %810 : vector<2x32xf32>
    %867 = arith.mulf %851, %859 : vector<2x32xf32>
    %868 = arith.addf %866, %867 : vector<2x32xf32>
    %869 = math.tanh %868 : vector<2x32xf32>
    %870 = arith.mulf %865, %869 : vector<2x32xf32>
    %871 = vector.extract_strided_slice %845 {offsets = [0, 0], sizes = [2, 32], strides = [1, 1]} : vector<2x128xf32> to vector<2x32xf32>
    %872 = arith.negf %871 : vector<2x32xf32>
    %873 = math.exp %872 : vector<2x32xf32>
    %cst_196 = arith.constant 1.000000e+00 : f32
    %874 = vector.broadcast %cst_196 : f32 to vector<2x32xf32>
    %875 = arith.addf %874, %873 : vector<2x32xf32>
    %876 = arith.divf %874, %875 : vector<2x32xf32>
    %877 = vector.extract_strided_slice %845 {offsets = [0, 32], sizes = [2, 32], strides = [1, 1]} : vector<2x128xf32> to vector<2x32xf32>
    %878 = arith.negf %877 : vector<2x32xf32>
    %879 = math.exp %878 : vector<2x32xf32>
    %cst_197 = arith.constant 1.000000e+00 : f32
    %880 = vector.broadcast %cst_197 : f32 to vector<2x32xf32>
    %881 = arith.addf %880, %879 : vector<2x32xf32>
    %882 = arith.divf %880, %881 : vector<2x32xf32>
    %883 = vector.extract_strided_slice %845 {offsets = [0, 64], sizes = [2, 32], strides = [1, 1]} : vector<2x128xf32> to vector<2x32xf32>
    %884 = math.tanh %883 : vector<2x32xf32>
    %885 = vector.extract_strided_slice %845 {offsets = [0, 96], sizes = [2, 32], strides = [1, 1]} : vector<2x128xf32> to vector<2x32xf32>
    %886 = arith.negf %885 : vector<2x32xf32>
    %887 = math.exp %886 : vector<2x32xf32>
    %cst_198 = arith.constant 1.000000e+00 : f32
    %888 = vector.broadcast %cst_198 : f32 to vector<2x32xf32>
    %889 = arith.addf %888, %887 : vector<2x32xf32>
    %890 = arith.divf %888, %889 : vector<2x32xf32>
    %891 = arith.mulf %882, %835 : vector<2x32xf32>
    %892 = arith.mulf %876, %884 : vector<2x32xf32>
    %893 = arith.addf %891, %892 : vector<2x32xf32>
    %894 = math.tanh %893 : vector<2x32xf32>
    %895 = arith.mulf %890, %894 : vector<2x32xf32>
    %c12_199 = arith.constant 12 : index
    %c0_200 = arith.constant 0 : index
    %896 = vector.load %arg13[%c12_199, %c0_200] : memref<16x64xf32, #tpu.memory_space<vmem>>, vector<2x32xf32>
    tpu.vector_store %arg13[%c12_199, %c0_200], %870 {strides = array<i32>} : memref<16x64xf32, #tpu.memory_space<vmem>>, vector<2x32xf32>,
    %c2_201 = arith.constant 2 : index
    %c32_202 = arith.constant 32 : index
    %897 = vector.load %arg13[%c2_201, %c32_202] : memref<16x64xf32, #tpu.memory_space<vmem>>, vector<2x32xf32>
    tpu.vector_store %arg13[%c2_201, %c32_202], %895 {strides = array<i32>} : memref<16x64xf32, #tpu.memory_space<vmem>>, vector<2x32xf32>,
    %898 = vector.extract_strided_slice %483 {offsets = [14, 0], sizes = [2, 128], strides = [1, 1]} : vector<16x256xf32> to vector<2x128xf32>
    %cst_203 = arith.constant dense<0.000000e+00> : vector<2x128xf32>
    %899 = tpu.matmul %870, %485, %cst_203 {dimension_numbers = #tpu.dot_dimension_numbers<[1], [0], [0], [1], [0, 0, 1, 1], [], []>} : vector<2x32xf32>, vector<32x128xf32>, vector<2x128xf32> -> vector<2x128xf32>
    %900 = arith.addf %898, %899 : vector<2x128xf32>
    %901 = vector.extract_strided_slice %483 {offsets = [0, 128], sizes = [2, 128], strides = [1, 1]} : vector<16x256xf32> to vector<2x128xf32>
    %cst_204 = arith.constant dense<0.000000e+00> : vector<2x128xf32>
    %902 = tpu.matmul %895, %487, %cst_204 {dimension_numbers = #tpu.dot_dimension_numbers<[1], [0], [0], [1], [0, 0, 1, 1], [], []>} : vector<2x32xf32>, vector<32x128xf32>, vector<2x128xf32> -> vector<2x128xf32>
    %903 = arith.addf %901, %902 : vector<2x128xf32>
    %904 = vector.extract_strided_slice %900 {offsets = [0, 0], sizes = [2, 32], strides = [1, 1]} : vector<2x128xf32> to vector<2x32xf32>
    %905 = arith.negf %904 : vector<2x32xf32>
    %906 = math.exp %905 : vector<2x32xf32>
    %cst_205 = arith.constant 1.000000e+00 : f32
    %907 = vector.broadcast %cst_205 : f32 to vector<2x32xf32>
    %908 = arith.addf %907, %906 : vector<2x32xf32>
    %909 = arith.divf %907, %908 : vector<2x32xf32>
    %910 = vector.extract_strided_slice %900 {offsets = [0, 32], sizes = [2, 32], strides = [1, 1]} : vector<2x128xf32> to vector<2x32xf32>
    %911 = arith.negf %910 : vector<2x32xf32>
    %912 = math.exp %911 : vector<2x32xf32>
    %cst_206 = arith.constant 1.000000e+00 : f32
    %913 = vector.broadcast %cst_206 : f32 to vector<2x32xf32>
    %914 = arith.addf %913, %912 : vector<2x32xf32>
    %915 = arith.divf %913, %914 : vector<2x32xf32>
    %916 = vector.extract_strided_slice %900 {offsets = [0, 64], sizes = [2, 32], strides = [1, 1]} : vector<2x128xf32> to vector<2x32xf32>
    %917 = math.tanh %916 : vector<2x32xf32>
    %918 = vector.extract_strided_slice %900 {offsets = [0, 96], sizes = [2, 32], strides = [1, 1]} : vector<2x128xf32> to vector<2x32xf32>
    %919 = arith.negf %918 : vector<2x32xf32>
    %920 = math.exp %919 : vector<2x32xf32>
    %cst_207 = arith.constant 1.000000e+00 : f32
    %921 = vector.broadcast %cst_207 : f32 to vector<2x32xf32>
    %922 = arith.addf %921, %920 : vector<2x32xf32>
    %923 = arith.divf %921, %922 : vector<2x32xf32>
    %924 = arith.mulf %915, %868 : vector<2x32xf32>
    %925 = arith.mulf %909, %917 : vector<2x32xf32>
    %926 = arith.addf %924, %925 : vector<2x32xf32>
    %927 = math.tanh %926 : vector<2x32xf32>
    %928 = arith.mulf %923, %927 : vector<2x32xf32>
    %929 = vector.extract_strided_slice %903 {offsets = [0, 0], sizes = [2, 32], strides = [1, 1]} : vector<2x128xf32> to vector<2x32xf32>
    %930 = arith.negf %929 : vector<2x32xf32>
    %931 = math.exp %930 : vector<2x32xf32>
    %cst_208 = arith.constant 1.000000e+00 : f32
    %932 = vector.broadcast %cst_208 : f32 to vector<2x32xf32>
    %933 = arith.addf %932, %931 : vector<2x32xf32>
    %934 = arith.divf %932, %933 : vector<2x32xf32>
    %935 = vector.extract_strided_slice %903 {offsets = [0, 32], sizes = [2, 32], strides = [1, 1]} : vector<2x128xf32> to vector<2x32xf32>
    %936 = arith.negf %935 : vector<2x32xf32>
    %937 = math.exp %936 : vector<2x32xf32>
    %cst_209 = arith.constant 1.000000e+00 : f32
    %938 = vector.broadcast %cst_209 : f32 to vector<2x32xf32>
    %939 = arith.addf %938, %937 : vector<2x32xf32>
    %940 = arith.divf %938, %939 : vector<2x32xf32>
    %941 = vector.extract_strided_slice %903 {offsets = [0, 64], sizes = [2, 32], strides = [1, 1]} : vector<2x128xf32> to vector<2x32xf32>
    %942 = math.tanh %941 : vector<2x32xf32>
    %943 = vector.extract_strided_slice %903 {offsets = [0, 96], sizes = [2, 32], strides = [1, 1]} : vector<2x128xf32> to vector<2x32xf32>
    %944 = arith.negf %943 : vector<2x32xf32>
    %945 = math.exp %944 : vector<2x32xf32>
    %cst_210 = arith.constant 1.000000e+00 : f32
    %946 = vector.broadcast %cst_210 : f32 to vector<2x32xf32>
    %947 = arith.addf %946, %945 : vector<2x32xf32>
    %948 = arith.divf %946, %947 : vector<2x32xf32>
    %949 = arith.mulf %940, %893 : vector<2x32xf32>
    %950 = arith.mulf %934, %942 : vector<2x32xf32>
    %951 = arith.addf %949, %950 : vector<2x32xf32>
    %952 = math.tanh %951 : vector<2x32xf32>
    %953 = arith.mulf %948, %952 : vector<2x32xf32>
    %c14_211 = arith.constant 14 : index
    %c0_212 = arith.constant 0 : index
    %954 = vector.load %arg13[%c14_211, %c0_212] : memref<16x64xf32, #tpu.memory_space<vmem>>, vector<2x32xf32>
    tpu.vector_store %arg13[%c14_211, %c0_212], %928 {strides = array<i32>} : memref<16x64xf32, #tpu.memory_space<vmem>>, vector<2x32xf32>,
    %c0_213 = arith.constant 0 : index
    %c32_214 = arith.constant 32 : index
    %955 = vector.load %arg13[%c0_213, %c32_214] : memref<16x64xf32, #tpu.memory_space<vmem>>, vector<2x32xf32>
    tpu.vector_store %arg13[%c0_213, %c32_214], %953 {strides = array<i32>} : memref<16x64xf32, #tpu.memory_space<vmem>>, vector<2x32xf32>,
    %c0_215 = arith.constant 0 : index
    %c0_216 = arith.constant 0 : index
    %956 = vector.load %arg13[%c0_215, %c0_216] : memref<16x64xf32, #tpu.memory_space<vmem>>, vector<16x64xf32>
    %c0_217 = arith.constant 0 : index
    %c0_218 = arith.constant 0 : index
    %957 = vector.load %arg7[%c0_217, %c0_218] : memref<64x256xf32, #tpu.memory_space<vmem>>, vector<64x256xf32>
    %cst_219 = arith.constant dense<0.000000e+00> : vector<16x256xf32>
    %958 = tpu.matmul %956, %957, %cst_219 {dimension_numbers = #tpu.dot_dimension_numbers<[1], [0], [0], [1], [0, 0, 1, 1], [], []>} : vector<16x64xf32>, vector<64x256xf32>, vector<16x256xf32> -> vector<16x256xf32>
    %c0_220 = arith.constant 0 : index
    %c0_221 = arith.constant 0 : index
    %959 = vector.load %arg8[%c0_220, %c0_221] : memref<1x256xf32, #tpu.memory_space<vmem>>, vector<1x256xf32>
    %960 = vector.broadcast %959 : vector<1x256xf32> to vector<16x256xf32>
    %961 = arith.addf %958, %960 : vector<16x256xf32>
    %c0_222 = arith.constant 0 : index
    %c0_223 = arith.constant 0 : index
    %c0_224 = arith.constant 0 : index
    %962 = vector.load %arg9[%c0_222, %c0_223, %c0_224] : memref<2x32x128xf32, #tpu.memory_space<vmem>>, vector<1x32x128xf32>
    %963 = vector.shape_cast %962 : vector<1x32x128xf32> to vector<32x128xf32>
    %c1_225 = arith.constant 1 : index
    %c0_226 = arith.constant 0 : index
    %c0_227 = arith.constant 0 : index
    %964 = vector.load %arg9[%c1_225, %c0_226, %c0_227] : memref<2x32x128xf32, #tpu.memory_space<vmem>>, vector<1x32x128xf32>
    %965 = vector.shape_cast %964 : vector<1x32x128xf32> to vector<32x128xf32>
    %cst_228 = arith.constant 0.000000e+00 : f32
    %966 = vector.broadcast %cst_228 : f32 to vector<2x32xf32>
    %cst_229 = arith.constant 0.000000e+00 : f32
    %967 = vector.broadcast %cst_229 : f32 to vector<2x32xf32>
    %cst_230 = arith.constant 0.000000e+00 : f32
    %968 = vector.broadcast %cst_230 : f32 to vector<2x32xf32>
    %cst_231 = arith.constant 0.000000e+00 : f32
    %969 = vector.broadcast %cst_231 : f32 to vector<2x32xf32>
    %970 = vector.extract_strided_slice %961 {offsets = [0, 0], sizes = [2, 128], strides = [1, 1]} : vector<16x256xf32> to vector<2x128xf32>
    %cst_232 = arith.constant dense<0.000000e+00> : vector<2x128xf32>
    %971 = tpu.matmul %966, %963, %cst_232 {dimension_numbers = #tpu.dot_dimension_numbers<[1], [0], [0], [1], [0, 0, 1, 1], [], []>} : vector<2x32xf32>, vector<32x128xf32>, vector<2x128xf32> -> vector<2x128xf32>
    %972 = arith.addf %970, %971 : vector<2x128xf32>
    %973 = vector.extract_strided_slice %961 {offsets = [14, 128], sizes = [2, 128], strides = [1, 1]} : vector<16x256xf32> to vector<2x128xf32>
    %cst_233 = arith.constant dense<0.000000e+00> : vector<2x128xf32>
    %974 = tpu.matmul %968, %965, %cst_233 {dimension_numbers = #tpu.dot_dimension_numbers<[1], [0], [0], [1], [0, 0, 1, 1], [], []>} : vector<2x32xf32>, vector<32x128xf32>, vector<2x128xf32> -> vector<2x128xf32>
    %975 = arith.addf %973, %974 : vector<2x128xf32>
    %976 = vector.extract_strided_slice %972 {offsets = [0, 0], sizes = [2, 32], strides = [1, 1]} : vector<2x128xf32> to vector<2x32xf32>
    %977 = arith.negf %976 : vector<2x32xf32>
    %978 = math.exp %977 : vector<2x32xf32>
    %cst_234 = arith.constant 1.000000e+00 : f32
    %979 = vector.broadcast %cst_234 : f32 to vector<2x32xf32>
    %980 = arith.addf %979, %978 : vector<2x32xf32>
    %981 = arith.divf %979, %980 : vector<2x32xf32>
    %982 = vector.extract_strided_slice %972 {offsets = [0, 32], sizes = [2, 32], strides = [1, 1]} : vector<2x128xf32> to vector<2x32xf32>
    %983 = arith.negf %982 : vector<2x32xf32>
    %984 = math.exp %983 : vector<2x32xf32>
    %cst_235 = arith.constant 1.000000e+00 : f32
    %985 = vector.broadcast %cst_235 : f32 to vector<2x32xf32>
    %986 = arith.addf %985, %984 : vector<2x32xf32>
    %987 = arith.divf %985, %986 : vector<2x32xf32>
    %988 = vector.extract_strided_slice %972 {offsets = [0, 64], sizes = [2, 32], strides = [1, 1]} : vector<2x128xf32> to vector<2x32xf32>
    %989 = math.tanh %988 : vector<2x32xf32>
    %990 = vector.extract_strided_slice %972 {offsets = [0, 96], sizes = [2, 32], strides = [1, 1]} : vector<2x128xf32> to vector<2x32xf32>
    %991 = arith.negf %990 : vector<2x32xf32>
    %992 = math.exp %991 : vector<2x32xf32>
    %cst_236 = arith.constant 1.000000e+00 : f32
    %993 = vector.broadcast %cst_236 : f32 to vector<2x32xf32>
    %994 = arith.addf %993, %992 : vector<2x32xf32>
    %995 = arith.divf %993, %994 : vector<2x32xf32>
    %996 = arith.mulf %987, %967 : vector<2x32xf32>
    %997 = arith.mulf %981, %989 : vector<2x32xf32>
    %998 = arith.addf %996, %997 : vector<2x32xf32>
    %999 = math.tanh %998 : vector<2x32xf32>
    %1000 = arith.mulf %995, %999 : vector<2x32xf32>
    %1001 = vector.extract_strided_slice %975 {offsets = [0, 0], sizes = [2, 32], strides = [1, 1]} : vector<2x128xf32> to vector<2x32xf32>
    %1002 = arith.negf %1001 : vector<2x32xf32>
    %1003 = math.exp %1002 : vector<2x32xf32>
    %cst_237 = arith.constant 1.000000e+00 : f32
    %1004 = vector.broadcast %cst_237 : f32 to vector<2x32xf32>
    %1005 = arith.addf %1004, %1003 : vector<2x32xf32>
    %1006 = arith.divf %1004, %1005 : vector<2x32xf32>
    %1007 = vector.extract_strided_slice %975 {offsets = [0, 32], sizes = [2, 32], strides = [1, 1]} : vector<2x128xf32> to vector<2x32xf32>
    %1008 = arith.negf %1007 : vector<2x32xf32>
    %1009 = math.exp %1008 : vector<2x32xf32>
    %cst_238 = arith.constant 1.000000e+00 : f32
    %1010 = vector.broadcast %cst_238 : f32 to vector<2x32xf32>
    %1011 = arith.addf %1010, %1009 : vector<2x32xf32>
    %1012 = arith.divf %1010, %1011 : vector<2x32xf32>
    %1013 = vector.extract_strided_slice %975 {offsets = [0, 64], sizes = [2, 32], strides = [1, 1]} : vector<2x128xf32> to vector<2x32xf32>
    %1014 = math.tanh %1013 : vector<2x32xf32>
    %1015 = vector.extract_strided_slice %975 {offsets = [0, 96], sizes = [2, 32], strides = [1, 1]} : vector<2x128xf32> to vector<2x32xf32>
    %1016 = arith.negf %1015 : vector<2x32xf32>
    %1017 = math.exp %1016 : vector<2x32xf32>
    %cst_239 = arith.constant 1.000000e+00 : f32
    %1018 = vector.broadcast %cst_239 : f32 to vector<2x32xf32>
    %1019 = arith.addf %1018, %1017 : vector<2x32xf32>
    %1020 = arith.divf %1018, %1019 : vector<2x32xf32>
    %1021 = arith.mulf %1012, %969 : vector<2x32xf32>
    %1022 = arith.mulf %1006, %1014 : vector<2x32xf32>
    %1023 = arith.addf %1021, %1022 : vector<2x32xf32>
    %1024 = math.tanh %1023 : vector<2x32xf32>
    %1025 = arith.mulf %1020, %1024 : vector<2x32xf32>
    %c0_240 = arith.constant 0 : index
    %c0_241 = arith.constant 0 : index
    %1026 = vector.load %arg13[%c0_240, %c0_241] : memref<16x64xf32, #tpu.memory_space<vmem>>, vector<2x32xf32>
    tpu.vector_store %arg13[%c0_240, %c0_241], %1000 {strides = array<i32>} : memref<16x64xf32, #tpu.memory_space<vmem>>, vector<2x32xf32>,
    %c14_242 = arith.constant 14 : index
    %c32_243 = arith.constant 32 : index
    %1027 = vector.load %arg13[%c14_242, %c32_243] : memref<16x64xf32, #tpu.memory_space<vmem>>, vector<2x32xf32>
    tpu.vector_store %arg13[%c14_242, %c32_243], %1025 {strides = array<i32>} : memref<16x64xf32, #tpu.memory_space<vmem>>, vector<2x32xf32>,
    %1028 = vector.extract_strided_slice %961 {offsets = [2, 0], sizes = [2, 128], strides = [1, 1]} : vector<16x256xf32> to vector<2x128xf32>
    %cst_244 = arith.constant dense<0.000000e+00> : vector<2x128xf32>
    %1029 = tpu.matmul %1000, %963, %cst_244 {dimension_numbers = #tpu.dot_dimension_numbers<[1], [0], [0], [1], [0, 0, 1, 1], [], []>} : vector<2x32xf32>, vector<32x128xf32>, vector<2x128xf32> -> vector<2x128xf32>
    %1030 = arith.addf %1028, %1029 : vector<2x128xf32>
    %1031 = vector.extract_strided_slice %961 {offsets = [12, 128], sizes = [2, 128], strides = [1, 1]} : vector<16x256xf32> to vector<2x128xf32>
    %cst_245 = arith.constant dense<0.000000e+00> : vector<2x128xf32>
    %1032 = tpu.matmul %1025, %965, %cst_245 {dimension_numbers = #tpu.dot_dimension_numbers<[1], [0], [0], [1], [0, 0, 1, 1], [], []>} : vector<2x32xf32>, vector<32x128xf32>, vector<2x128xf32> -> vector<2x128xf32>
    %1033 = arith.addf %1031, %1032 : vector<2x128xf32>
    %1034 = vector.extract_strided_slice %1030 {offsets = [0, 0], sizes = [2, 32], strides = [1, 1]} : vector<2x128xf32> to vector<2x32xf32>
    %1035 = arith.negf %1034 : vector<2x32xf32>
    %1036 = math.exp %1035 : vector<2x32xf32>
    %cst_246 = arith.constant 1.000000e+00 : f32
    %1037 = vector.broadcast %cst_246 : f32 to vector<2x32xf32>
    %1038 = arith.addf %1037, %1036 : vector<2x32xf32>
    %1039 = arith.divf %1037, %1038 : vector<2x32xf32>
    %1040 = vector.extract_strided_slice %1030 {offsets = [0, 32], sizes = [2, 32], strides = [1, 1]} : vector<2x128xf32> to vector<2x32xf32>
    %1041 = arith.negf %1040 : vector<2x32xf32>
    %1042 = math.exp %1041 : vector<2x32xf32>
    %cst_247 = arith.constant 1.000000e+00 : f32
    %1043 = vector.broadcast %cst_247 : f32 to vector<2x32xf32>
    %1044 = arith.addf %1043, %1042 : vector<2x32xf32>
    %1045 = arith.divf %1043, %1044 : vector<2x32xf32>
    %1046 = vector.extract_strided_slice %1030 {offsets = [0, 64], sizes = [2, 32], strides = [1, 1]} : vector<2x128xf32> to vector<2x32xf32>
    %1047 = math.tanh %1046 : vector<2x32xf32>
    %1048 = vector.extract_strided_slice %1030 {offsets = [0, 96], sizes = [2, 32], strides = [1, 1]} : vector<2x128xf32> to vector<2x32xf32>
    %1049 = arith.negf %1048 : vector<2x32xf32>
    %1050 = math.exp %1049 : vector<2x32xf32>
    %cst_248 = arith.constant 1.000000e+00 : f32
    %1051 = vector.broadcast %cst_248 : f32 to vector<2x32xf32>
    %1052 = arith.addf %1051, %1050 : vector<2x32xf32>
    %1053 = arith.divf %1051, %1052 : vector<2x32xf32>
    %1054 = arith.mulf %1045, %998 : vector<2x32xf32>
    %1055 = arith.mulf %1039, %1047 : vector<2x32xf32>
    %1056 = arith.addf %1054, %1055 : vector<2x32xf32>
    %1057 = math.tanh %1056 : vector<2x32xf32>
    %1058 = arith.mulf %1053, %1057 : vector<2x32xf32>
    %1059 = vector.extract_strided_slice %1033 {offsets = [0, 0], sizes = [2, 32], strides = [1, 1]} : vector<2x128xf32> to vector<2x32xf32>
    %1060 = arith.negf %1059 : vector<2x32xf32>
    %1061 = math.exp %1060 : vector<2x32xf32>
    %cst_249 = arith.constant 1.000000e+00 : f32
    %1062 = vector.broadcast %cst_249 : f32 to vector<2x32xf32>
    %1063 = arith.addf %1062, %1061 : vector<2x32xf32>
    %1064 = arith.divf %1062, %1063 : vector<2x32xf32>
    %1065 = vector.extract_strided_slice %1033 {offsets = [0, 32], sizes = [2, 32], strides = [1, 1]} : vector<2x128xf32> to vector<2x32xf32>
    %1066 = arith.negf %1065 : vector<2x32xf32>
    %1067 = math.exp %1066 : vector<2x32xf32>
    %cst_250 = arith.constant 1.000000e+00 : f32
    %1068 = vector.broadcast %cst_250 : f32 to vector<2x32xf32>
    %1069 = arith.addf %1068, %1067 : vector<2x32xf32>
    %1070 = arith.divf %1068, %1069 : vector<2x32xf32>
    %1071 = vector.extract_strided_slice %1033 {offsets = [0, 64], sizes = [2, 32], strides = [1, 1]} : vector<2x128xf32> to vector<2x32xf32>
    %1072 = math.tanh %1071 : vector<2x32xf32>
    %1073 = vector.extract_strided_slice %1033 {offsets = [0, 96], sizes = [2, 32], strides = [1, 1]} : vector<2x128xf32> to vector<2x32xf32>
    %1074 = arith.negf %1073 : vector<2x32xf32>
    %1075 = math.exp %1074 : vector<2x32xf32>
    %cst_251 = arith.constant 1.000000e+00 : f32
    %1076 = vector.broadcast %cst_251 : f32 to vector<2x32xf32>
    %1077 = arith.addf %1076, %1075 : vector<2x32xf32>
    %1078 = arith.divf %1076, %1077 : vector<2x32xf32>
    %1079 = arith.mulf %1070, %1023 : vector<2x32xf32>
    %1080 = arith.mulf %1064, %1072 : vector<2x32xf32>
    %1081 = arith.addf %1079, %1080 : vector<2x32xf32>
    %1082 = math.tanh %1081 : vector<2x32xf32>
    %1083 = arith.mulf %1078, %1082 : vector<2x32xf32>
    %c2_252 = arith.constant 2 : index
    %c0_253 = arith.constant 0 : index
    %1084 = vector.load %arg13[%c2_252, %c0_253] : memref<16x64xf32, #tpu.memory_space<vmem>>, vector<2x32xf32>
    tpu.vector_store %arg13[%c2_252, %c0_253], %1058 {strides = array<i32>} : memref<16x64xf32, #tpu.memory_space<vmem>>, vector<2x32xf32>,
    %c12_254 = arith.constant 12 : index
    %c32_255 = arith.constant 32 : index
    %1085 = vector.load %arg13[%c12_254, %c32_255] : memref<16x64xf32, #tpu.memory_space<vmem>>, vector<2x32xf32>
    tpu.vector_store %arg13[%c12_254, %c32_255], %1083 {strides = array<i32>} : memref<16x64xf32, #tpu.memory_space<vmem>>, vector<2x32xf32>,
    %1086 = vector.extract_strided_slice %961 {offsets = [4, 0], sizes = [2, 128], strides = [1, 1]} : vector<16x256xf32> to vector<2x128xf32>
    %cst_256 = arith.constant dense<0.000000e+00> : vector<2x128xf32>
    %1087 = tpu.matmul %1058, %963, %cst_256 {dimension_numbers = #tpu.dot_dimension_numbers<[1], [0], [0], [1], [0, 0, 1, 1], [], []>} : vector<2x32xf32>, vector<32x128xf32>, vector<2x128xf32> -> vector<2x128xf32>
    %1088 = arith.addf %1086, %1087 : vector<2x128xf32>
    %1089 = vector.extract_strided_slice %961 {offsets = [10, 128], sizes = [2, 128], strides = [1, 1]} : vector<16x256xf32> to vector<2x128xf32>
    %cst_257 = arith.constant dense<0.000000e+00> : vector<2x128xf32>
    %1090 = tpu.matmul %1083, %965, %cst_257 {dimension_numbers = #tpu.dot_dimension_numbers<[1], [0], [0], [1], [0, 0, 1, 1], [], []>} : vector<2x32xf32>, vector<32x128xf32>, vector<2x128xf32> -> vector<2x128xf32>
    %1091 = arith.addf %1089, %1090 : vector<2x128xf32>
    %1092 = vector.extract_strided_slice %1088 {offsets = [0, 0], sizes = [2, 32], strides = [1, 1]} : vector<2x128xf32> to vector<2x32xf32>
    %1093 = arith.negf %1092 : vector<2x32xf32>
    %1094 = math.exp %1093 : vector<2x32xf32>
    %cst_258 = arith.constant 1.000000e+00 : f32
    %1095 = vector.broadcast %cst_258 : f32 to vector<2x32xf32>
    %1096 = arith.addf %1095, %1094 : vector<2x32xf32>
    %1097 = arith.divf %1095, %1096 : vector<2x32xf32>
    %1098 = vector.extract_strided_slice %1088 {offsets = [0, 32], sizes = [2, 32], strides = [1, 1]} : vector<2x128xf32> to vector<2x32xf32>
    %1099 = arith.negf %1098 : vector<2x32xf32>
    %1100 = math.exp %1099 : vector<2x32xf32>
    %cst_259 = arith.constant 1.000000e+00 : f32
    %1101 = vector.broadcast %cst_259 : f32 to vector<2x32xf32>
    %1102 = arith.addf %1101, %1100 : vector<2x32xf32>
    %1103 = arith.divf %1101, %1102 : vector<2x32xf32>
    %1104 = vector.extract_strided_slice %1088 {offsets = [0, 64], sizes = [2, 32], strides = [1, 1]} : vector<2x128xf32> to vector<2x32xf32>
    %1105 = math.tanh %1104 : vector<2x32xf32>
    %1106 = vector.extract_strided_slice %1088 {offsets = [0, 96], sizes = [2, 32], strides = [1, 1]} : vector<2x128xf32> to vector<2x32xf32>
    %1107 = arith.negf %1106 : vector<2x32xf32>
    %1108 = math.exp %1107 : vector<2x32xf32>
    %cst_260 = arith.constant 1.000000e+00 : f32
    %1109 = vector.broadcast %cst_260 : f32 to vector<2x32xf32>
    %1110 = arith.addf %1109, %1108 : vector<2x32xf32>
    %1111 = arith.divf %1109, %1110 : vector<2x32xf32>
    %1112 = arith.mulf %1103, %1056 : vector<2x32xf32>
    %1113 = arith.mulf %1097, %1105 : vector<2x32xf32>
    %1114 = arith.addf %1112, %1113 : vector<2x32xf32>
    %1115 = math.tanh %1114 : vector<2x32xf32>
    %1116 = arith.mulf %1111, %1115 : vector<2x32xf32>
    %1117 = vector.extract_strided_slice %1091 {offsets = [0, 0], sizes = [2, 32], strides = [1, 1]} : vector<2x128xf32> to vector<2x32xf32>
    %1118 = arith.negf %1117 : vector<2x32xf32>
    %1119 = math.exp %1118 : vector<2x32xf32>
    %cst_261 = arith.constant 1.000000e+00 : f32
    %1120 = vector.broadcast %cst_261 : f32 to vector<2x32xf32>
    %1121 = arith.addf %1120, %1119 : vector<2x32xf32>
    %1122 = arith.divf %1120, %1121 : vector<2x32xf32>
    %1123 = vector.extract_strided_slice %1091 {offsets = [0, 32], sizes = [2, 32], strides = [1, 1]} : vector<2x128xf32> to vector<2x32xf32>
    %1124 = arith.negf %1123 : vector<2x32xf32>
    %1125 = math.exp %1124 : vector<2x32xf32>
    %cst_262 = arith.constant 1.000000e+00 : f32
    %1126 = vector.broadcast %cst_262 : f32 to vector<2x32xf32>
    %1127 = arith.addf %1126, %1125 : vector<2x32xf32>
    %1128 = arith.divf %1126, %1127 : vector<2x32xf32>
    %1129 = vector.extract_strided_slice %1091 {offsets = [0, 64], sizes = [2, 32], strides = [1, 1]} : vector<2x128xf32> to vector<2x32xf32>
    %1130 = math.tanh %1129 : vector<2x32xf32>
    %1131 = vector.extract_strided_slice %1091 {offsets = [0, 96], sizes = [2, 32], strides = [1, 1]} : vector<2x128xf32> to vector<2x32xf32>
    %1132 = arith.negf %1131 : vector<2x32xf32>
    %1133 = math.exp %1132 : vector<2x32xf32>
    %cst_263 = arith.constant 1.000000e+00 : f32
    %1134 = vector.broadcast %cst_263 : f32 to vector<2x32xf32>
    %1135 = arith.addf %1134, %1133 : vector<2x32xf32>
    %1136 = arith.divf %1134, %1135 : vector<2x32xf32>
    %1137 = arith.mulf %1128, %1081 : vector<2x32xf32>
    %1138 = arith.mulf %1122, %1130 : vector<2x32xf32>
    %1139 = arith.addf %1137, %1138 : vector<2x32xf32>
    %1140 = math.tanh %1139 : vector<2x32xf32>
    %1141 = arith.mulf %1136, %1140 : vector<2x32xf32>
    %c4_264 = arith.constant 4 : index
    %c0_265 = arith.constant 0 : index
    %1142 = vector.load %arg13[%c4_264, %c0_265] : memref<16x64xf32, #tpu.memory_space<vmem>>, vector<2x32xf32>
    tpu.vector_store %arg13[%c4_264, %c0_265], %1116 {strides = array<i32>} : memref<16x64xf32, #tpu.memory_space<vmem>>, vector<2x32xf32>,
    %c10_266 = arith.constant 10 : index
    %c32_267 = arith.constant 32 : index
    %1143 = vector.load %arg13[%c10_266, %c32_267] : memref<16x64xf32, #tpu.memory_space<vmem>>, vector<2x32xf32>
    tpu.vector_store %arg13[%c10_266, %c32_267], %1141 {strides = array<i32>} : memref<16x64xf32, #tpu.memory_space<vmem>>, vector<2x32xf32>,
    %1144 = vector.extract_strided_slice %961 {offsets = [6, 0], sizes = [2, 128], strides = [1, 1]} : vector<16x256xf32> to vector<2x128xf32>
    %cst_268 = arith.constant dense<0.000000e+00> : vector<2x128xf32>
    %1145 = tpu.matmul %1116, %963, %cst_268 {dimension_numbers = #tpu.dot_dimension_numbers<[1], [0], [0], [1], [0, 0, 1, 1], [], []>} : vector<2x32xf32>, vector<32x128xf32>, vector<2x128xf32> -> vector<2x128xf32>
    %1146 = arith.addf %1144, %1145 : vector<2x128xf32>
    %1147 = vector.extract_strided_slice %961 {offsets = [8, 128], sizes = [2, 128], strides = [1, 1]} : vector<16x256xf32> to vector<2x128xf32>
    %cst_269 = arith.constant dense<0.000000e+00> : vector<2x128xf32>
    %1148 = tpu.matmul %1141, %965, %cst_269 {dimension_numbers = #tpu.dot_dimension_numbers<[1], [0], [0], [1], [0, 0, 1, 1], [], []>} : vector<2x32xf32>, vector<32x128xf32>, vector<2x128xf32> -> vector<2x128xf32>
    %1149 = arith.addf %1147, %1148 : vector<2x128xf32>
    %1150 = vector.extract_strided_slice %1146 {offsets = [0, 0], sizes = [2, 32], strides = [1, 1]} : vector<2x128xf32> to vector<2x32xf32>
    %1151 = arith.negf %1150 : vector<2x32xf32>
    %1152 = math.exp %1151 : vector<2x32xf32>
    %cst_270 = arith.constant 1.000000e+00 : f32
    %1153 = vector.broadcast %cst_270 : f32 to vector<2x32xf32>
    %1154 = arith.addf %1153, %1152 : vector<2x32xf32>
    %1155 = arith.divf %1153, %1154 : vector<2x32xf32>
    %1156 = vector.extract_strided_slice %1146 {offsets = [0, 32], sizes = [2, 32], strides = [1, 1]} : vector<2x128xf32> to vector<2x32xf32>
    %1157 = arith.negf %1156 : vector<2x32xf32>
    %1158 = math.exp %1157 : vector<2x32xf32>
    %cst_271 = arith.constant 1.000000e+00 : f32
    %1159 = vector.broadcast %cst_271 : f32 to vector<2x32xf32>
    %1160 = arith.addf %1159, %1158 : vector<2x32xf32>
    %1161 = arith.divf %1159, %1160 : vector<2x32xf32>
    %1162 = vector.extract_strided_slice %1146 {offsets = [0, 64], sizes = [2, 32], strides = [1, 1]} : vector<2x128xf32> to vector<2x32xf32>
    %1163 = math.tanh %1162 : vector<2x32xf32>
    %1164 = vector.extract_strided_slice %1146 {offsets = [0, 96], sizes = [2, 32], strides = [1, 1]} : vector<2x128xf32> to vector<2x32xf32>
    %1165 = arith.negf %1164 : vector<2x32xf32>
    %1166 = math.exp %1165 : vector<2x32xf32>
    %cst_272 = arith.constant 1.000000e+00 : f32
    %1167 = vector.broadcast %cst_272 : f32 to vector<2x32xf32>
    %1168 = arith.addf %1167, %1166 : vector<2x32xf32>
    %1169 = arith.divf %1167, %1168 : vector<2x32xf32>
    %1170 = arith.mulf %1161, %1114 : vector<2x32xf32>
    %1171 = arith.mulf %1155, %1163 : vector<2x32xf32>
    %1172 = arith.addf %1170, %1171 : vector<2x32xf32>
    %1173 = math.tanh %1172 : vector<2x32xf32>
    %1174 = arith.mulf %1169, %1173 : vector<2x32xf32>
    %1175 = vector.extract_strided_slice %1149 {offsets = [0, 0], sizes = [2, 32], strides = [1, 1]} : vector<2x128xf32> to vector<2x32xf32>
    %1176 = arith.negf %1175 : vector<2x32xf32>
    %1177 = math.exp %1176 : vector<2x32xf32>
    %cst_273 = arith.constant 1.000000e+00 : f32
    %1178 = vector.broadcast %cst_273 : f32 to vector<2x32xf32>
    %1179 = arith.addf %1178, %1177 : vector<2x32xf32>
    %1180 = arith.divf %1178, %1179 : vector<2x32xf32>
    %1181 = vector.extract_strided_slice %1149 {offsets = [0, 32], sizes = [2, 32], strides = [1, 1]} : vector<2x128xf32> to vector<2x32xf32>
    %1182 = arith.negf %1181 : vector<2x32xf32>
    %1183 = math.exp %1182 : vector<2x32xf32>
    %cst_274 = arith.constant 1.000000e+00 : f32
    %1184 = vector.broadcast %cst_274 : f32 to vector<2x32xf32>
    %1185 = arith.addf %1184, %1183 : vector<2x32xf32>
    %1186 = arith.divf %1184, %1185 : vector<2x32xf32>
    %1187 = vector.extract_strided_slice %1149 {offsets = [0, 64], sizes = [2, 32], strides = [1, 1]} : vector<2x128xf32> to vector<2x32xf32>
    %1188 = math.tanh %1187 : vector<2x32xf32>
    %1189 = vector.extract_strided_slice %1149 {offsets = [0, 96], sizes = [2, 32], strides = [1, 1]} : vector<2x128xf32> to vector<2x32xf32>
    %1190 = arith.negf %1189 : vector<2x32xf32>
    %1191 = math.exp %1190 : vector<2x32xf32>
    %cst_275 = arith.constant 1.000000e+00 : f32
    %1192 = vector.broadcast %cst_275 : f32 to vector<2x32xf32>
    %1193 = arith.addf %1192, %1191 : vector<2x32xf32>
    %1194 = arith.divf %1192, %1193 : vector<2x32xf32>
    %1195 = arith.mulf %1186, %1139 : vector<2x32xf32>
    %1196 = arith.mulf %1180, %1188 : vector<2x32xf32>
    %1197 = arith.addf %1195, %1196 : vector<2x32xf32>
    %1198 = math.tanh %1197 : vector<2x32xf32>
    %1199 = arith.mulf %1194, %1198 : vector<2x32xf32>
    %c6_276 = arith.constant 6 : index
    %c0_277 = arith.constant 0 : index
    %1200 = vector.load %arg13[%c6_276, %c0_277] : memref<16x64xf32, #tpu.memory_space<vmem>>, vector<2x32xf32>
    tpu.vector_store %arg13[%c6_276, %c0_277], %1174 {strides = array<i32>} : memref<16x64xf32, #tpu.memory_space<vmem>>, vector<2x32xf32>,
    %c8_278 = arith.constant 8 : index
    %c32_279 = arith.constant 32 : index
    %1201 = vector.load %arg13[%c8_278, %c32_279] : memref<16x64xf32, #tpu.memory_space<vmem>>, vector<2x32xf32>
    tpu.vector_store %arg13[%c8_278, %c32_279], %1199 {strides = array<i32>} : memref<16x64xf32, #tpu.memory_space<vmem>>, vector<2x32xf32>,
    %1202 = vector.extract_strided_slice %961 {offsets = [8, 0], sizes = [2, 128], strides = [1, 1]} : vector<16x256xf32> to vector<2x128xf32>
    %cst_280 = arith.constant dense<0.000000e+00> : vector<2x128xf32>
    %1203 = tpu.matmul %1174, %963, %cst_280 {dimension_numbers = #tpu.dot_dimension_numbers<[1], [0], [0], [1], [0, 0, 1, 1], [], []>} : vector<2x32xf32>, vector<32x128xf32>, vector<2x128xf32> -> vector<2x128xf32>
    %1204 = arith.addf %1202, %1203 : vector<2x128xf32>
    %1205 = vector.extract_strided_slice %961 {offsets = [6, 128], sizes = [2, 128], strides = [1, 1]} : vector<16x256xf32> to vector<2x128xf32>
    %cst_281 = arith.constant dense<0.000000e+00> : vector<2x128xf32>
    %1206 = tpu.matmul %1199, %965, %cst_281 {dimension_numbers = #tpu.dot_dimension_numbers<[1], [0], [0], [1], [0, 0, 1, 1], [], []>} : vector<2x32xf32>, vector<32x128xf32>, vector<2x128xf32> -> vector<2x128xf32>
    %1207 = arith.addf %1205, %1206 : vector<2x128xf32>
    %1208 = vector.extract_strided_slice %1204 {offsets = [0, 0], sizes = [2, 32], strides = [1, 1]} : vector<2x128xf32> to vector<2x32xf32>
    %1209 = arith.negf %1208 : vector<2x32xf32>
    %1210 = math.exp %1209 : vector<2x32xf32>
    %cst_282 = arith.constant 1.000000e+00 : f32
    %1211 = vector.broadcast %cst_282 : f32 to vector<2x32xf32>
    %1212 = arith.addf %1211, %1210 : vector<2x32xf32>
    %1213 = arith.divf %1211, %1212 : vector<2x32xf32>
    %1214 = vector.extract_strided_slice %1204 {offsets = [0, 32], sizes = [2, 32], strides = [1, 1]} : vector<2x128xf32> to vector<2x32xf32>
    %1215 = arith.negf %1214 : vector<2x32xf32>
    %1216 = math.exp %1215 : vector<2x32xf32>
    %cst_283 = arith.constant 1.000000e+00 : f32
    %1217 = vector.broadcast %cst_283 : f32 to vector<2x32xf32>
    %1218 = arith.addf %1217, %1216 : vector<2x32xf32>
    %1219 = arith.divf %1217, %1218 : vector<2x32xf32>
    %1220 = vector.extract_strided_slice %1204 {offsets = [0, 64], sizes = [2, 32], strides = [1, 1]} : vector<2x128xf32> to vector<2x32xf32>
    %1221 = math.tanh %1220 : vector<2x32xf32>
    %1222 = vector.extract_strided_slice %1204 {offsets = [0, 96], sizes = [2, 32], strides = [1, 1]} : vector<2x128xf32> to vector<2x32xf32>
    %1223 = arith.negf %1222 : vector<2x32xf32>
    %1224 = math.exp %1223 : vector<2x32xf32>
    %cst_284 = arith.constant 1.000000e+00 : f32
    %1225 = vector.broadcast %cst_284 : f32 to vector<2x32xf32>
    %1226 = arith.addf %1225, %1224 : vector<2x32xf32>
    %1227 = arith.divf %1225, %1226 : vector<2x32xf32>
    %1228 = arith.mulf %1219, %1172 : vector<2x32xf32>
    %1229 = arith.mulf %1213, %1221 : vector<2x32xf32>
    %1230 = arith.addf %1228, %1229 : vector<2x32xf32>
    %1231 = math.tanh %1230 : vector<2x32xf32>
    %1232 = arith.mulf %1227, %1231 : vector<2x32xf32>
    %1233 = vector.extract_strided_slice %1207 {offsets = [0, 0], sizes = [2, 32], strides = [1, 1]} : vector<2x128xf32> to vector<2x32xf32>
    %1234 = arith.negf %1233 : vector<2x32xf32>
    %1235 = math.exp %1234 : vector<2x32xf32>
    %cst_285 = arith.constant 1.000000e+00 : f32
    %1236 = vector.broadcast %cst_285 : f32 to vector<2x32xf32>
    %1237 = arith.addf %1236, %1235 : vector<2x32xf32>
    %1238 = arith.divf %1236, %1237 : vector<2x32xf32>
    %1239 = vector.extract_strided_slice %1207 {offsets = [0, 32], sizes = [2, 32], strides = [1, 1]} : vector<2x128xf32> to vector<2x32xf32>
    %1240 = arith.negf %1239 : vector<2x32xf32>
    %1241 = math.exp %1240 : vector<2x32xf32>
    %cst_286 = arith.constant 1.000000e+00 : f32
    %1242 = vector.broadcast %cst_286 : f32 to vector<2x32xf32>
    %1243 = arith.addf %1242, %1241 : vector<2x32xf32>
    %1244 = arith.divf %1242, %1243 : vector<2x32xf32>
    %1245 = vector.extract_strided_slice %1207 {offsets = [0, 64], sizes = [2, 32], strides = [1, 1]} : vector<2x128xf32> to vector<2x32xf32>
    %1246 = math.tanh %1245 : vector<2x32xf32>
    %1247 = vector.extract_strided_slice %1207 {offsets = [0, 96], sizes = [2, 32], strides = [1, 1]} : vector<2x128xf32> to vector<2x32xf32>
    %1248 = arith.negf %1247 : vector<2x32xf32>
    %1249 = math.exp %1248 : vector<2x32xf32>
    %cst_287 = arith.constant 1.000000e+00 : f32
    %1250 = vector.broadcast %cst_287 : f32 to vector<2x32xf32>
    %1251 = arith.addf %1250, %1249 : vector<2x32xf32>
    %1252 = arith.divf %1250, %1251 : vector<2x32xf32>
    %1253 = arith.mulf %1244, %1197 : vector<2x32xf32>
    %1254 = arith.mulf %1238, %1246 : vector<2x32xf32>
    %1255 = arith.addf %1253, %1254 : vector<2x32xf32>
    %1256 = math.tanh %1255 : vector<2x32xf32>
    %1257 = arith.mulf %1252, %1256 : vector<2x32xf32>
    %c8_288 = arith.constant 8 : index
    %c0_289 = arith.constant 0 : index
    %1258 = vector.load %arg13[%c8_288, %c0_289] : memref<16x64xf32, #tpu.memory_space<vmem>>, vector<2x32xf32>
    tpu.vector_store %arg13[%c8_288, %c0_289], %1232 {strides = array<i32>} : memref<16x64xf32, #tpu.memory_space<vmem>>, vector<2x32xf32>,
    %c6_290 = arith.constant 6 : index
    %c32_291 = arith.constant 32 : index
    %1259 = vector.load %arg13[%c6_290, %c32_291] : memref<16x64xf32, #tpu.memory_space<vmem>>, vector<2x32xf32>
    tpu.vector_store %arg13[%c6_290, %c32_291], %1257 {strides = array<i32>} : memref<16x64xf32, #tpu.memory_space<vmem>>, vector<2x32xf32>,
    %1260 = vector.extract_strided_slice %961 {offsets = [10, 0], sizes = [2, 128], strides = [1, 1]} : vector<16x256xf32> to vector<2x128xf32>
    %cst_292 = arith.constant dense<0.000000e+00> : vector<2x128xf32>
    %1261 = tpu.matmul %1232, %963, %cst_292 {dimension_numbers = #tpu.dot_dimension_numbers<[1], [0], [0], [1], [0, 0, 1, 1], [], []>} : vector<2x32xf32>, vector<32x128xf32>, vector<2x128xf32> -> vector<2x128xf32>
    %1262 = arith.addf %1260, %1261 : vector<2x128xf32>
    %1263 = vector.extract_strided_slice %961 {offsets = [4, 128], sizes = [2, 128], strides = [1, 1]} : vector<16x256xf32> to vector<2x128xf32>
    %cst_293 = arith.constant dense<0.000000e+00> : vector<2x128xf32>
    %1264 = tpu.matmul %1257, %965, %cst_293 {dimension_numbers = #tpu.dot_dimension_numbers<[1], [0], [0], [1], [0, 0, 1, 1], [], []>} : vector<2x32xf32>, vector<32x128xf32>, vector<2x128xf32> -> vector<2x128xf32>
    %1265 = arith.addf %1263, %1264 : vector<2x128xf32>
    %1266 = vector.extract_strided_slice %1262 {offsets = [0, 0], sizes = [2, 32], strides = [1, 1]} : vector<2x128xf32> to vector<2x32xf32>
    %1267 = arith.negf %1266 : vector<2x32xf32>
    %1268 = math.exp %1267 : vector<2x32xf32>
    %cst_294 = arith.constant 1.000000e+00 : f32
    %1269 = vector.broadcast %cst_294 : f32 to vector<2x32xf32>
    %1270 = arith.addf %1269, %1268 : vector<2x32xf32>
    %1271 = arith.divf %1269, %1270 : vector<2x32xf32>
    %1272 = vector.extract_strided_slice %1262 {offsets = [0, 32], sizes = [2, 32], strides = [1, 1]} : vector<2x128xf32> to vector<2x32xf32>
    %1273 = arith.negf %1272 : vector<2x32xf32>
    %1274 = math.exp %1273 : vector<2x32xf32>
    %cst_295 = arith.constant 1.000000e+00 : f32
    %1275 = vector.broadcast %cst_295 : f32 to vector<2x32xf32>
    %1276 = arith.addf %1275, %1274 : vector<2x32xf32>
    %1277 = arith.divf %1275, %1276 : vector<2x32xf32>
    %1278 = vector.extract_strided_slice %1262 {offsets = [0, 64], sizes = [2, 32], strides = [1, 1]} : vector<2x128xf32> to vector<2x32xf32>
    %1279 = math.tanh %1278 : vector<2x32xf32>
    %1280 = vector.extract_strided_slice %1262 {offsets = [0, 96], sizes = [2, 32], strides = [1, 1]} : vector<2x128xf32> to vector<2x32xf32>
    %1281 = arith.negf %1280 : vector<2x32xf32>
    %1282 = math.exp %1281 : vector<2x32xf32>
    %cst_296 = arith.constant 1.000000e+00 : f32
    %1283 = vector.broadcast %cst_296 : f32 to vector<2x32xf32>
    %1284 = arith.addf %1283, %1282 : vector<2x32xf32>
    %1285 = arith.divf %1283, %1284 : vector<2x32xf32>
    %1286 = arith.mulf %1277, %1230 : vector<2x32xf32>
    %1287 = arith.mulf %1271, %1279 : vector<2x32xf32>
    %1288 = arith.addf %1286, %1287 : vector<2x32xf32>
    %1289 = math.tanh %1288 : vector<2x32xf32>
    %1290 = arith.mulf %1285, %1289 : vector<2x32xf32>
    %1291 = vector.extract_strided_slice %1265 {offsets = [0, 0], sizes = [2, 32], strides = [1, 1]} : vector<2x128xf32> to vector<2x32xf32>
    %1292 = arith.negf %1291 : vector<2x32xf32>
    %1293 = math.exp %1292 : vector<2x32xf32>
    %cst_297 = arith.constant 1.000000e+00 : f32
    %1294 = vector.broadcast %cst_297 : f32 to vector<2x32xf32>
    %1295 = arith.addf %1294, %1293 : vector<2x32xf32>
    %1296 = arith.divf %1294, %1295 : vector<2x32xf32>
    %1297 = vector.extract_strided_slice %1265 {offsets = [0, 32], sizes = [2, 32], strides = [1, 1]} : vector<2x128xf32> to vector<2x32xf32>
    %1298 = arith.negf %1297 : vector<2x32xf32>
    %1299 = math.exp %1298 : vector<2x32xf32>
    %cst_298 = arith.constant 1.000000e+00 : f32
    %1300 = vector.broadcast %cst_298 : f32 to vector<2x32xf32>
    %1301 = arith.addf %1300, %1299 : vector<2x32xf32>
    %1302 = arith.divf %1300, %1301 : vector<2x32xf32>
    %1303 = vector.extract_strided_slice %1265 {offsets = [0, 64], sizes = [2, 32], strides = [1, 1]} : vector<2x128xf32> to vector<2x32xf32>
    %1304 = math.tanh %1303 : vector<2x32xf32>
    %1305 = vector.extract_strided_slice %1265 {offsets = [0, 96], sizes = [2, 32], strides = [1, 1]} : vector<2x128xf32> to vector<2x32xf32>
    %1306 = arith.negf %1305 : vector<2x32xf32>
    %1307 = math.exp %1306 : vector<2x32xf32>
    %cst_299 = arith.constant 1.000000e+00 : f32
    %1308 = vector.broadcast %cst_299 : f32 to vector<2x32xf32>
    %1309 = arith.addf %1308, %1307 : vector<2x32xf32>
    %1310 = arith.divf %1308, %1309 : vector<2x32xf32>
    %1311 = arith.mulf %1302, %1255 : vector<2x32xf32>
    %1312 = arith.mulf %1296, %1304 : vector<2x32xf32>
    %1313 = arith.addf %1311, %1312 : vector<2x32xf32>
    %1314 = math.tanh %1313 : vector<2x32xf32>
    %1315 = arith.mulf %1310, %1314 : vector<2x32xf32>
    %c10_300 = arith.constant 10 : index
    %c0_301 = arith.constant 0 : index
    %1316 = vector.load %arg13[%c10_300, %c0_301] : memref<16x64xf32, #tpu.memory_space<vmem>>, vector<2x32xf32>
    tpu.vector_store %arg13[%c10_300, %c0_301], %1290 {strides = array<i32>} : memref<16x64xf32, #tpu.memory_space<vmem>>, vector<2x32xf32>,
    %c4_302 = arith.constant 4 : index
    %c32_303 = arith.constant 32 : index
    %1317 = vector.load %arg13[%c4_302, %c32_303] : memref<16x64xf32, #tpu.memory_space<vmem>>, vector<2x32xf32>
    tpu.vector_store %arg13[%c4_302, %c32_303], %1315 {strides = array<i32>} : memref<16x64xf32, #tpu.memory_space<vmem>>, vector<2x32xf32>,
    %1318 = vector.extract_strided_slice %961 {offsets = [12, 0], sizes = [2, 128], strides = [1, 1]} : vector<16x256xf32> to vector<2x128xf32>
    %cst_304 = arith.constant dense<0.000000e+00> : vector<2x128xf32>
    %1319 = tpu.matmul %1290, %963, %cst_304 {dimension_numbers = #tpu.dot_dimension_numbers<[1], [0], [0], [1], [0, 0, 1, 1], [], []>} : vector<2x32xf32>, vector<32x128xf32>, vector<2x128xf32> -> vector<2x128xf32>
    %1320 = arith.addf %1318, %1319 : vector<2x128xf32>
    %1321 = vector.extract_strided_slice %961 {offsets = [2, 128], sizes = [2, 128], strides = [1, 1]} : vector<16x256xf32> to vector<2x128xf32>
    %cst_305 = arith.constant dense<0.000000e+00> : vector<2x128xf32>
    %1322 = tpu.matmul %1315, %965, %cst_305 {dimension_numbers = #tpu.dot_dimension_numbers<[1], [0], [0], [1], [0, 0, 1, 1], [], []>} : vector<2x32xf32>, vector<32x128xf32>, vector<2x128xf32> -> vector<2x128xf32>
    %1323 = arith.addf %1321, %1322 : vector<2x128xf32>
    %1324 = vector.extract_strided_slice %1320 {offsets = [0, 0], sizes = [2, 32], strides = [1, 1]} : vector<2x128xf32> to vector<2x32xf32>
    %1325 = arith.negf %1324 : vector<2x32xf32>
    %1326 = math.exp %1325 : vector<2x32xf32>
    %cst_306 = arith.constant 1.000000e+00 : f32
    %1327 = vector.broadcast %cst_306 : f32 to vector<2x32xf32>
    %1328 = arith.addf %1327, %1326 : vector<2x32xf32>
    %1329 = arith.divf %1327, %1328 : vector<2x32xf32>
    %1330 = vector.extract_strided_slice %1320 {offsets = [0, 32], sizes = [2, 32], strides = [1, 1]} : vector<2x128xf32> to vector<2x32xf32>
    %1331 = arith.negf %1330 : vector<2x32xf32>
    %1332 = math.exp %1331 : vector<2x32xf32>
    %cst_307 = arith.constant 1.000000e+00 : f32
    %1333 = vector.broadcast %cst_307 : f32 to vector<2x32xf32>
    %1334 = arith.addf %1333, %1332 : vector<2x32xf32>
    %1335 = arith.divf %1333, %1334 : vector<2x32xf32>
    %1336 = vector.extract_strided_slice %1320 {offsets = [0, 64], sizes = [2, 32], strides = [1, 1]} : vector<2x128xf32> to vector<2x32xf32>
    %1337 = math.tanh %1336 : vector<2x32xf32>
    %1338 = vector.extract_strided_slice %1320 {offsets = [0, 96], sizes = [2, 32], strides = [1, 1]} : vector<2x128xf32> to vector<2x32xf32>
    %1339 = arith.negf %1338 : vector<2x32xf32>
    %1340 = math.exp %1339 : vector<2x32xf32>
    %cst_308 = arith.constant 1.000000e+00 : f32
    %1341 = vector.broadcast %cst_308 : f32 to vector<2x32xf32>
    %1342 = arith.addf %1341, %1340 : vector<2x32xf32>
    %1343 = arith.divf %1341, %1342 : vector<2x32xf32>
    %1344 = arith.mulf %1335, %1288 : vector<2x32xf32>
    %1345 = arith.mulf %1329, %1337 : vector<2x32xf32>
    %1346 = arith.addf %1344, %1345 : vector<2x32xf32>
    %1347 = math.tanh %1346 : vector<2x32xf32>
    %1348 = arith.mulf %1343, %1347 : vector<2x32xf32>
    %1349 = vector.extract_strided_slice %1323 {offsets = [0, 0], sizes = [2, 32], strides = [1, 1]} : vector<2x128xf32> to vector<2x32xf32>
    %1350 = arith.negf %1349 : vector<2x32xf32>
    %1351 = math.exp %1350 : vector<2x32xf32>
    %cst_309 = arith.constant 1.000000e+00 : f32
    %1352 = vector.broadcast %cst_309 : f32 to vector<2x32xf32>
    %1353 = arith.addf %1352, %1351 : vector<2x32xf32>
    %1354 = arith.divf %1352, %1353 : vector<2x32xf32>
    %1355 = vector.extract_strided_slice %1323 {offsets = [0, 32], sizes = [2, 32], strides = [1, 1]} : vector<2x128xf32> to vector<2x32xf32>
    %1356 = arith.negf %1355 : vector<2x32xf32>
    %1357 = math.exp %1356 : vector<2x32xf32>
    %cst_310 = arith.constant 1.000000e+00 : f32
    %1358 = vector.broadcast %cst_310 : f32 to vector<2x32xf32>
    %1359 = arith.addf %1358, %1357 : vector<2x32xf32>
    %1360 = arith.divf %1358, %1359 : vector<2x32xf32>
    %1361 = vector.extract_strided_slice %1323 {offsets = [0, 64], sizes = [2, 32], strides = [1, 1]} : vector<2x128xf32> to vector<2x32xf32>
    %1362 = math.tanh %1361 : vector<2x32xf32>
    %1363 = vector.extract_strided_slice %1323 {offsets = [0, 96], sizes = [2, 32], strides = [1, 1]} : vector<2x128xf32> to vector<2x32xf32>
    %1364 = arith.negf %1363 : vector<2x32xf32>
    %1365 = math.exp %1364 : vector<2x32xf32>
    %cst_311 = arith.constant 1.000000e+00 : f32
    %1366 = vector.broadcast %cst_311 : f32 to vector<2x32xf32>
    %1367 = arith.addf %1366, %1365 : vector<2x32xf32>
    %1368 = arith.divf %1366, %1367 : vector<2x32xf32>
    %1369 = arith.mulf %1360, %1313 : vector<2x32xf32>
    %1370 = arith.mulf %1354, %1362 : vector<2x32xf32>
    %1371 = arith.addf %1369, %1370 : vector<2x32xf32>
    %1372 = math.tanh %1371 : vector<2x32xf32>
    %1373 = arith.mulf %1368, %1372 : vector<2x32xf32>
    %c12_312 = arith.constant 12 : index
    %c0_313 = arith.constant 0 : index
    %1374 = vector.load %arg13[%c12_312, %c0_313] : memref<16x64xf32, #tpu.memory_space<vmem>>, vector<2x32xf32>
    tpu.vector_store %arg13[%c12_312, %c0_313], %1348 {strides = array<i32>} : memref<16x64xf32, #tpu.memory_space<vmem>>, vector<2x32xf32>,
    %c2_314 = arith.constant 2 : index
    %c32_315 = arith.constant 32 : index
    %1375 = vector.load %arg13[%c2_314, %c32_315] : memref<16x64xf32, #tpu.memory_space<vmem>>, vector<2x32xf32>
    tpu.vector_store %arg13[%c2_314, %c32_315], %1373 {strides = array<i32>} : memref<16x64xf32, #tpu.memory_space<vmem>>, vector<2x32xf32>,
    %1376 = vector.extract_strided_slice %961 {offsets = [14, 0], sizes = [2, 128], strides = [1, 1]} : vector<16x256xf32> to vector<2x128xf32>
    %cst_316 = arith.constant dense<0.000000e+00> : vector<2x128xf32>
    %1377 = tpu.matmul %1348, %963, %cst_316 {dimension_numbers = #tpu.dot_dimension_numbers<[1], [0], [0], [1], [0, 0, 1, 1], [], []>} : vector<2x32xf32>, vector<32x128xf32>, vector<2x128xf32> -> vector<2x128xf32>
    %1378 = arith.addf %1376, %1377 : vector<2x128xf32>
    %1379 = vector.extract_strided_slice %961 {offsets = [0, 128], sizes = [2, 128], strides = [1, 1]} : vector<16x256xf32> to vector<2x128xf32>
    %cst_317 = arith.constant dense<0.000000e+00> : vector<2x128xf32>
    %1380 = tpu.matmul %1373, %965, %cst_317 {dimension_numbers = #tpu.dot_dimension_numbers<[1], [0], [0], [1], [0, 0, 1, 1], [], []>} : vector<2x32xf32>, vector<32x128xf32>, vector<2x128xf32> -> vector<2x128xf32>
    %1381 = arith.addf %1379, %1380 : vector<2x128xf32>
    %1382 = vector.extract_strided_slice %1378 {offsets = [0, 0], sizes = [2, 32], strides = [1, 1]} : vector<2x128xf32> to vector<2x32xf32>
    %1383 = arith.negf %1382 : vector<2x32xf32>
    %1384 = math.exp %1383 : vector<2x32xf32>
    %cst_318 = arith.constant 1.000000e+00 : f32
    %1385 = vector.broadcast %cst_318 : f32 to vector<2x32xf32>
    %1386 = arith.addf %1385, %1384 : vector<2x32xf32>
    %1387 = arith.divf %1385, %1386 : vector<2x32xf32>
    %1388 = vector.extract_strided_slice %1378 {offsets = [0, 32], sizes = [2, 32], strides = [1, 1]} : vector<2x128xf32> to vector<2x32xf32>
    %1389 = arith.negf %1388 : vector<2x32xf32>
    %1390 = math.exp %1389 : vector<2x32xf32>
    %cst_319 = arith.constant 1.000000e+00 : f32
    %1391 = vector.broadcast %cst_319 : f32 to vector<2x32xf32>
    %1392 = arith.addf %1391, %1390 : vector<2x32xf32>
    %1393 = arith.divf %1391, %1392 : vector<2x32xf32>
    %1394 = vector.extract_strided_slice %1378 {offsets = [0, 64], sizes = [2, 32], strides = [1, 1]} : vector<2x128xf32> to vector<2x32xf32>
    %1395 = math.tanh %1394 : vector<2x32xf32>
    %1396 = vector.extract_strided_slice %1378 {offsets = [0, 96], sizes = [2, 32], strides = [1, 1]} : vector<2x128xf32> to vector<2x32xf32>
    %1397 = arith.negf %1396 : vector<2x32xf32>
    %1398 = math.exp %1397 : vector<2x32xf32>
    %cst_320 = arith.constant 1.000000e+00 : f32
    %1399 = vector.broadcast %cst_320 : f32 to vector<2x32xf32>
    %1400 = arith.addf %1399, %1398 : vector<2x32xf32>
    %1401 = arith.divf %1399, %1400 : vector<2x32xf32>
    %1402 = arith.mulf %1393, %1346 : vector<2x32xf32>
    %1403 = arith.mulf %1387, %1395 : vector<2x32xf32>
    %1404 = arith.addf %1402, %1403 : vector<2x32xf32>
    %1405 = math.tanh %1404 : vector<2x32xf32>
    %1406 = arith.mulf %1401, %1405 : vector<2x32xf32>
    %1407 = vector.extract_strided_slice %1381 {offsets = [0, 0], sizes = [2, 32], strides = [1, 1]} : vector<2x128xf32> to vector<2x32xf32>
    %1408 = arith.negf %1407 : vector<2x32xf32>
    %1409 = math.exp %1408 : vector<2x32xf32>
    %cst_321 = arith.constant 1.000000e+00 : f32
    %1410 = vector.broadcast %cst_321 : f32 to vector<2x32xf32>
    %1411 = arith.addf %1410, %1409 : vector<2x32xf32>
    %1412 = arith.divf %1410, %1411 : vector<2x32xf32>
    %1413 = vector.extract_strided_slice %1381 {offsets = [0, 32], sizes = [2, 32], strides = [1, 1]} : vector<2x128xf32> to vector<2x32xf32>
    %1414 = arith.negf %1413 : vector<2x32xf32>
    %1415 = math.exp %1414 : vector<2x32xf32>
    %cst_322 = arith.constant 1.000000e+00 : f32
    %1416 = vector.broadcast %cst_322 : f32 to vector<2x32xf32>
    %1417 = arith.addf %1416, %1415 : vector<2x32xf32>
    %1418 = arith.divf %1416, %1417 : vector<2x32xf32>
    %1419 = vector.extract_strided_slice %1381 {offsets = [0, 64], sizes = [2, 32], strides = [1, 1]} : vector<2x128xf32> to vector<2x32xf32>
    %1420 = math.tanh %1419 : vector<2x32xf32>
    %1421 = vector.extract_strided_slice %1381 {offsets = [0, 96], sizes = [2, 32], strides = [1, 1]} : vector<2x128xf32> to vector<2x32xf32>
    %1422 = arith.negf %1421 : vector<2x32xf32>
    %1423 = math.exp %1422 : vector<2x32xf32>
    %cst_323 = arith.constant 1.000000e+00 : f32
    %1424 = vector.broadcast %cst_323 : f32 to vector<2x32xf32>
    %1425 = arith.addf %1424, %1423 : vector<2x32xf32>
    %1426 = arith.divf %1424, %1425 : vector<2x32xf32>
    %1427 = arith.mulf %1418, %1371 : vector<2x32xf32>
    %1428 = arith.mulf %1412, %1420 : vector<2x32xf32>
    %1429 = arith.addf %1427, %1428 : vector<2x32xf32>
    %1430 = math.tanh %1429 : vector<2x32xf32>
    %1431 = arith.mulf %1426, %1430 : vector<2x32xf32>
    %c14_324 = arith.constant 14 : index
    %c0_325 = arith.constant 0 : index
    %1432 = vector.load %arg13[%c14_324, %c0_325] : memref<16x64xf32, #tpu.memory_space<vmem>>, vector<2x32xf32>
    tpu.vector_store %arg13[%c14_324, %c0_325], %1406 {strides = array<i32>} : memref<16x64xf32, #tpu.memory_space<vmem>>, vector<2x32xf32>,
    %c0_326 = arith.constant 0 : index
    %c32_327 = arith.constant 32 : index
    %1433 = vector.load %arg13[%c0_326, %c32_327] : memref<16x64xf32, #tpu.memory_space<vmem>>, vector<2x32xf32>
    tpu.vector_store %arg13[%c0_326, %c32_327], %1431 {strides = array<i32>} : memref<16x64xf32, #tpu.memory_space<vmem>>, vector<2x32xf32>,
    %c0_328 = arith.constant 0 : index
    %c0_329 = arith.constant 0 : index
    %1434 = vector.load %arg13[%c0_328, %c0_329] : memref<16x64xf32, #tpu.memory_space<vmem>>, vector<16x64xf32>
    %c0_330 = arith.constant 0 : index
    %c0_331 = arith.constant 0 : index
    %1435 = vector.load %arg10[%c0_330, %c0_331] : memref<64x12xf32, #tpu.memory_space<vmem>>, vector<64x12xf32>
    %cst_332 = arith.constant dense<0.000000e+00> : vector<16x12xf32>
    %1436 = tpu.matmul %1434, %1435, %cst_332 {dimension_numbers = #tpu.dot_dimension_numbers<[1], [0], [0], [1], [0, 0, 1, 1], [], []>} : vector<16x64xf32>, vector<64x12xf32>, vector<16x12xf32> -> vector<16x12xf32>
    %c0_333 = arith.constant 0 : index
    %c0_334 = arith.constant 0 : index
    %1437 = vector.load %arg11[%c0_333, %c0_334] : memref<1x12xf32, #tpu.memory_space<vmem>>, vector<1x12xf32>
    %1438 = vector.broadcast %1437 : vector<1x12xf32> to vector<16x12xf32>
    %1439 = arith.addf %1436, %1438 : vector<16x12xf32>
    %c0_335 = arith.constant 0 : index
    %c0_336 = arith.constant 0 : index
    %1440 = vector.load %arg12[%c0_335, %c0_336] : memref<16x12xf32, #tpu.memory_space<vmem>>, vector<16x12xf32>
    tpu.vector_store %arg12[%c0_335, %c0_336], %1439 {strides = array<i32>} : memref<16x12xf32, #tpu.memory_space<vmem>>, vector<16x12xf32>,
    return
  }
}

</mosaic_0001>

<llo_original>
// kernel: tpu_custom_call.1
$region0: #{tpu_custom_call.1}
  #allocation0 [shape = 'u32[]', space=smem, size = 0x4, offset = 0x4, fixed_abs, tag = 'smem constant byte address 0x4 - core index']
  #allocation1 [shape = 'u32[72,128]{1,0:T(1,128)}', space=vmem, size = 0x9000, scoped, tag = 'internal scratch']
  #allocation2 [shape = 'f32[16,64]{1,0:T(8,128)}', space=vmem, size = 0x2000, scoped, tag = 'scratch operand']
  %s0 = inlined_call_operand.vmem [shape: f32[16,16], index: 0, kind: input, shape index: {}]
  %s1 = inlined_call_operand.hbm [shape: f32[16,256], index: 1, kind: input, shape index: {}]
  %s2 = inlined_call_operand.vmem [shape: f32[1,256], index: 2, kind: input, shape index: {}]
  %s3 = inlined_call_operand.vmem [shape: f32[2,32,128], index: 3, kind: input, shape index: {}]
  %s4 = inlined_call_operand.hbm [shape: f32[64,256], index: 4, kind: input, shape index: {}]
  %s5 = inlined_call_operand.vmem [shape: f32[1,256], index: 5, kind: input, shape index: {}]
  %s6 = inlined_call_operand.hbm [shape: f32[2,32,128], index: 6, kind: input, shape index: {}]
  %s7 = inlined_call_operand.hbm [shape: f32[64,256], index: 7, kind: input, shape index: {}]
  %s8 = inlined_call_operand.vmem [shape: f32[1,256], index: 8, kind: input, shape index: {}]
  %s9 = inlined_call_operand.hbm [shape: f32[2,32,128], index: 9, kind: input, shape index: {}]
  %s10 = inlined_call_operand.vmem [shape: f32[64,12], index: 10, kind: input, shape index: {}]
  %s11 = inlined_call_operand.vmem [shape: f32[1,12], index: 11, kind: input, shape index: {}]
  %s12 = inlined_call_operand.hbm [shape: f32[16,12], index: 12, kind: output, shape index: {}]
  %s13 = sld [smem:[#allocation0]]
  $region78: #{tpu_custom_call.1} parent=0
    _
  %s15 = ssub.s32 1, %s13
  %s16 = scalar_select 0, %s15, %s13
  $region1: #{tpu_custom_call.1} parent=0
    #allocation3 [shape = 'u8[16384]{0}', space=vmem, size = 0x4000, scoped, tag = 'input window, operand 1, single buffered']
    #allocation4 [shape = 's32[1]{0}', space=sflag, size = 0x4, scoped, tag = 'scoped memory for tpu_custom_call.1']
    #allocation5 [shape = 's32[1]{0}', space=sflag, size = 0x4, scoped, tag = 'scoped memory for tpu_custom_call.1']
    #allocation6 [shape = 'u8[65536]{0}', space=vmem, size = 0x10000, scoped, tag = 'input window, operand 4, single buffered']
    #allocation7 [shape = 's32[1]{0}', space=sflag, size = 0x4, scoped, tag = 'scoped memory for tpu_custom_call.1']
    #allocation8 [shape = 'u8[32768]{0}', space=vmem, size = 0x8000, scoped, tag = 'input window, operand 6, single buffered']
    #allocation9 [shape = 'u8[65536]{0}', space=vmem, size = 0x10000, scoped, tag = 'input window, operand 7, single buffered']
    #allocation10 [shape = 's32[1]{0}', space=sflag, size = 0x4, scoped, tag = 'scoped memory for tpu_custom_call.1']
    #allocation11 [shape = 'u8[32768]{0}', space=vmem, size = 0x8000, scoped, tag = 'input window, operand 9, single buffered']
    #allocation12 [shape = 'u8[8192]{0}', space=vmem, size = 0x2000, scoped, tag = 'output window, operand 0, single buffered']
    %17 = vsyncpa [#allocation4], 0
    %18 = vsyncpa [#allocation7], 0
    %19 = vsyncpa [#allocation10], 0
    %20 = vsyncpa [#allocation5], 0
    // Predicated region
    $region2: #{tpu_custom_call.1} parent=1 // pred_check
      _
    $region3: #{tpu_custom_call.1} parent=1 // pred_check_branch
      %22 = sbr.rel (0) target = $region5
    $region4: #{tpu_custom_call.1} parent=1 // pred_region
      _
    $region5: #{tpu_custom_call.1} parent=1 // pred_fallthru
      _
    // Predicated region
    $region6: #{tpu_custom_call.1} parent=1 // pred_check
      _
    $region7: #{tpu_custom_call.1} parent=1 // pred_check_branch
      %24 = sbr.rel (0) target = $region9
    $region8: #{tpu_custom_call.1} parent=1 // pred_region
      %26 = vsyncadd [#allocation4], 0
      %s27 = sshll.u32 %s1, 4
      %s28 = int_to_ptr.hbm [resolvable:$true] %s27
      %s29 = sshll.u32 [#allocation3], 4
      %s30 = int_to_ptr.vmem [resolvable:$true] %s29
      %35 = dma.hbm_to_vmem [thread:$0]  %s28, 512, %s30, [#allocation4], 256, 256, 16
    $region9: #{tpu_custom_call.1} parent=1 // pred_fallthru
      _
    // Predicated region
    $region10: #{tpu_custom_call.1} parent=1 // pred_check
      _
    $region11: #{tpu_custom_call.1} parent=1 // pred_check_branch
      %37 = sbr.rel (0) target = $region13
    $region12: #{tpu_custom_call.1} parent=1 // pred_region
      _
    $region13: #{tpu_custom_call.1} parent=1 // pred_fallthru
      _
    // Predicated region
    $region14: #{tpu_custom_call.1} parent=1 // pred_check
      _
    $region15: #{tpu_custom_call.1} parent=1 // pred_check_branch
      %39 = sbr.rel (0) target = $region17
    $region16: #{tpu_custom_call.1} parent=1 // pred_region
      _
    $region17: #{tpu_custom_call.1} parent=1 // pred_fallthru
      _
    // Predicated region
    $region18: #{tpu_custom_call.1} parent=1 // pred_check
      _
    $region19: #{tpu_custom_call.1} parent=1 // pred_check_branch
      %41 = sbr.rel (0) target = $region21
    $region20: #{tpu_custom_call.1} parent=1 // pred_region
      %43 = vsyncadd [#allocation7], 0
      %s44 = sshll.u32 %s4, 4
      %s45 = int_to_ptr.hbm [resolvable:$true] %s44
      %s46 = sshll.u32 [#allocation6], 4
      %s47 = int_to_ptr.vmem [resolvable:$true] %s46
      %52 = dma.hbm_to_vmem [thread:$0]  %s45, 2048, %s47, [#allocation7], 256, 256, 16
    $region21: #{tpu_custom_call.1} parent=1 // pred_fallthru
      _
    // Predicated region
    $region22: #{tpu_custom_call.1} parent=1 // pred_check
      _
    $region23: #{tpu_custom_call.1} parent=1 // pred_check_branch
      %54 = sbr.rel (0) target = $region25
    $region24: #{tpu_custom_call.1} parent=1 // pred_region
      _
    $region25: #{tpu_custom_call.1} parent=1 // pred_fallthru
      _
    // Predicated region
    $region26: #{tpu_custom_call.1} parent=1 // pred_check
      _
    $region27: #{tpu_custom_call.1} parent=1 // pred_check_branch
      %56 = sbr.rel (0) target = $region29
    $region28: #{tpu_custom_call.1} parent=1 // pred_region
      %58 = vsyncadd [#allocation7], 0
      %s59 = sshll.u32 %s6, 4
      %s60 = int_to_ptr.hbm [resolvable:$true] %s59
      %s61 = sshll.u32 [#allocation8], 4
      %s62 = int_to_ptr.vmem [resolvable:$true] %s61
      %67 = dma.hbm_to_vmem [thread:$0]  %s60, 1024, %s62, [#allocation7], 128, 128, 8
    $region29: #{tpu_custom_call.1} parent=1 // pred_fallthru
      _
    // Predicated region
    $region30: #{tpu_custom_call.1} parent=1 // pred_check
      _
    $region31: #{tpu_custom_call.1} parent=1 // pred_check_branch
      %69 = sbr.rel (0) target = $region33
    $region32: #{tpu_custom_call.1} parent=1 // pred_region
      %71 = vsyncadd [#allocation10], 0
      %s72 = sshll.u32 %s7, 4
      %s73 = int_to_ptr.hbm [resolvable:$true] %s72
      %s74 = sshll.u32 [#allocation9], 4
      %s75 = int_to_ptr.vmem [resolvable:$true] %s74
      %80 = dma.hbm_to_vmem [thread:$0]  %s73, 2048, %s75, [#allocation10], 256, 256, 16
    $region33: #{tpu_custom_call.1} parent=1 // pred_fallthru
      _
    // Predicated region
    $region34: #{tpu_custom_call.1} parent=1 // pred_check
      _
    $region35: #{tpu_custom_call.1} parent=1 // pred_check_branch
      %82 = sbr.rel (0) target = $region37
    $region36: #{tpu_custom_call.1} parent=1 // pred_region
      _
    $region37: #{tpu_custom_call.1} parent=1 // pred_fallthru
      _
    // Predicated region
    $region38: #{tpu_custom_call.1} parent=1 // pred_check
      _
    $region39: #{tpu_custom_call.1} parent=1 // pred_check_branch
      %84 = sbr.rel (0) target = $region41
    $region40: #{tpu_custom_call.1} parent=1 // pred_region
      %86 = vsyncadd [#allocation10], 0
      %s87 = sshll.u32 %s9, 4
      %s88 = int_to_ptr.hbm [resolvable:$true] %s87
      %s89 = sshll.u32 [#allocation11], 4
      %s90 = int_to_ptr.vmem [resolvable:$true] %s89
      %95 = dma.hbm_to_vmem [thread:$0]  %s88, 1024, %s90, [#allocation10], 128, 128, 8
    $region41: #{tpu_custom_call.1} parent=1 // pred_fallthru
      _
    // Predicated region
    $region42: #{tpu_custom_call.1} parent=1 // pred_check
      _
    $region43: #{tpu_custom_call.1} parent=1 // pred_check_branch
      %97 = sbr.rel (0) target = $region45
    $region44: #{tpu_custom_call.1} parent=1 // pred_region
      _
    $region45: #{tpu_custom_call.1} parent=1 // pred_fallthru
      _
    // Predicated region
    $region46: #{tpu_custom_call.1} parent=1 // pred_check
      _
    $region47: #{tpu_custom_call.1} parent=1 // pred_check_branch
      %99 = sbr.rel (0) target = $region49
    $region48: #{tpu_custom_call.1} parent=1 // pred_region
      _
    $region49: #{tpu_custom_call.1} parent=1 // pred_fallthru
      _
    // Predicated region
    $region50: #{tpu_custom_call.1} parent=1 // pred_check
      _
    $region51: #{tpu_custom_call.1} parent=1 // pred_check_branch
      %101 = sbr.rel (0) target = $region53
    $region52: #{tpu_custom_call.1} parent=1 // pred_region
      %103 = dma.done [#allocation4], 512
    $region53: #{tpu_custom_call.1} parent=1 // pred_fallthru
      _
    // Predicated region
    $region54: #{tpu_custom_call.1} parent=1 // pred_check
      _
    $region55: #{tpu_custom_call.1} parent=1 // pred_check_branch
      %105 = sbr.rel (0) target = $region57
    $region56: #{tpu_custom_call.1} parent=1 // pred_region
      %107 = dma.done [#allocation7], 2048
    $region57: #{tpu_custom_call.1} parent=1 // pred_fallthru
      _
    // Predicated region
    $region58: #{tpu_custom_call.1} parent=1 // pred_check
      _
    $region59: #{tpu_custom_call.1} parent=1 // pred_check_branch
      %109 = sbr.rel (0) target = $region61
    $region60: #{tpu_custom_call.1} parent=1 // pred_region
      %111 = dma.done [#allocation7], 1024
    $region61: #{tpu_custom_call.1} parent=1 // pred_fallthru
      _
    // Predicated region
    $region62: #{tpu_custom_call.1} parent=1 // pred_check
      _
    $region63: #{tpu_custom_call.1} parent=1 // pred_check_branch
      %113 = sbr.rel (0) target = $region65
    $region64: #{tpu_custom_call.1} parent=1 // pred_region
      %115 = dma.done [#allocation10], 2048
    $region65: #{tpu_custom_call.1} parent=1 // pred_fallthru
      _
    // Predicated region
    $region66: #{tpu_custom_call.1} parent=1 // pred_check
      _
    $region67: #{tpu_custom_call.1} parent=1 // pred_check_branch
      %117 = sbr.rel (0) target = $region69
    $region68: #{tpu_custom_call.1} parent=1 // pred_region
      %119 = dma.done [#allocation10], 1024
    $region69: #{tpu_custom_call.1} parent=1 // pred_fallthru
      _
    %v120 = vld [vmem:[%s0] sm:$0xff]
    %v121 = vld [vmem:[%s0 + $0x8] sm:$0xff]
    %v122 = vld [vmem:[#allocation3] sm:$0xff]
    %v123 = vld [vmem:[#allocation3 + $0x8] sm:$0xff]
    %v124 = vld [vmem:[#allocation3 + $0x10] sm:$0xff]
    %v125 = vld [vmem:[#allocation3 + $0x18] sm:$0xff]
    %v126 = vld [vmem:[%s2] sm:$0x3]
    %v128 = vperm.slane %v126, 0
    %v129 = vperm.slane %v126, 1
    %vm132 = vcmask 130048
    %v134 = vsel %vm132, %v120, 0
    %v137 = vsel %vm132, %v121, 0
    %139 = vmatpush.msra.mxu0 0.0
    %140 = vmatpush.msra.mxu0 0.0
    %141 = vmatpush.msra.mxu0 0.0
    %142 = vmatpush.msra.mxu0 0.0
    %143 = vmatpush.msra.mxu0 0.0
    %144 = vmatpush.msra.mxu0 0.0
    %145 = vmatpush.msra.mxu0 0.0
    %146 = vmatpush.msra.mxu0 0.0
    %147 = vmatpush.msra.mxu0 0.0
    %148 = vmatpush.msra.mxu0 0.0
    %149 = vmatpush.msra.mxu0 0.0
    %150 = vmatpush.msra.mxu0 0.0
    %151 = vmatpush.msra.mxu0 0.0
    %152 = vmatpush.msra.mxu0 0.0
    %153 = vmatpush.msra.mxu0 %v124
    %154 = vmatpush.msra.mxu0 %v122
    %155 = vmatmul.f32.gmra.mxu0 %v134
    %v156 = vpop.f32.mrf.mxu0
    %v157 = vadd.f32 %v128, %v156
    %158 = vmatmul.f32.gmra.mxu0 %v137
    %v159 = vpop.f32.mrf.mxu0
    %v160 = vadd.f32 %v128, %v159
    %161 = vdwg.mxu0
    %162 = vmatpush.msra.mxu0 0.0
    %163 = vmatpush.msra.mxu0 0.0
    %164 = vmatpush.msra.mxu0 0.0
    %165 = vmatpush.msra.mxu0 0.0
    %166 = vmatpush.msra.mxu0 0.0
    %167 = vmatpush.msra.mxu0 0.0
    %168 = vmatpush.msra.mxu0 0.0
    %169 = vmatpush.msra.mxu0 0.0
    %170 = vmatpush.msra.mxu0 0.0
    %171 = vmatpush.msra.mxu0 0.0
    %172 = vmatpush.msra.mxu0 0.0
    %173 = vmatpush.msra.mxu0 0.0
    %174 = vmatpush.msra.mxu0 0.0
    %175 = vmatpush.msra.mxu0 0.0
    %176 = vmatpush.msra.mxu0 %v125
    %177 = vmatpush.msra.mxu0 %v123
    %178 = vmatmul.f32.gmra.mxu0 %v134
    %v179 = vpop.f32.mrf.mxu0
    %v180 = vadd.f32 %v129, %v179
    %181 = vmatmul.f32.gmra.mxu0 %v137
    %v182 = vpop.f32.mrf.mxu0
    %v183 = vadd.f32 %v129, %v182
    %184 = vdwg.mxu0
    %v185 = vld [vmem:[%s3] sm:$0xff]
    %v186 = vld [vmem:[%s3 + $0x8] sm:$0xff]
    %v187 = vld [vmem:[%s3 + $0x10] sm:$0xff]
    %v188 = vld [vmem:[%s3 + $0x18] sm:$0xff]
    %s189 = scalar_lea.vmem %s3, 32
    %v190 = vld [vmem:[%s189] sm:$0xff]
    %v191 = vld [vmem:[%s189 + $0x8] sm:$0xff]
    %v192 = vld [vmem:[%s189 + $0x10] sm:$0xff]
    %v193 = vld [vmem:[%s189 + $0x18] sm:$0xff]
    %vm194 = vcmask 261120
    %v196 = vsel %vm194, 0.0, 0
    %198 = vmatpush.msra.mxu0 0.0
    %199 = vmatpush.msra.mxu0 0.0
    %200 = vmatpush.msra.mxu0 0.0
    %201 = vmatpush.msra.mxu0 0.0
    %202 = vmatpush.msra.mxu0 0.0
    %203 = vmatpush.msra.mxu0 0.0
    %204 = vmatpush.msra.mxu0 0.0
    %205 = vmatpush.msra.mxu0 0.0
    %206 = vmatpush.msra.mxu0 0.0
    %207 = vmatpush.msra.mxu0 0.0
    %208 = vmatpush.msra.mxu0 0.0
    %209 = vmatpush.msra.mxu0 0.0
    %210 = vmatpush.msra.mxu0 %v188
    %211 = vmatpush.msra.mxu0 %v187
    %212 = vmatpush.msra.mxu0 %v186
    %213 = vmatpush.msra.mxu0 %v185
    %214 = vmatmul.f32.gmra.mxu0 %v196
    %v215 = vpop.f32.mrf.mxu0
    %v216 = vadd.f32 0.0, %v215
    %217 = vdwg.mxu0
    %v218 = vadd.f32 %v157, %v216
    %219 = vmatpush.msra.mxu0 0.0
    %220 = vmatpush.msra.mxu0 0.0
    %221 = vmatpush.msra.mxu0 0.0
    %222 = vmatpush.msra.mxu0 0.0
    %223 = vmatpush.msra.mxu0 0.0
    %224 = vmatpush.msra.mxu0 0.0
    %225 = vmatpush.msra.mxu0 0.0
    %226 = vmatpush.msra.mxu0 0.0
    %227 = vmatpush.msra.mxu0 0.0
    %228 = vmatpush.msra.mxu0 0.0
    %229 = vmatpush.msra.mxu0 0.0
    %230 = vmatpush.msra.mxu0 0.0
    %231 = vmatpush.msra.mxu0 %v193
    %232 = vmatpush.msra.mxu0 %v192
    %233 = vmatpush.msra.mxu0 %v191
    %234 = vmatpush.msra.mxu0 %v190
    %235 = vmatmul.f32.gmra.mxu0 %v196
    %v236 = vpop.f32.mrf.mxu0
    %v237 = vadd.f32 0.0, %v236
    %238 = vdwg.mxu0
    %v240 = vrot.slane %v237, 2
    %v242 = vadd.f32 %v183, %v240
    %v243 = vxor.u32 %v218, 2147483648
    %v244 = vmul.f32 %v243, 1.442695
    %v245 = vpow.pop %v244
    %v246 = vadd.f32 %v245, 1.0
    %v247 = vrcp.pop %v246
    %v248 = vmul.f32 %v246, %v247
    %v249 = vsub.f32 1.0, %v248
    %v250 = vmul.f32 %v247, %v249
    %v251 = vadd.f32 %v247, %v250
    %vm252 = vweird.f32 %v246
    %vm253 = vweird.f32 %v247
    %vm254 = vmor %vm252, %vm253
    %v255 = vsel %vm254, %v247, %v251
    %v256 = vand.u32 2147483647, %v246
    %vm257 = vcmp.eq.f32.partialorder %v256, 8.507059e+37
    %v258 = vand.u32 %v246, 2147483648
    %v259 = vor.u32 1.1754944e-38, %v258
    %v260 = vsel %vm257, %v259, %v255
    %v261 = vmul.f32 1.0, %v260
    %v262 = vtanh.pop %v218
    %v263 = vmul.f32 %v261, 0.0
    %265 = vrot.lane.b32.xlu0 %v262, 64
    %v266 = vpop.permute.xlu0 %265
    %v268 = vmul.f32 %v261, %v266
    %270 = vrot.lane.b32.xlu0 %v268, 32
    %v271 = vpop.permute.xlu0 %270
    %v273 = vadd.f32 %v263, %v271
    %v274 = vtanh.pop %v273
    %276 = vrot.lane.b32.xlu0 %v274, 64
    %v277 = vpop.permute.xlu0 %276
    %v279 = vmul.f32 %v261, %v277
    %v280 = vxor.u32 %v242, 2147483648
    %v281 = vmul.f32 %v280, 1.442695
    %v282 = vpow.pop %v281
    %v283 = vadd.f32 %v282, 1.0
    %v284 = vrcp.pop %v283
    %v285 = vmul.f32 %v283, %v284
    %v286 = vsub.f32 1.0, %v285
    %v287 = vmul.f32 %v284, %v286
    %v288 = vadd.f32 %v284, %v287
    %vm289 = vweird.f32 %v283
    %vm290 = vweird.f32 %v284
    %vm291 = vmor %vm289, %vm290
    %v292 = vsel %vm291, %v284, %v288
    %v293 = vand.u32 2147483647, %v283
    %vm294 = vcmp.eq.f32.partialorder %v293, 8.507059e+37
    %v295 = vand.u32 %v283, 2147483648
    %v296 = vor.u32 1.1754944e-38, %v295
    %v297 = vsel %vm294, %v296, %v292
    %v298 = vmul.f32 1.0, %v297
    %v299 = vtanh.pop %v242
    %v300 = vmul.f32 %v298, 0.0
    %302 = vrot.lane.b32.xlu0 %v299, 64
    %v303 = vpop.permute.xlu0 %302
    %v305 = vmul.f32 %v298, %v303
    %307 = vrot.lane.b32.xlu0 %v305, 32
    %v308 = vpop.permute.xlu0 %307
    %v310 = vadd.f32 %v300, %v308
    %v311 = vtanh.pop %v310
    %313 = vrot.lane.b32.xlu0 %v311, 64
    %v314 = vpop.permute.xlu0 %313
    %v316 = vmul.f32 %v298, %v314
    %318 = vrot.lane.b32.xlu0 %v279, 32
    %v319 = vpop.permute.xlu0 %318
    %vm321 = vcmask 254976
    %322 = vst.msk [vmem:[#allocation2] sm:$0x3] %vm321, %v319
    %324 = vrot.lane.b32.xlu0 %v316, 64
    %v325 = vpop.permute.xlu0 %324
    %vm327 = vcmask 523526
    %328 = vst.msk [vmem:[#allocation2 + $0x8] sm:$0xc0] %vm327, %v325
    %v329 = vsel %vm194, %v319, 0
    %331 = vmatpush.msra.mxu0 0.0
    %332 = vmatpush.msra.mxu0 0.0
    %333 = vmatpush.msra.mxu0 0.0
    %334 = vmatpush.msra.mxu0 0.0
    %335 = vmatpush.msra.mxu0 0.0
    %336 = vmatpush.msra.mxu0 0.0
    %337 = vmatpush.msra.mxu0 0.0
    %338 = vmatpush.msra.mxu0 0.0
    %339 = vmatpush.msra.mxu0 0.0
    %340 = vmatpush.msra.mxu0 0.0
    %341 = vmatpush.msra.mxu0 0.0
    %342 = vmatpush.msra.mxu0 0.0
    %343 = vmatpush.msra.mxu0 %v188
    %344 = vmatpush.msra.mxu0 %v187
    %345 = vmatpush.msra.mxu0 %v186
    %346 = vmatpush.msra.mxu0 %v185
    %347 = vmatmul.f32.gmra.mxu0 %v329
    %v348 = vpop.f32.mrf.mxu0
    %v349 = vadd.f32 0.0, %v348
    %350 = vdwg.mxu0
    %v352 = vrot.slane %v349, 6
    %v354 = vadd.f32 %v157, %v352
    %v355 = vrot.slane %v316, 6
    %356 = vrot.lane.b32.xlu0 %v355, 32
    %v357 = vpop.permute.xlu0 %356
    %v358 = vsel %vm194, %v357, 0
    %360 = vmatpush.msra.mxu0 0.0
    %361 = vmatpush.msra.mxu0 0.0
    %362 = vmatpush.msra.mxu0 0.0
    %363 = vmatpush.msra.mxu0 0.0
    %364 = vmatpush.msra.mxu0 0.0
    %365 = vmatpush.msra.mxu0 0.0
    %366 = vmatpush.msra.mxu0 0.0
    %367 = vmatpush.msra.mxu0 0.0
    %368 = vmatpush.msra.mxu0 0.0
    %369 = vmatpush.msra.mxu0 0.0
    %370 = vmatpush.msra.mxu0 0.0
    %371 = vmatpush.msra.mxu0 0.0
    %372 = vmatpush.msra.mxu0 %v193
    %373 = vmatpush.msra.mxu0 %v192
    %374 = vmatpush.msra.mxu0 %v191
    %375 = vmatpush.msra.mxu0 %v190
    %376 = vmatmul.f32.gmra.mxu0 %v358
    %v377 = vpop.f32.mrf.mxu0
    %v378 = vadd.f32 0.0, %v377
    %379 = vdwg.mxu0
    %v381 = vrot.slane %v378, 4
    %v383 = vadd.f32 %v183, %v381
    %v384 = vxor.u32 %v354, 2147483648
    %v385 = vmul.f32 %v384, 1.442695
    %v386 = vpow.pop %v385
    %v387 = vadd.f32 %v386, 1.0
    %v388 = vrcp.pop %v387
    %v389 = vmul.f32 %v387, %v388
    %v390 = vsub.f32 1.0, %v389
    %v391 = vmul.f32 %v388, %v390
    %v392 = vadd.f32 %v388, %v391
    %vm393 = vweird.f32 %v387
    %vm394 = vweird.f32 %v388
    %vm395 = vmor %vm393, %vm394
    %v396 = vsel %vm395, %v388, %v392
    %v397 = vand.u32 2147483647, %v387
    %vm398 = vcmp.eq.f32.partialorder %v397, 8.507059e+37
    %v399 = vand.u32 %v387, 2147483648
    %v400 = vor.u32 1.1754944e-38, %v399
    %v401 = vsel %vm398, %v400, %v396
    %v402 = vmul.f32 1.0, %v401
    %v403 = vtanh.pop %v354
    %v405 = vrot.slane %v273, 6
    %v407 = vmul.f32 %v402, %v405
    %409 = vrot.lane.b32.xlu0 %v403, 64
    %v410 = vpop.permute.xlu0 %409
    %v412 = vmul.f32 %v402, %v410
    %414 = vrot.lane.b32.xlu0 %v412, 32
    %v415 = vpop.permute.xlu0 %414
    %v417 = vadd.f32 %v407, %v415
    %v418 = vtanh.pop %v417
    %420 = vrot.lane.b32.xlu0 %v418, 64
    %v421 = vpop.permute.xlu0 %420
    %v423 = vmul.f32 %v402, %v421
    %v424 = vxor.u32 %v383, 2147483648
    %v425 = vmul.f32 %v424, 1.442695
    %v426 = vpow.pop %v425
    %v427 = vadd.f32 %v426, 1.0
    %v428 = vrcp.pop %v427
    %v429 = vmul.f32 %v427, %v428
    %v430 = vsub.f32 1.0, %v429
    %v431 = vmul.f32 %v428, %v430
    %v432 = vadd.f32 %v428, %v431
    %vm433 = vweird.f32 %v427
    %vm434 = vweird.f32 %v428
    %vm435 = vmor %vm433, %vm434
    %v436 = vsel %vm435, %v428, %v432
    %v437 = vand.u32 2147483647, %v427
    %vm438 = vcmp.eq.f32.partialorder %v437, 8.507059e+37
    %v439 = vand.u32 %v427, 2147483648
    %v440 = vor.u32 1.1754944e-38, %v439
    %v441 = vsel %vm438, %v440, %v436
    %v442 = vmul.f32 1.0, %v441
    %v443 = vtanh.pop %v383
    %v445 = vrot.slane %v310, 2
    %v447 = vmul.f32 %v442, %v445
    %449 = vrot.lane.b32.xlu0 %v443, 64
    %v450 = vpop.permute.xlu0 %449
    %v452 = vmul.f32 %v442, %v450
    %454 = vrot.lane.b32.xlu0 %v452, 32
    %v455 = vpop.permute.xlu0 %454
    %v457 = vadd.f32 %v447, %v455
    %v458 = vtanh.pop %v457
    %460 = vrot.lane.b32.xlu0 %v458, 64
    %v461 = vpop.permute.xlu0 %460
    %v463 = vmul.f32 %v442, %v461
    %465 = vrot.lane.b32.xlu0 %v423, 32
    %v466 = vpop.permute.xlu0 %465
    %vm468 = vcmask 257026
    %469 = vst.msk [vmem:[#allocation2] sm:$0xc] %vm468, %v466
    %471 = vrot.lane.b32.xlu0 %v463, 64
    %v472 = vpop.permute.xlu0 %471
    %vm474 = vcmask 521476
    %475 = vst.msk [vmem:[#allocation2 + $0x8] sm:$0x30] %vm474, %v472
    %v476 = vrot.slane %v423, 2
    %477 = vrot.lane.b32.xlu0 %v476, 32
    %v478 = vpop.permute.xlu0 %477
    %v479 = vsel %vm194, %v478, 0
    %481 = vmatpush.msra.mxu0 0.0
    %482 = vmatpush.msra.mxu0 0.0
    %483 = vmatpush.msra.mxu0 0.0
    %484 = vmatpush.msra.mxu0 0.0
    %485 = vmatpush.msra.mxu0 0.0
    %486 = vmatpush.msra.mxu0 0.0
    %487 = vmatpush.msra.mxu0 0.0
    %488 = vmatpush.msra.mxu0 0.0
    %489 = vmatpush.msra.mxu0 0.0
    %490 = vmatpush.msra.mxu0 0.0
    %491 = vmatpush.msra.mxu0 0.0
    %492 = vmatpush.msra.mxu0 0.0
    %493 = vmatpush.msra.mxu0 %v188
    %494 = vmatpush.msra.mxu0 %v187
    %495 = vmatpush.msra.mxu0 %v186
    %496 = vmatpush.msra.mxu0 %v185
    %497 = vmatmul.f32.gmra.mxu0 %v479
    %v498 = vpop.f32.mrf.mxu0
    %v499 = vadd.f32 0.0, %v498
    %500 = vdwg.mxu0
    %v502 = vrot.slane %v499, 4
    %v504 = vadd.f32 %v157, %v502
    %v505 = vrot.slane %v463, 4
    %506 = vrot.lane.b32.xlu0 %v505, 32
    %v507 = vpop.permute.xlu0 %506
    %v508 = vsel %vm194, %v507, 0
    %510 = vmatpush.msra.mxu0 0.0
    %511 = vmatpush.msra.mxu0 0.0
    %512 = vmatpush.msra.mxu0 0.0
    %513 = vmatpush.msra.mxu0 0.0
    %514 = vmatpush.msra.mxu0 0.0
    %515 = vmatpush.msra.mxu0 0.0
    %516 = vmatpush.msra.mxu0 0.0
    %517 = vmatpush.msra.mxu0 0.0
    %518 = vmatpush.msra.mxu0 0.0
    %519 = vmatpush.msra.mxu0 0.0
    %520 = vmatpush.msra.mxu0 0.0
    %521 = vmatpush.msra.mxu0 0.0
    %522 = vmatpush.msra.mxu0 %v193
    %523 = vmatpush.msra.mxu0 %v192
    %524 = vmatpush.msra.mxu0 %v191
    %525 = vmatpush.msra.mxu0 %v190
    %526 = vmatmul.f32.gmra.mxu0 %v508
    %v527 = vpop.f32.mrf.mxu0
    %v528 = vadd.f32 0.0, %v527
    %529 = vdwg.mxu0
    %v531 = vrot.slane %v528, 6
    %v533 = vadd.f32 %v183, %v531
    %v534 = vxor.u32 %v504, 2147483648
    %v535 = vmul.f32 %v534, 1.442695
    %v536 = vpow.pop %v535
    %v537 = vadd.f32 %v536, 1.0
    %v538 = vrcp.pop %v537
    %v539 = vmul.f32 %v537, %v538
    %v540 = vsub.f32 1.0, %v539
    %v541 = vmul.f32 %v538, %v540
    %v542 = vadd.f32 %v538, %v541
    %vm543 = vweird.f32 %v537
    %vm544 = vweird.f32 %v538
    %vm545 = vmor %vm543, %vm544
    %v546 = vsel %vm545, %v538, %v542
    %v547 = vand.u32 2147483647, %v537
    %vm548 = vcmp.eq.f32.partialorder %v547, 8.507059e+37
    %v549 = vand.u32 %v537, 2147483648
    %v550 = vor.u32 1.1754944e-38, %v549
    %v551 = vsel %vm548, %v550, %v546
    %v552 = vmul.f32 1.0, %v551
    %v553 = vtanh.pop %v504
    %v555 = vrot.slane %v417, 6
    %v557 = vmul.f32 %v552, %v555
    %559 = vrot.lane.b32.xlu0 %v553, 64
    %v560 = vpop.permute.xlu0 %559
    %v562 = vmul.f32 %v552, %v560
    %564 = vrot.lane.b32.xlu0 %v562, 32
    %v565 = vpop.permute.xlu0 %564
    %v567 = vadd.f32 %v557, %v565
    %v568 = vtanh.pop %v567
    %570 = vrot.lane.b32.xlu0 %v568, 64
    %v571 = vpop.permute.xlu0 %570
    %v573 = vmul.f32 %v552, %v571
    %v574 = vxor.u32 %v533, 2147483648
    %v575 = vmul.f32 %v574, 1.442695
    %v576 = vpow.pop %v575
    %v577 = vadd.f32 %v576, 1.0
    %v578 = vrcp.pop %v577
    %v579 = vmul.f32 %v577, %v578
    %v580 = vsub.f32 1.0, %v579
    %v581 = vmul.f32 %v578, %v580
    %v582 = vadd.f32 %v578, %v581
    %vm583 = vweird.f32 %v577
    %vm584 = vweird.f32 %v578
    %vm585 = vmor %vm583, %vm584
    %v586 = vsel %vm585, %v578, %v582
    %v587 = vand.u32 2147483647, %v577
    %vm588 = vcmp.eq.f32.partialorder %v587, 8.507059e+37
    %v589 = vand.u32 %v577, 2147483648
    %v590 = vor.u32 1.1754944e-38, %v589
    %v591 = vsel %vm588, %v590, %v586
    %v592 = vmul.f32 1.0, %v591
    %v593 = vtanh.pop %v533
    %v595 = vrot.slane %v457, 2
    %v597 = vmul.f32 %v592, %v595
    %599 = vrot.lane.b32.xlu0 %v593, 64
    %v600 = vpop.permute.xlu0 %599
    %v602 = vmul.f32 %v592, %v600
    %604 = vrot.lane.b32.xlu0 %v602, 32
    %v605 = vpop.permute.xlu0 %604
    %v607 = vadd.f32 %v597, %v605
    %v608 = vtanh.pop %v607
    %610 = vrot.lane.b32.xlu0 %v608, 64
    %v611 = vpop.permute.xlu0 %610
    %v613 = vmul.f32 %v592, %v611
    %615 = vrot.lane.b32.xlu0 %v573, 32
    %v616 = vpop.permute.xlu0 %615
    %vm618 = vcmask 259076
    %619 = vst.msk [vmem:[#allocation2] sm:$0x30] %vm618, %v616
    %621 = vrot.lane.b32.xlu0 %v613, 64
    %v622 = vpop.permute.xlu0 %621
    %vm624 = vcmask 519426
    %625 = vst.msk [vmem:[#allocation2 + $0x8] sm:$0xc] %vm624, %v622
    %v626 = vrot.slane %v573, 4
    %627 = vrot.lane.b32.xlu0 %v626, 32
    %v628 = vpop.permute.xlu0 %627
    %v629 = vsel %vm194, %v628, 0
    %631 = vmatpush.msra.mxu0 0.0
    %632 = vmatpush.msra.mxu0 0.0
    %633 = vmatpush.msra.mxu0 0.0
    %634 = vmatpush.msra.mxu0 0.0
    %635 = vmatpush.msra.mxu0 0.0
    %636 = vmatpush.msra.mxu0 0.0
    %637 = vmatpush.msra.mxu0 0.0
    %638 = vmatpush.msra.mxu0 0.0
    %639 = vmatpush.msra.mxu0 0.0
    %640 = vmatpush.msra.mxu0 0.0
    %641 = vmatpush.msra.mxu0 0.0
    %642 = vmatpush.msra.mxu0 0.0
    %643 = vmatpush.msra.mxu0 %v188
    %644 = vmatpush.msra.mxu0 %v187
    %645 = vmatpush.msra.mxu0 %v186
    %646 = vmatpush.msra.mxu0 %v185
    %647 = vmatmul.f32.gmra.mxu0 %v629
    %v648 = vpop.f32.mrf.mxu0
    %v649 = vadd.f32 0.0, %v648
    %650 = vdwg.mxu0
    %v652 = vrot.slane %v649, 2
    %v654 = vadd.f32 %v157, %v652
    %v655 = vrot.slane %v613, 2
    %656 = vrot.lane.b32.xlu0 %v655, 32
    %v657 = vpop.permute.xlu0 %656
    %v658 = vsel %vm194, %v657, 0
    %660 = vmatpush.msra.mxu0 0.0
    %661 = vmatpush.msra.mxu0 0.0
    %662 = vmatpush.msra.mxu0 0.0
    %663 = vmatpush.msra.mxu0 0.0
    %664 = vmatpush.msra.mxu0 0.0
    %665 = vmatpush.msra.mxu0 0.0
    %666 = vmatpush.msra.mxu0 0.0
    %667 = vmatpush.msra.mxu0 0.0
    %668 = vmatpush.msra.mxu0 0.0
    %669 = vmatpush.msra.mxu0 0.0
    %670 = vmatpush.msra.mxu0 0.0
    %671 = vmatpush.msra.mxu0 0.0
    %672 = vmatpush.msra.mxu0 %v193
    %673 = vmatpush.msra.mxu0 %v192
    %674 = vmatpush.msra.mxu0 %v191
    %675 = vmatpush.msra.mxu0 %v190
    %676 = vmatmul.f32.gmra.mxu0 %v658
    %v677 = vpop.f32.mrf.mxu0
    %v678 = vadd.f32 0.0, %v677
    %679 = vdwg.mxu0
    %v680 = vadd.f32 %v183, %v678
    %v681 = vxor.u32 %v654, 2147483648
    %v682 = vmul.f32 %v681, 1.442695
    %v683 = vpow.pop %v682
    %v684 = vadd.f32 %v683, 1.0
    %v685 = vrcp.pop %v684
    %v686 = vmul.f32 %v684, %v685
    %v687 = vsub.f32 1.0, %v686
    %v688 = vmul.f32 %v685, %v687
    %v689 = vadd.f32 %v685, %v688
    %vm690 = vweird.f32 %v684
    %vm691 = vweird.f32 %v685
    %vm692 = vmor %vm690, %vm691
    %v693 = vsel %vm692, %v685, %v689
    %v694 = vand.u32 2147483647, %v684
    %vm695 = vcmp.eq.f32.partialorder %v694, 8.507059e+37
    %v696 = vand.u32 %v684, 2147483648
    %v697 = vor.u32 1.1754944e-38, %v696
    %v698 = vsel %vm695, %v697, %v693
    %v699 = vmul.f32 1.0, %v698
    %v700 = vtanh.pop %v654
    %v702 = vrot.slane %v567, 6
    %v704 = vmul.f32 %v699, %v702
    %706 = vrot.lane.b32.xlu0 %v700, 64
    %v707 = vpop.permute.xlu0 %706
    %v709 = vmul.f32 %v699, %v707
    %711 = vrot.lane.b32.xlu0 %v709, 32
    %v712 = vpop.permute.xlu0 %711
    %v714 = vadd.f32 %v704, %v712
    %v715 = vtanh.pop %v714
    %717 = vrot.lane.b32.xlu0 %v715, 64
    %v718 = vpop.permute.xlu0 %717
    %v720 = vmul.f32 %v699, %v718
    %v721 = vxor.u32 %v680, 2147483648
    %v722 = vmul.f32 %v721, 1.442695
    %v723 = vpow.pop %v722
    %v724 = vadd.f32 %v723, 1.0
    %v725 = vrcp.pop %v724
    %v726 = vmul.f32 %v724, %v725
    %v727 = vsub.f32 1.0, %v726
    %v728 = vmul.f32 %v725, %v727
    %v729 = vadd.f32 %v725, %v728
    %vm730 = vweird.f32 %v724
    %vm731 = vweird.f32 %v725
    %vm732 = vmor %vm730, %vm731
    %v733 = vsel %vm732, %v725, %v729
    %v734 = vand.u32 2147483647, %v724
    %vm735 = vcmp.eq.f32.partialorder %v734, 8.507059e+37
    %v736 = vand.u32 %v724, 2147483648
    %v737 = vor.u32 1.1754944e-38, %v736
    %v738 = vsel %vm735, %v737, %v733
    %v739 = vmul.f32 1.0, %v738
    %v740 = vtanh.pop %v680
    %v742 = vrot.slane %v607, 2
    %v744 = vmul.f32 %v739, %v742
    %746 = vrot.lane.b32.xlu0 %v740, 64
    %v747 = vpop.permute.xlu0 %746
    %v749 = vmul.f32 %v739, %v747
    %751 = vrot.lane.b32.xlu0 %v749, 32
    %v752 = vpop.permute.xlu0 %751
    %v754 = vadd.f32 %v744, %v752
    %v755 = vtanh.pop %v754
    %757 = vrot.lane.b32.xlu0 %v755, 64
    %v758 = vpop.permute.xlu0 %757
    %v760 = vmul.f32 %v739, %v758
    %762 = vrot.lane.b32.xlu0 %v720, 32
    %v763 = vpop.permute.xlu0 %762
    %vm765 = vcmask 261126
    %766 = vst.msk [vmem:[#allocation2] sm:$0xc0] %vm765, %v763
    %768 = vrot.lane.b32.xlu0 %v760, 64
    %v769 = vpop.permute.xlu0 %768
    %vm771 = vcmask 517376
    %772 = vst.msk [vmem:[#allocation2 + $0x8] sm:$0x3] %vm771, %v769
    %v773 = vrot.slane %v720, 6
    %774 = vrot.lane.b32.xlu0 %v773, 32
    %v775 = vpop.permute.xlu0 %774
    %v776 = vsel %vm194, %v775, 0
    %778 = vmatpush.msra.mxu0 0.0
    %779 = vmatpush.msra.mxu0 0.0
    %780 = vmatpush.msra.mxu0 0.0
    %781 = vmatpush.msra.mxu0 0.0
    %782 = vmatpush.msra.mxu0 0.0
    %783 = vmatpush.msra.mxu0 0.0
    %784 = vmatpush.msra.mxu0 0.0
    %785 = vmatpush.msra.mxu0 0.0
    %786 = vmatpush.msra.mxu0 0.0
    %787 = vmatpush.msra.mxu0 0.0
    %788 = vmatpush.msra.mxu0 0.0
    %789 = vmatpush.msra.mxu0 0.0
    %790 = vmatpush.msra.mxu0 %v188
    %791 = vmatpush.msra.mxu0 %v187
    %792 = vmatpush.msra.mxu0 %v186
    %793 = vmatpush.msra.mxu0 %v185
    %794 = vmatmul.f32.gmra.mxu0 %v776
    %v795 = vpop.f32.mrf.mxu0
    %v796 = vadd.f32 0.0, %v795
    %797 = vdwg.mxu0
    %v798 = vadd.f32 %v160, %v796
    %799 = vrot.lane.b32.xlu0 %v760, 32
    %v800 = vpop.permute.xlu0 %799
    %v801 = vsel %vm194, %v800, 0
    %803 = vmatpush.msra.mxu0 0.0
    %804 = vmatpush.msra.mxu0 0.0
    %805 = vmatpush.msra.mxu0 0.0
    %806 = vmatpush.msra.mxu0 0.0
    %807 = vmatpush.msra.mxu0 0.0
    %808 = vmatpush.msra.mxu0 0.0
    %809 = vmatpush.msra.mxu0 0.0
    %810 = vmatpush.msra.mxu0 0.0
    %811 = vmatpush.msra.mxu0 0.0
    %812 = vmatpush.msra.mxu0 0.0
    %813 = vmatpush.msra.mxu0 0.0
    %814 = vmatpush.msra.mxu0 0.0
    %815 = vmatpush.msra.mxu0 %v193
    %816 = vmatpush.msra.mxu0 %v192
    %817 = vmatpush.msra.mxu0 %v191
    %818 = vmatpush.msra.mxu0 %v190
    %819 = vmatmul.f32.gmra.mxu0 %v801
    %v820 = vpop.f32.mrf.mxu0
    %v821 = vadd.f32 0.0, %v820
    %822 = vdwg.mxu0
    %v824 = vrot.slane %v821, 2
    %v826 = vadd.f32 %v180, %v824
    %v827 = vxor.u32 %v798, 2147483648
    %v828 = vmul.f32 %v827, 1.442695
    %v829 = vpow.pop %v828
    %v830 = vadd.f32 %v829, 1.0
    %v831 = vrcp.pop %v830
    %v832 = vmul.f32 %v830, %v831
    %v833 = vsub.f32 1.0, %v832
    %v834 = vmul.f32 %v831, %v833
    %v835 = vadd.f32 %v831, %v834
    %vm836 = vweird.f32 %v830
    %vm837 = vweird.f32 %v831
    %vm838 = vmor %vm836, %vm837
    %v839 = vsel %vm838, %v831, %v835
    %v840 = vand.u32 2147483647, %v830
    %vm841 = vcmp.eq.f32.partialorder %v840, 8.507059e+37
    %v842 = vand.u32 %v830, 2147483648
    %v843 = vor.u32 1.1754944e-38, %v842
    %v844 = vsel %vm841, %v843, %v839
    %v845 = vmul.f32 1.0, %v844
    %v846 = vtanh.pop %v798
    %v848 = vrot.slane %v714, 6
    %v850 = vmul.f32 %v845, %v848
    %852 = vrot.lane.b32.xlu0 %v846, 64
    %v853 = vpop.permute.xlu0 %852
    %v855 = vmul.f32 %v845, %v853
    %857 = vrot.lane.b32.xlu0 %v855, 32
    %v858 = vpop.permute.xlu0 %857
    %v860 = vadd.f32 %v850, %v858
    %v861 = vtanh.pop %v860
    %863 = vrot.lane.b32.xlu0 %v861, 64
    %v864 = vpop.permute.xlu0 %863
    %v866 = vmul.f32 %v845, %v864
    %v867 = vxor.u32 %v826, 2147483648
    %v868 = vmul.f32 %v867, 1.442695
    %v869 = vpow.pop %v868
    %v870 = vadd.f32 %v869, 1.0
    %v871 = vrcp.pop %v870
    %v872 = vmul.f32 %v870, %v871
    %v873 = vsub.f32 1.0, %v872
    %v874 = vmul.f32 %v871, %v873
    %v875 = vadd.f32 %v871, %v874
    %vm876 = vweird.f32 %v870
    %vm877 = vweird.f32 %v871
    %vm878 = vmor %vm876, %vm877
    %v879 = vsel %vm878, %v871, %v875
    %v880 = vand.u32 2147483647, %v870
    %vm881 = vcmp.eq.f32.partialorder %v880, 8.507059e+37
    %v882 = vand.u32 %v870, 2147483648
    %v883 = vor.u32 1.1754944e-38, %v882
    %v884 = vsel %vm881, %v883, %v879
    %v885 = vmul.f32 1.0, %v884
    %v886 = vtanh.pop %v826
    %v888 = vrot.slane %v754, 2
    %v890 = vmul.f32 %v885, %v888
    %892 = vrot.lane.b32.xlu0 %v886, 64
    %v893 = vpop.permute.xlu0 %892
    %v895 = vmul.f32 %v885, %v893
    %897 = vrot.lane.b32.xlu0 %v895, 32
    %v898 = vpop.permute.xlu0 %897
    %v900 = vadd.f32 %v890, %v898
    %v901 = vtanh.pop %v900
    %903 = vrot.lane.b32.xlu0 %v901, 64
    %v904 = vpop.permute.xlu0 %903
    %v906 = vmul.f32 %v885, %v904
    %908 = vrot.lane.b32.xlu0 %v866, 32
    %v909 = vpop.permute.xlu0 %908
    %911 = vst.msk [vmem:[#allocation2 + $0x8] sm:$0x3] %vm321, %v909
    %913 = vrot.lane.b32.xlu0 %v906, 64
    %v914 = vpop.permute.xlu0 %913
    %916 = vst.msk [vmem:[#allocation2] sm:$0xc0] %vm327, %v914
    %v917 = vsel %vm194, %v909, 0
    %919 = vmatpush.msra.mxu0 0.0
    %920 = vmatpush.msra.mxu0 0.0
    %921 = vmatpush.msra.mxu0 0.0
    %922 = vmatpush.msra.mxu0 0.0
    %923 = vmatpush.msra.mxu0 0.0
    %924 = vmatpush.msra.mxu0 0.0
    %925 = vmatpush.msra.mxu0 0.0
    %926 = vmatpush.msra.mxu0 0.0
    %927 = vmatpush.msra.mxu0 0.0
    %928 = vmatpush.msra.mxu0 0.0
    %929 = vmatpush.msra.mxu0 0.0
    %930 = vmatpush.msra.mxu0 0.0
    %931 = vmatpush.msra.mxu0 %v188
    %932 = vmatpush.msra.mxu0 %v187
    %933 = vmatpush.msra.mxu0 %v186
    %934 = vmatpush.msra.mxu0 %v185
    %935 = vmatmul.f32.gmra.mxu0 %v917
    %v936 = vpop.f32.mrf.mxu0
    %v937 = vadd.f32 0.0, %v936
    %938 = vdwg.mxu0
    %v940 = vrot.slane %v937, 6
    %v942 = vadd.f32 %v160, %v940
    %v943 = vrot.slane %v906, 6
    %944 = vrot.lane.b32.xlu0 %v943, 32
    %v945 = vpop.permute.xlu0 %944
    %v946 = vsel %vm194, %v945, 0
    %948 = vmatpush.msra.mxu0 0.0
    %949 = vmatpush.msra.mxu0 0.0
    %950 = vmatpush.msra.mxu0 0.0
    %951 = vmatpush.msra.mxu0 0.0
    %952 = vmatpush.msra.mxu0 0.0
    %953 = vmatpush.msra.mxu0 0.0
    %954 = vmatpush.msra.mxu0 0.0
    %955 = vmatpush.msra.mxu0 0.0
    %956 = vmatpush.msra.mxu0 0.0
    %957 = vmatpush.msra.mxu0 0.0
    %958 = vmatpush.msra.mxu0 0.0
    %959 = vmatpush.msra.mxu0 0.0
    %960 = vmatpush.msra.mxu0 %v193
    %961 = vmatpush.msra.mxu0 %v192
    %962 = vmatpush.msra.mxu0 %v191
    %963 = vmatpush.msra.mxu0 %v190
    %964 = vmatmul.f32.gmra.mxu0 %v946
    %v965 = vpop.f32.mrf.mxu0
    %v966 = vadd.f32 0.0, %v965
    %967 = vdwg.mxu0
    %v969 = vrot.slane %v966, 4
    %v971 = vadd.f32 %v180, %v969
    %v972 = vxor.u32 %v942, 2147483648
    %v973 = vmul.f32 %v972, 1.442695
    %v974 = vpow.pop %v973
    %v975 = vadd.f32 %v974, 1.0
    %v976 = vrcp.pop %v975
    %v977 = vmul.f32 %v975, %v976
    %v978 = vsub.f32 1.0, %v977
    %v979 = vmul.f32 %v976, %v978
    %v980 = vadd.f32 %v976, %v979
    %vm981 = vweird.f32 %v975
    %vm982 = vweird.f32 %v976
    %vm983 = vmor %vm981, %vm982
    %v984 = vsel %vm983, %v976, %v980
    %v985 = vand.u32 2147483647, %v975
    %vm986 = vcmp.eq.f32.partialorder %v985, 8.507059e+37
    %v987 = vand.u32 %v975, 2147483648
    %v988 = vor.u32 1.1754944e-38, %v987
    %v989 = vsel %vm986, %v988, %v984
    %v990 = vmul.f32 1.0, %v989
    %v991 = vtanh.pop %v942
    %v993 = vrot.slane %v860, 6
    %v995 = vmul.f32 %v990, %v993
    %997 = vrot.lane.b32.xlu0 %v991, 64
    %v998 = vpop.permute.xlu0 %997
    %v1000 = vmul.f32 %v990, %v998
    %1002 = vrot.lane.b32.xlu0 %v1000, 32
    %v1003 = vpop.permute.xlu0 %1002
    %v1005 = vadd.f32 %v995, %v1003
    %v1006 = vtanh.pop %v1005
    %1008 = vrot.lane.b32.xlu0 %v1006, 64
    %v1009 = vpop.permute.xlu0 %1008
    %v1011 = vmul.f32 %v990, %v1009
    %v1012 = vxor.u32 %v971, 2147483648
    %v1013 = vmul.f32 %v1012, 1.442695
    %v1014 = vpow.pop %v1013
    %v1015 = vadd.f32 %v1014, 1.0
    %v1016 = vrcp.pop %v1015
    %v1017 = vmul.f32 %v1015, %v1016
    %v1018 = vsub.f32 1.0, %v1017
    %v1019 = vmul.f32 %v1016, %v1018
    %v1020 = vadd.f32 %v1016, %v1019
    %vm1021 = vweird.f32 %v1015
    %vm1022 = vweird.f32 %v1016
    %vm1023 = vmor %vm1021, %vm1022
    %v1024 = vsel %vm1023, %v1016, %v1020
    %v1025 = vand.u32 2147483647, %v1015
    %vm1026 = vcmp.eq.f32.partialorder %v1025, 8.507059e+37
    %v1027 = vand.u32 %v1015, 2147483648
    %v1028 = vor.u32 1.1754944e-38, %v1027
    %v1029 = vsel %vm1026, %v1028, %v1024
    %v1030 = vmul.f32 1.0, %v1029
    %v1031 = vtanh.pop %v971
    %v1033 = vrot.slane %v900, 2
    %v1035 = vmul.f32 %v1030, %v1033
    %1037 = vrot.lane.b32.xlu0 %v1031, 64
    %v1038 = vpop.permute.xlu0 %1037
    %v1040 = vmul.f32 %v1030, %v1038
    %1042 = vrot.lane.b32.xlu0 %v1040, 32
    %v1043 = vpop.permute.xlu0 %1042
    %v1045 = vadd.f32 %v1035, %v1043
    %v1046 = vtanh.pop %v1045
    %1048 = vrot.lane.b32.xlu0 %v1046, 64
    %v1049 = vpop.permute.xlu0 %1048
    %v1051 = vmul.f32 %v1030, %v1049
    %1053 = vrot.lane.b32.xlu0 %v1011, 32
    %v1054 = vpop.permute.xlu0 %1053
    %1056 = vst.msk [vmem:[#allocation2 + $0x8] sm:$0xc] %vm468, %v1054
    %1058 = vrot.lane.b32.xlu0 %v1051, 64
    %v1059 = vpop.permute.xlu0 %1058
    %1061 = vst.msk [vmem:[#allocation2] sm:$0x30] %vm474, %v1059
    %v1062 = vrot.slane %v1011, 2
    %1063 = vrot.lane.b32.xlu0 %v1062, 32
    %v1064 = vpop.permute.xlu0 %1063
    %v1065 = vsel %vm194, %v1064, 0
    %1067 = vmatpush.msra.mxu0 0.0
    %1068 = vmatpush.msra.mxu0 0.0
    %1069 = vmatpush.msra.mxu0 0.0
    %1070 = vmatpush.msra.mxu0 0.0
    %1071 = vmatpush.msra.mxu0 0.0
    %1072 = vmatpush.msra.mxu0 0.0
    %1073 = vmatpush.msra.mxu0 0.0
    %1074 = vmatpush.msra.mxu0 0.0
    %1075 = vmatpush.msra.mxu0 0.0
    %1076 = vmatpush.msra.mxu0 0.0
    %1077 = vmatpush.msra.mxu0 0.0
    %1078 = vmatpush.msra.mxu0 0.0
    %1079 = vmatpush.msra.mxu0 %v188
    %1080 = vmatpush.msra.mxu0 %v187
    %1081 = vmatpush.msra.mxu0 %v186
    %1082 = vmatpush.msra.mxu0 %v185
    %1083 = vmatmul.f32.gmra.mxu0 %v1065
    %v1084 = vpop.f32.mrf.mxu0
    %v1085 = vadd.f32 0.0, %v1084
    %1086 = vdwg.mxu0
    %v1088 = vrot.slane %v1085, 4
    %v1090 = vadd.f32 %v160, %v1088
    %v1091 = vrot.slane %v1051, 4
    %1092 = vrot.lane.b32.xlu0 %v1091, 32
    %v1093 = vpop.permute.xlu0 %1092
    %v1094 = vsel %vm194, %v1093, 0
    %1096 = vmatpush.msra.mxu0 0.0
    %1097 = vmatpush.msra.mxu0 0.0
    %1098 = vmatpush.msra.mxu0 0.0
    %1099 = vmatpush.msra.mxu0 0.0
    %1100 = vmatpush.msra.mxu0 0.0
    %1101 = vmatpush.msra.mxu0 0.0
    %1102 = vmatpush.msra.mxu0 0.0
    %1103 = vmatpush.msra.mxu0 0.0
    %1104 = vmatpush.msra.mxu0 0.0
    %1105 = vmatpush.msra.mxu0 0.0
    %1106 = vmatpush.msra.mxu0 0.0
    %1107 = vmatpush.msra.mxu0 0.0
    %1108 = vmatpush.msra.mxu0 %v193
    %1109 = vmatpush.msra.mxu0 %v192
    %1110 = vmatpush.msra.mxu0 %v191
    %1111 = vmatpush.msra.mxu0 %v190
    %1112 = vmatmul.f32.gmra.mxu0 %v1094
    %v1113 = vpop.f32.mrf.mxu0
    %v1114 = vadd.f32 0.0, %v1113
    %1115 = vdwg.mxu0
    %v1117 = vrot.slane %v1114, 6
    %v1119 = vadd.f32 %v180, %v1117
    %v1120 = vxor.u32 %v1090, 2147483648
    %v1121 = vmul.f32 %v1120, 1.442695
    %v1122 = vpow.pop %v1121
    %v1123 = vadd.f32 %v1122, 1.0
    %v1124 = vrcp.pop %v1123
    %v1125 = vmul.f32 %v1123, %v1124
    %v1126 = vsub.f32 1.0, %v1125
    %v1127 = vmul.f32 %v1124, %v1126
    %v1128 = vadd.f32 %v1124, %v1127
    %vm1129 = vweird.f32 %v1123
    %vm1130 = vweird.f32 %v1124
    %vm1131 = vmor %vm1129, %vm1130
    %v1132 = vsel %vm1131, %v1124, %v1128
    %v1133 = vand.u32 2147483647, %v1123
    %vm1134 = vcmp.eq.f32.partialorder %v1133, 8.507059e+37
    %v1135 = vand.u32 %v1123, 2147483648
    %v1136 = vor.u32 1.1754944e-38, %v1135
    %v1137 = vsel %vm1134, %v1136, %v1132
    %v1138 = vmul.f32 1.0, %v1137
    %v1139 = vtanh.pop %v1090
    %v1141 = vrot.slane %v1005, 6
    %v1143 = vmul.f32 %v1138, %v1141
    %1145 = vrot.lane.b32.xlu0 %v1139, 64
    %v1146 = vpop.permute.xlu0 %1145
    %v1148 = vmul.f32 %v1138, %v1146
    %1150 = vrot.lane.b32.xlu0 %v1148, 32
    %v1151 = vpop.permute.xlu0 %1150
    %v1153 = vadd.f32 %v1143, %v1151
    %v1154 = vtanh.pop %v1153
    %1156 = vrot.lane.b32.xlu0 %v1154, 64
    %v1157 = vpop.permute.xlu0 %1156
    %v1159 = vmul.f32 %v1138, %v1157
    %v1160 = vxor.u32 %v1119, 2147483648
    %v1161 = vmul.f32 %v1160, 1.442695
    %v1162 = vpow.pop %v1161
    %v1163 = vadd.f32 %v1162, 1.0
    %v1164 = vrcp.pop %v1163
    %v1165 = vmul.f32 %v1163, %v1164
    %v1166 = vsub.f32 1.0, %v1165
    %v1167 = vmul.f32 %v1164, %v1166
    %v1168 = vadd.f32 %v1164, %v1167
    %vm1169 = vweird.f32 %v1163
    %vm1170 = vweird.f32 %v1164
    %vm1171 = vmor %vm1169, %vm1170
    %v1172 = vsel %vm1171, %v1164, %v1168
    %v1173 = vand.u32 2147483647, %v1163
    %vm1174 = vcmp.eq.f32.partialorder %v1173, 8.507059e+37
    %v1175 = vand.u32 %v1163, 2147483648
    %v1176 = vor.u32 1.1754944e-38, %v1175
    %v1177 = vsel %vm1174, %v1176, %v1172
    %v1178 = vmul.f32 1.0, %v1177
    %v1179 = vtanh.pop %v1119
    %v1181 = vrot.slane %v1045, 2
    %v1183 = vmul.f32 %v1178, %v1181
    %1185 = vrot.lane.b32.xlu0 %v1179, 64
    %v1186 = vpop.permute.xlu0 %1185
    %v1188 = vmul.f32 %v1178, %v1186
    %1190 = vrot.lane.b32.xlu0 %v1188, 32
    %v1191 = vpop.permute.xlu0 %1190
    %v1193 = vadd.f32 %v1183, %v1191
    %v1194 = vtanh.pop %v1193
    %1196 = vrot.lane.b32.xlu0 %v1194, 64
    %v1197 = vpop.permute.xlu0 %1196
    %v1199 = vmul.f32 %v1178, %v1197
    %1201 = vrot.lane.b32.xlu0 %v1159, 32
    %v1202 = vpop.permute.xlu0 %1201
    %1204 = vst.msk [vmem:[#allocation2 + $0x8] sm:$0x30] %vm618, %v1202
    %1206 = vrot.lane.b32.xlu0 %v1199, 64
    %v1207 = vpop.permute.xlu0 %1206
    %1209 = vst.msk [vmem:[#allocation2] sm:$0xc] %vm624, %v1207
    %v1210 = vrot.slane %v1159, 4
    %1211 = vrot.lane.b32.xlu0 %v1210, 32
    %v1212 = vpop.permute.xlu0 %1211
    %v1213 = vsel %vm194, %v1212, 0
    %1215 = vmatpush.msra.mxu0 0.0
    %1216 = vmatpush.msra.mxu0 0.0
    %1217 = vmatpush.msra.mxu0 0.0
    %1218 = vmatpush.msra.mxu0 0.0
    %1219 = vmatpush.msra.mxu0 0.0
    %1220 = vmatpush.msra.mxu0 0.0
    %1221 = vmatpush.msra.mxu0 0.0
    %1222 = vmatpush.msra.mxu0 0.0
    %1223 = vmatpush.msra.mxu0 0.0
    %1224 = vmatpush.msra.mxu0 0.0
    %1225 = vmatpush.msra.mxu0 0.0
    %1226 = vmatpush.msra.mxu0 0.0
    %1227 = vmatpush.msra.mxu0 %v188
    %1228 = vmatpush.msra.mxu0 %v187
    %1229 = vmatpush.msra.mxu0 %v186
    %1230 = vmatpush.msra.mxu0 %v185
    %1231 = vmatmul.f32.gmra.mxu0 %v1213
    %v1232 = vpop.f32.mrf.mxu0
    %v1233 = vadd.f32 0.0, %v1232
    %1234 = vdwg.mxu0
    %v1236 = vrot.slane %v1233, 2
    %v1238 = vadd.f32 %v160, %v1236
    %v1239 = vrot.slane %v1199, 2
    %1240 = vrot.lane.b32.xlu0 %v1239, 32
    %v1241 = vpop.permute.xlu0 %1240
    %v1242 = vsel %vm194, %v1241, 0
    %1244 = vmatpush.msra.mxu0 0.0
    %1245 = vmatpush.msra.mxu0 0.0
    %1246 = vmatpush.msra.mxu0 0.0
    %1247 = vmatpush.msra.mxu0 0.0
    %1248 = vmatpush.msra.mxu0 0.0
    %1249 = vmatpush.msra.mxu0 0.0
    %1250 = vmatpush.msra.mxu0 0.0
    %1251 = vmatpush.msra.mxu0 0.0
    %1252 = vmatpush.msra.mxu0 0.0
    %1253 = vmatpush.msra.mxu0 0.0
    %1254 = vmatpush.msra.mxu0 0.0
    %1255 = vmatpush.msra.mxu0 0.0
    %1256 = vmatpush.msra.mxu0 %v193
    %1257 = vmatpush.msra.mxu0 %v192
    %1258 = vmatpush.msra.mxu0 %v191
    %1259 = vmatpush.msra.mxu0 %v190
    %1260 = vmatmul.f32.gmra.mxu0 %v1242
    %v1261 = vpop.f32.mrf.mxu0
    %v1262 = vadd.f32 0.0, %v1261
    %1263 = vdwg.mxu0
    %v1264 = vadd.f32 %v180, %v1262
    %v1265 = vxor.u32 %v1238, 2147483648
    %v1266 = vmul.f32 %v1265, 1.442695
    %v1267 = vpow.pop %v1266
    %v1268 = vadd.f32 %v1267, 1.0
    %v1269 = vrcp.pop %v1268
    %v1270 = vmul.f32 %v1268, %v1269
    %v1271 = vsub.f32 1.0, %v1270
    %v1272 = vmul.f32 %v1269, %v1271
    %v1273 = vadd.f32 %v1269, %v1272
    %vm1274 = vweird.f32 %v1268
    %vm1275 = vweird.f32 %v1269
    %vm1276 = vmor %vm1274, %vm1275
    %v1277 = vsel %vm1276, %v1269, %v1273
    %v1278 = vand.u32 2147483647, %v1268
    %vm1279 = vcmp.eq.f32.partialorder %v1278, 8.507059e+37
    %v1280 = vand.u32 %v1268, 2147483648
    %v1281 = vor.u32 1.1754944e-38, %v1280
    %v1282 = vsel %vm1279, %v1281, %v1277
    %v1283 = vmul.f32 1.0, %v1282
    %v1284 = vtanh.pop %v1238
    %v1286 = vrot.slane %v1153, 6
    %v1288 = vmul.f32 %v1283, %v1286
    %1290 = vrot.lane.b32.xlu0 %v1284, 64
    %v1291 = vpop.permute.xlu0 %1290
    %v1293 = vmul.f32 %v1283, %v1291
    %1295 = vrot.lane.b32.xlu0 %v1293, 32
    %v1296 = vpop.permute.xlu0 %1295
    %v1298 = vadd.f32 %v1288, %v1296
    %v1299 = vtanh.pop %v1298
    %1301 = vrot.lane.b32.xlu0 %v1299, 64
    %v1302 = vpop.permute.xlu0 %1301
    %v1304 = vmul.f32 %v1283, %v1302
    %v1305 = vxor.u32 %v1264, 2147483648
    %v1306 = vmul.f32 %v1305, 1.442695
    %v1307 = vpow.pop %v1306
    %v1308 = vadd.f32 %v1307, 1.0
    %v1309 = vrcp.pop %v1308
    %v1310 = vmul.f32 %v1308, %v1309
    %v1311 = vsub.f32 1.0, %v1310
    %v1312 = vmul.f32 %v1309, %v1311
    %v1313 = vadd.f32 %v1309, %v1312
    %vm1314 = vweird.f32 %v1308
    %vm1315 = vweird.f32 %v1309
    %vm1316 = vmor %vm1314, %vm1315
    %v1317 = vsel %vm1316, %v1309, %v1313
    %v1318 = vand.u32 2147483647, %v1308
    %vm1319 = vcmp.eq.f32.partialorder %v1318, 8.507059e+37
    %v1320 = vand.u32 %v1308, 2147483648
    %v1321 = vor.u32 1.1754944e-38, %v1320
    %v1322 = vsel %vm1319, %v1321, %v1317
    %v1323 = vmul.f32 1.0, %v1322
    %v1324 = vtanh.pop %v1264
    %v1326 = vrot.slane %v1193, 2
    %v1328 = vmul.f32 %v1323, %v1326
    %1330 = vrot.lane.b32.xlu0 %v1324, 64
    %v1331 = vpop.permute.xlu0 %1330
    %v1333 = vmul.f32 %v1323, %v1331
    %1335 = vrot.lane.b32.xlu0 %v1333, 32
    %v1336 = vpop.permute.xlu0 %1335
    %v1338 = vadd.f32 %v1328, %v1336
    %v1339 = vtanh.pop %v1338
    %1341 = vrot.lane.b32.xlu0 %v1339, 64
    %v1342 = vpop.permute.xlu0 %1341
    %v1344 = vmul.f32 %v1323, %v1342
    %1346 = vrot.lane.b32.xlu0 %v1304, 32
    %v1347 = vpop.permute.xlu0 %1346
    %1349 = vst.msk [vmem:[#allocation2 + $0x8] sm:$0xc0] %vm765, %v1347
    %1351 = vrot.lane.b32.xlu0 %v1344, 64
    %v1352 = vpop.permute.xlu0 %1351
    %1354 = vst.msk [vmem:[#allocation2] sm:$0x3] %vm771, %v1352
    %v1355 = vld [vmem:[#allocation2] sm:$0xff]
    %v1356 = vld [vmem:[#allocation2 + $0x8] sm:$0xff]
    %v1357 = vld [vmem:[#allocation6] sm:$0xff]
    %v1358 = vld [vmem:[#allocation6 + $0x8] sm:$0xff]
    %v1359 = vld [vmem:[#allocation6 + $0x10] sm:$0xff]
    %v1360 = vld [vmem:[#allocation6 + $0x18] sm:$0xff]
    %v1361 = vld [vmem:[#allocation6 + $0x20] sm:$0xff]
    %v1362 = vld [vmem:[#allocation6 + $0x28] sm:$0xff]
    %v1363 = vld [vmem:[#allocation6 + $0x30] sm:$0xff]
    %v1364 = vld [vmem:[#allocation6 + $0x38] sm:$0xff]
    %v1365 = vld [vmem:[#allocation6 + $0x40] sm:$0xff]
    %v1366 = vld [vmem:[#allocation6 + $0x48] sm:$0xff]
    %v1367 = vld [vmem:[#allocation6 + $0x50] sm:$0xff]
    %v1368 = vld [vmem:[#allocation6 + $0x58] sm:$0xff]
    %v1369 = vld [vmem:[#allocation6 + $0x60] sm:$0xff]
    %v1370 = vld [vmem:[#allocation6 + $0x68] sm:$0xff]
    %v1371 = vld [vmem:[#allocation6 + $0x70] sm:$0xff]
    %v1372 = vld [vmem:[#allocation6 + $0x78] sm:$0xff]
    %v1373 = vld [vmem:[%s5] sm:$0x3]
    %v1375 = vperm.slane %v1373, 0
    %v1376 = vperm.slane %v1373, 1
    %vm1379 = vcmask 523264
    %v1381 = vsel %vm1379, %v1355, 0
    %v1384 = vsel %vm1379, %v1356, 0
    %1386 = vmatpush.msra.mxu0 0.0
    %1387 = vmatpush.msra.mxu0 0.0
    %1388 = vmatpush.msra.mxu0 0.0
    %1389 = vmatpush.msra.mxu0 0.0
    %1390 = vmatpush.msra.mxu0 0.0
    %1391 = vmatpush.msra.mxu0 0.0
    %1392 = vmatpush.msra.mxu0 0.0
    %1393 = vmatpush.msra.mxu0 0.0
    %1394 = vmatpush.msra.mxu0 %v1371
    %1395 = vmatpush.msra.mxu0 %v1369
    %1396 = vmatpush.msra.mxu0 %v1367
    %1397 = vmatpush.msra.mxu0 %v1365
    %1398 = vmatpush.msra.mxu0 %v1363
    %1399 = vmatpush.msra.mxu0 %v1361
    %1400 = vmatpush.msra.mxu0 %v1359
    %1401 = vmatpush.msra.mxu0 %v1357
    %1402 = vmatmul.f32.gmra.mxu0 %v1381
    %v1403 = vpop.f32.mrf.mxu0
    %v1404 = vadd.f32 %v1375, %v1403
    %1405 = vmatmul.f32.gmra.mxu0 %v1384
    %v1406 = vpop.f32.mrf.mxu0
    %v1407 = vadd.f32 %v1375, %v1406
    %1408 = vdwg.mxu0
    %1409 = vmatpush.msra.mxu0 0.0
    %1410 = vmatpush.msra.mxu0 0.0
    %1411 = vmatpush.msra.mxu0 0.0
    %1412 = vmatpush.msra.mxu0 0.0
    %1413 = vmatpush.msra.mxu0 0.0
    %1414 = vmatpush.msra.mxu0 0.0
    %1415 = vmatpush.msra.mxu0 0.0
    %1416 = vmatpush.msra.mxu0 0.0
    %1417 = vmatpush.msra.mxu0 %v1372
    %1418 = vmatpush.msra.mxu0 %v1370
    %1419 = vmatpush.msra.mxu0 %v1368
    %1420 = vmatpush.msra.mxu0 %v1366
    %1421 = vmatpush.msra.mxu0 %v1364
    %1422 = vmatpush.msra.mxu0 %v1362
    %1423 = vmatpush.msra.mxu0 %v1360
    %1424 = vmatpush.msra.mxu0 %v1358
    %1425 = vmatmul.f32.gmra.mxu0 %v1381
    %v1426 = vpop.f32.mrf.mxu0
    %v1427 = vadd.f32 %v1376, %v1426
    %1428 = vmatmul.f32.gmra.mxu0 %v1384
    %v1429 = vpop.f32.mrf.mxu0
    %v1430 = vadd.f32 %v1376, %v1429
    %1431 = vdwg.mxu0
    %v1432 = vld [vmem:[#allocation8] sm:$0xff]
    %v1433 = vld [vmem:[#allocation8 + $0x8] sm:$0xff]
    %v1434 = vld [vmem:[#allocation8 + $0x10] sm:$0xff]
    %v1435 = vld [vmem:[#allocation8 + $0x18] sm:$0xff]
    %s1436 = scalar_lea.vmem [#allocation8], 32
    %v1437 = vld [vmem:[%s1436] sm:$0xff]
    %v1438 = vld [vmem:[%s1436 + $0x8] sm:$0xff]
    %v1439 = vld [vmem:[%s1436 + $0x10] sm:$0xff]
    %v1440 = vld [vmem:[%s1436 + $0x18] sm:$0xff]
    %1441 = vmatpush.msra.mxu0 0.0
    %1442 = vmatpush.msra.mxu0 0.0
    %1443 = vmatpush.msra.mxu0 0.0
    %1444 = vmatpush.msra.mxu0 0.0
    %1445 = vmatpush.msra.mxu0 0.0
    %1446 = vmatpush.msra.mxu0 0.0
    %1447 = vmatpush.msra.mxu0 0.0
    %1448 = vmatpush.msra.mxu0 0.0
    %1449 = vmatpush.msra.mxu0 0.0
    %1450 = vmatpush.msra.mxu0 0.0
    %1451 = vmatpush.msra.mxu0 0.0
    %1452 = vmatpush.msra.mxu0 0.0
    %1453 = vmatpush.msra.mxu0 %v1435
    %1454 = vmatpush.msra.mxu0 %v1434
    %1455 = vmatpush.msra.mxu0 %v1433
    %1456 = vmatpush.msra.mxu0 %v1432
    %1457 = vmatmul.f32.gmra.mxu0 %v196
    %v1458 = vpop.f32.mrf.mxu0
    %v1459 = vadd.f32 0.0, %v1458
    %1460 = vdwg.mxu0
    %v1461 = vadd.f32 %v1404, %v1459
    %1462 = vmatpush.msra.mxu0 0.0
    %1463 = vmatpush.msra.mxu0 0.0
    %1464 = vmatpush.msra.mxu0 0.0
    %1465 = vmatpush.msra.mxu0 0.0
    %1466 = vmatpush.msra.mxu0 0.0
    %1467 = vmatpush.msra.mxu0 0.0
    %1468 = vmatpush.msra.mxu0 0.0
    %1469 = vmatpush.msra.mxu0 0.0
    %1470 = vmatpush.msra.mxu0 0.0
    %1471 = vmatpush.msra.mxu0 0.0
    %1472 = vmatpush.msra.mxu0 0.0
    %1473 = vmatpush.msra.mxu0 0.0
    %1474 = vmatpush.msra.mxu0 %v1440
    %1475 = vmatpush.msra.mxu0 %v1439
    %1476 = vmatpush.msra.mxu0 %v1438
    %1477 = vmatpush.msra.mxu0 %v1437
    %1478 = vmatmul.f32.gmra.mxu0 %v196
    %v1479 = vpop.f32.mrf.mxu0
    %v1480 = vadd.f32 0.0, %v1479
    %1481 = vdwg.mxu0
    %v1483 = vrot.slane %v1480, 2
    %v1485 = vadd.f32 %v1430, %v1483
    %v1486 = vxor.u32 %v1461, 2147483648
    %v1487 = vmul.f32 %v1486, 1.442695
    %v1488 = vpow.pop %v1487
    %v1489 = vadd.f32 %v1488, 1.0
    %v1490 = vrcp.pop %v1489
    %v1491 = vmul.f32 %v1489, %v1490
    %v1492 = vsub.f32 1.0, %v1491
    %v1493 = vmul.f32 %v1490, %v1492
    %v1494 = vadd.f32 %v1490, %v1493
    %vm1495 = vweird.f32 %v1489
    %vm1496 = vweird.f32 %v1490
    %vm1497 = vmor %vm1495, %vm1496
    %v1498 = vsel %vm1497, %v1490, %v1494
    %v1499 = vand.u32 2147483647, %v1489
    %vm1500 = vcmp.eq.f32.partialorder %v1499, 8.507059e+37
    %v1501 = vand.u32 %v1489, 2147483648
    %v1502 = vor.u32 1.1754944e-38, %v1501
    %v1503 = vsel %vm1500, %v1502, %v1498
    %v1504 = vmul.f32 1.0, %v1503
    %v1505 = vtanh.pop %v1461
    %v1506 = vmul.f32 %v1504, 0.0
    %1508 = vrot.lane.b32.xlu0 %v1505, 64
    %v1509 = vpop.permute.xlu0 %1508
    %v1511 = vmul.f32 %v1504, %v1509
    %1513 = vrot.lane.b32.xlu0 %v1511, 32
    %v1514 = vpop.permute.xlu0 %1513
    %v1516 = vadd.f32 %v1506, %v1514
    %v1517 = vtanh.pop %v1516
    %1519 = vrot.lane.b32.xlu0 %v1517, 64
    %v1520 = vpop.permute.xlu0 %1519
    %v1522 = vmul.f32 %v1504, %v1520
    %v1523 = vxor.u32 %v1485, 2147483648
    %v1524 = vmul.f32 %v1523, 1.442695
    %v1525 = vpow.pop %v1524
    %v1526 = vadd.f32 %v1525, 1.0
    %v1527 = vrcp.pop %v1526
    %v1528 = vmul.f32 %v1526, %v1527
    %v1529 = vsub.f32 1.0, %v1528
    %v1530 = vmul.f32 %v1527, %v1529
    %v1531 = vadd.f32 %v1527, %v1530
    %vm1532 = vweird.f32 %v1526
    %vm1533 = vweird.f32 %v1527
    %vm1534 = vmor %vm1532, %vm1533
    %v1535 = vsel %vm1534, %v1527, %v1531
    %v1536 = vand.u32 2147483647, %v1526
    %vm1537 = vcmp.eq.f32.partialorder %v1536, 8.507059e+37
    %v1538 = vand.u32 %v1526, 2147483648
    %v1539 = vor.u32 1.1754944e-38, %v1538
    %v1540 = vsel %vm1537, %v1539, %v1535
    %v1541 = vmul.f32 1.0, %v1540
    %v1542 = vtanh.pop %v1485
    %v1543 = vmul.f32 %v1541, 0.0
    %1545 = vrot.lane.b32.xlu0 %v1542, 64
    %v1546 = vpop.permute.xlu0 %1545
    %v1548 = vmul.f32 %v1541, %v1546
    %1550 = vrot.lane.b32.xlu0 %v1548, 32
    %v1551 = vpop.permute.xlu0 %1550
    %v1553 = vadd.f32 %v1543, %v1551
    %v1554 = vtanh.pop %v1553
    %1556 = vrot.lane.b32.xlu0 %v1554, 64
    %v1557 = vpop.permute.xlu0 %1556
    %v1559 = vmul.f32 %v1541, %v1557
    %1561 = vrot.lane.b32.xlu0 %v1522, 32
    %v1562 = vpop.permute.xlu0 %1561
    %1564 = vst.msk [vmem:[#allocation2] sm:$0x3] %vm321, %v1562
    %1566 = vrot.lane.b32.xlu0 %v1559, 64
    %v1567 = vpop.permute.xlu0 %1566
    %1569 = vst.msk [vmem:[#allocation2 + $0x8] sm:$0xc0] %vm327, %v1567
    %v1570 = vsel %vm194, %v1562, 0
    %1572 = vmatpush.msra.mxu0 0.0
    %1573 = vmatpush.msra.mxu0 0.0
    %1574 = vmatpush.msra.mxu0 0.0
    %1575 = vmatpush.msra.mxu0 0.0
    %1576 = vmatpush.msra.mxu0 0.0
    %1577 = vmatpush.msra.mxu0 0.0
    %1578 = vmatpush.msra.mxu0 0.0
    %1579 = vmatpush.msra.mxu0 0.0
    %1580 = vmatpush.msra.mxu0 0.0
    %1581 = vmatpush.msra.mxu0 0.0
    %1582 = vmatpush.msra.mxu0 0.0
    %1583 = vmatpush.msra.mxu0 0.0
    %1584 = vmatpush.msra.mxu0 %v1435
    %1585 = vmatpush.msra.mxu0 %v1434
    %1586 = vmatpush.msra.mxu0 %v1433
    %1587 = vmatpush.msra.mxu0 %v1432
    %1588 = vmatmul.f32.gmra.mxu0 %v1570
    %v1589 = vpop.f32.mrf.mxu0
    %v1590 = vadd.f32 0.0, %v1589
    %1591 = vdwg.mxu0
    %v1593 = vrot.slane %v1590, 6
    %v1595 = vadd.f32 %v1404, %v1593
    %v1596 = vrot.slane %v1559, 6
    %1597 = vrot.lane.b32.xlu0 %v1596, 32
    %v1598 = vpop.permute.xlu0 %1597
    %v1599 = vsel %vm194, %v1598, 0
    %1601 = vmatpush.msra.mxu0 0.0
    %1602 = vmatpush.msra.mxu0 0.0
    %1603 = vmatpush.msra.mxu0 0.0
    %1604 = vmatpush.msra.mxu0 0.0
    %1605 = vmatpush.msra.mxu0 0.0
    %1606 = vmatpush.msra.mxu0 0.0
    %1607 = vmatpush.msra.mxu0 0.0
    %1608 = vmatpush.msra.mxu0 0.0
    %1609 = vmatpush.msra.mxu0 0.0
    %1610 = vmatpush.msra.mxu0 0.0
    %1611 = vmatpush.msra.mxu0 0.0
    %1612 = vmatpush.msra.mxu0 0.0
    %1613 = vmatpush.msra.mxu0 %v1440
    %1614 = vmatpush.msra.mxu0 %v1439
    %1615 = vmatpush.msra.mxu0 %v1438
    %1616 = vmatpush.msra.mxu0 %v1437
    %1617 = vmatmul.f32.gmra.mxu0 %v1599
    %v1618 = vpop.f32.mrf.mxu0
    %v1619 = vadd.f32 0.0, %v1618
    %1620 = vdwg.mxu0
    %v1622 = vrot.slane %v1619, 4
    %v1624 = vadd.f32 %v1430, %v1622
    %v1625 = vxor.u32 %v1595, 2147483648
    %v1626 = vmul.f32 %v1625, 1.442695
    %v1627 = vpow.pop %v1626
    %v1628 = vadd.f32 %v1627, 1.0
    %v1629 = vrcp.pop %v1628
    %v1630 = vmul.f32 %v1628, %v1629
    %v1631 = vsub.f32 1.0, %v1630
    %v1632 = vmul.f32 %v1629, %v1631
    %v1633 = vadd.f32 %v1629, %v1632
    %vm1634 = vweird.f32 %v1628
    %vm1635 = vweird.f32 %v1629
    %vm1636 = vmor %vm1634, %vm1635
    %v1637 = vsel %vm1636, %v1629, %v1633
    %v1638 = vand.u32 2147483647, %v1628
    %vm1639 = vcmp.eq.f32.partialorder %v1638, 8.507059e+37
    %v1640 = vand.u32 %v1628, 2147483648
    %v1641 = vor.u32 1.1754944e-38, %v1640
    %v1642 = vsel %vm1639, %v1641, %v1637
    %v1643 = vmul.f32 1.0, %v1642
    %v1644 = vtanh.pop %v1595
    %v1646 = vrot.slane %v1516, 6
    %v1648 = vmul.f32 %v1643, %v1646
    %1650 = vrot.lane.b32.xlu0 %v1644, 64
    %v1651 = vpop.permute.xlu0 %1650
    %v1653 = vmul.f32 %v1643, %v1651
    %1655 = vrot.lane.b32.xlu0 %v1653, 32
    %v1656 = vpop.permute.xlu0 %1655
    %v1658 = vadd.f32 %v1648, %v1656
    %v1659 = vtanh.pop %v1658
    %1661 = vrot.lane.b32.xlu0 %v1659, 64
    %v1662 = vpop.permute.xlu0 %1661
    %v1664 = vmul.f32 %v1643, %v1662
    %v1665 = vxor.u32 %v1624, 2147483648
    %v1666 = vmul.f32 %v1665, 1.442695
    %v1667 = vpow.pop %v1666
    %v1668 = vadd.f32 %v1667, 1.0
    %v1669 = vrcp.pop %v1668
    %v1670 = vmul.f32 %v1668, %v1669
    %v1671 = vsub.f32 1.0, %v1670
    %v1672 = vmul.f32 %v1669, %v1671
    %v1673 = vadd.f32 %v1669, %v1672
    %vm1674 = vweird.f32 %v1668
    %vm1675 = vweird.f32 %v1669
    %vm1676 = vmor %vm1674, %vm1675
    %v1677 = vsel %vm1676, %v1669, %v1673
    %v1678 = vand.u32 2147483647, %v1668
    %vm1679 = vcmp.eq.f32.partialorder %v1678, 8.507059e+37
    %v1680 = vand.u32 %v1668, 2147483648
    %v1681 = vor.u32 1.1754944e-38, %v1680
    %v1682 = vsel %vm1679, %v1681, %v1677
    %v1683 = vmul.f32 1.0, %v1682
    %v1684 = vtanh.pop %v1624
    %v1686 = vrot.slane %v1553, 2
    %v1688 = vmul.f32 %v1683, %v1686
    %1690 = vrot.lane.b32.xlu0 %v1684, 64
    %v1691 = vpop.permute.xlu0 %1690
    %v1693 = vmul.f32 %v1683, %v1691
    %1695 = vrot.lane.b32.xlu0 %v1693, 32
    %v1696 = vpop.permute.xlu0 %1695
    %v1698 = vadd.f32 %v1688, %v1696
    %v1699 = vtanh.pop %v1698
    %1701 = vrot.lane.b32.xlu0 %v1699, 64
    %v1702 = vpop.permute.xlu0 %1701
    %v1704 = vmul.f32 %v1683, %v1702
    %1706 = vrot.lane.b32.xlu0 %v1664, 32
    %v1707 = vpop.permute.xlu0 %1706
    %1709 = vst.msk [vmem:[#allocation2] sm:$0xc] %vm468, %v1707
    %1711 = vrot.lane.b32.xlu0 %v1704, 64
    %v1712 = vpop.permute.xlu0 %1711
    %1714 = vst.msk [vmem:[#allocation2 + $0x8] sm:$0x30] %vm474, %v1712
    %v1715 = vrot.slane %v1664, 2
    %1716 = vrot.lane.b32.xlu0 %v1715, 32
    %v1717 = vpop.permute.xlu0 %1716
    %v1718 = vsel %vm194, %v1717, 0
    %1720 = vmatpush.msra.mxu0 0.0
    %1721 = vmatpush.msra.mxu0 0.0
    %1722 = vmatpush.msra.mxu0 0.0
    %1723 = vmatpush.msra.mxu0 0.0
    %1724 = vmatpush.msra.mxu0 0.0
    %1725 = vmatpush.msra.mxu0 0.0
    %1726 = vmatpush.msra.mxu0 0.0
    %1727 = vmatpush.msra.mxu0 0.0
    %1728 = vmatpush.msra.mxu0 0.0
    %1729 = vmatpush.msra.mxu0 0.0
    %1730 = vmatpush.msra.mxu0 0.0
    %1731 = vmatpush.msra.mxu0 0.0
    %1732 = vmatpush.msra.mxu0 %v1435
    %1733 = vmatpush.msra.mxu0 %v1434
    %1734 = vmatpush.msra.mxu0 %v1433
    %1735 = vmatpush.msra.mxu0 %v1432
    %1736 = vmatmul.f32.gmra.mxu0 %v1718
    %v1737 = vpop.f32.mrf.mxu0
    %v1738 = vadd.f32 0.0, %v1737
    %1739 = vdwg.mxu0
    %v1741 = vrot.slane %v1738, 4
    %v1743 = vadd.f32 %v1404, %v1741
    %v1744 = vrot.slane %v1704, 4
    %1745 = vrot.lane.b32.xlu0 %v1744, 32
    %v1746 = vpop.permute.xlu0 %1745
    %v1747 = vsel %vm194, %v1746, 0
    %1749 = vmatpush.msra.mxu0 0.0
    %1750 = vmatpush.msra.mxu0 0.0
    %1751 = vmatpush.msra.mxu0 0.0
    %1752 = vmatpush.msra.mxu0 0.0
    %1753 = vmatpush.msra.mxu0 0.0
    %1754 = vmatpush.msra.mxu0 0.0
    %1755 = vmatpush.msra.mxu0 0.0
    %1756 = vmatpush.msra.mxu0 0.0
    %1757 = vmatpush.msra.mxu0 0.0
    %1758 = vmatpush.msra.mxu0 0.0
    %1759 = vmatpush.msra.mxu0 0.0
    %1760 = vmatpush.msra.mxu0 0.0
    %1761 = vmatpush.msra.mxu0 %v1440
    %1762 = vmatpush.msra.mxu0 %v1439
    %1763 = vmatpush.msra.mxu0 %v1438
    %1764 = vmatpush.msra.mxu0 %v1437
    %1765 = vmatmul.f32.gmra.mxu0 %v1747
    %v1766 = vpop.f32.mrf.mxu0
    %v1767 = vadd.f32 0.0, %v1766
    %1768 = vdwg.mxu0
    %v1770 = vrot.slane %v1767, 6
    %v1772 = vadd.f32 %v1430, %v1770
    %v1773 = vxor.u32 %v1743, 2147483648
    %v1774 = vmul.f32 %v1773, 1.442695
    %v1775 = vpow.pop %v1774
    %v1776 = vadd.f32 %v1775, 1.0
    %v1777 = vrcp.pop %v1776
    %v1778 = vmul.f32 %v1776, %v1777
    %v1779 = vsub.f32 1.0, %v1778
    %v1780 = vmul.f32 %v1777, %v1779
    %v1781 = vadd.f32 %v1777, %v1780
    %vm1782 = vweird.f32 %v1776
    %vm1783 = vweird.f32 %v1777
    %vm1784 = vmor %vm1782, %vm1783
    %v1785 = vsel %vm1784, %v1777, %v1781
    %v1786 = vand.u32 2147483647, %v1776
    %vm1787 = vcmp.eq.f32.partialorder %v1786, 8.507059e+37
    %v1788 = vand.u32 %v1776, 2147483648
    %v1789 = vor.u32 1.1754944e-38, %v1788
    %v1790 = vsel %vm1787, %v1789, %v1785
    %v1791 = vmul.f32 1.0, %v1790
    %v1792 = vtanh.pop %v1743
    %v1794 = vrot.slane %v1658, 6
    %v1796 = vmul.f32 %v1791, %v1794
    %1798 = vrot.lane.b32.xlu0 %v1792, 64
    %v1799 = vpop.permute.xlu0 %1798
    %v1801 = vmul.f32 %v1791, %v1799
    %1803 = vrot.lane.b32.xlu0 %v1801, 32
    %v1804 = vpop.permute.xlu0 %1803
    %v1806 = vadd.f32 %v1796, %v1804
    %v1807 = vtanh.pop %v1806
    %1809 = vrot.lane.b32.xlu0 %v1807, 64
    %v1810 = vpop.permute.xlu0 %1809
    %v1812 = vmul.f32 %v1791, %v1810
    %v1813 = vxor.u32 %v1772, 2147483648
    %v1814 = vmul.f32 %v1813, 1.442695
    %v1815 = vpow.pop %v1814
    %v1816 = vadd.f32 %v1815, 1.0
    %v1817 = vrcp.pop %v1816
    %v1818 = vmul.f32 %v1816, %v1817
    %v1819 = vsub.f32 1.0, %v1818
    %v1820 = vmul.f32 %v1817, %v1819
    %v1821 = vadd.f32 %v1817, %v1820
    %vm1822 = vweird.f32 %v1816
    %vm1823 = vweird.f32 %v1817
    %vm1824 = vmor %vm1822, %vm1823
    %v1825 = vsel %vm1824, %v1817, %v1821
    %v1826 = vand.u32 2147483647, %v1816
    %vm1827 = vcmp.eq.f32.partialorder %v1826, 8.507059e+37
    %v1828 = vand.u32 %v1816, 2147483648
    %v1829 = vor.u32 1.1754944e-38, %v1828
    %v1830 = vsel %vm1827, %v1829, %v1825
    %v1831 = vmul.f32 1.0, %v1830
    %v1832 = vtanh.pop %v1772
    %v1834 = vrot.slane %v1698, 2
    %v1836 = vmul.f32 %v1831, %v1834
    %1838 = vrot.lane.b32.xlu0 %v1832, 64
    %v1839 = vpop.permute.xlu0 %1838
    %v1841 = vmul.f32 %v1831, %v1839
    %1843 = vrot.lane.b32.xlu0 %v1841, 32
    %v1844 = vpop.permute.xlu0 %1843
    %v1846 = vadd.f32 %v1836, %v1844
    %v1847 = vtanh.pop %v1846
    %1849 = vrot.lane.b32.xlu0 %v1847, 64
    %v1850 = vpop.permute.xlu0 %1849
    %v1852 = vmul.f32 %v1831, %v1850
    %1854 = vrot.lane.b32.xlu0 %v1812, 32
    %v1855 = vpop.permute.xlu0 %1854
    %1857 = vst.msk [vmem:[#allocation2] sm:$0x30] %vm618, %v1855
    %1859 = vrot.lane.b32.xlu0 %v1852, 64
    %v1860 = vpop.permute.xlu0 %1859
    %1862 = vst.msk [vmem:[#allocation2 + $0x8] sm:$0xc] %vm624, %v1860
    %v1863 = vrot.slane %v1812, 4
    %1864 = vrot.lane.b32.xlu0 %v1863, 32
    %v1865 = vpop.permute.xlu0 %1864
    %v1866 = vsel %vm194, %v1865, 0
    %1868 = vmatpush.msra.mxu0 0.0
    %1869 = vmatpush.msra.mxu0 0.0
    %1870 = vmatpush.msra.mxu0 0.0
    %1871 = vmatpush.msra.mxu0 0.0
    %1872 = vmatpush.msra.mxu0 0.0
    %1873 = vmatpush.msra.mxu0 0.0
    %1874 = vmatpush.msra.mxu0 0.0
    %1875 = vmatpush.msra.mxu0 0.0
    %1876 = vmatpush.msra.mxu0 0.0
    %1877 = vmatpush.msra.mxu0 0.0
    %1878 = vmatpush.msra.mxu0 0.0
    %1879 = vmatpush.msra.mxu0 0.0
    %1880 = vmatpush.msra.mxu0 %v1435
    %1881 = vmatpush.msra.mxu0 %v1434
    %1882 = vmatpush.msra.mxu0 %v1433
    %1883 = vmatpush.msra.mxu0 %v1432
    %1884 = vmatmul.f32.gmra.mxu0 %v1866
    %v1885 = vpop.f32.mrf.mxu0
    %v1886 = vadd.f32 0.0, %v1885
    %1887 = vdwg.mxu0
    %v1889 = vrot.slane %v1886, 2
    %v1891 = vadd.f32 %v1404, %v1889
    %v1892 = vrot.slane %v1852, 2
    %1893 = vrot.lane.b32.xlu0 %v1892, 32
    %v1894 = vpop.permute.xlu0 %1893
    %v1895 = vsel %vm194, %v1894, 0
    %1897 = vmatpush.msra.mxu0 0.0
    %1898 = vmatpush.msra.mxu0 0.0
    %1899 = vmatpush.msra.mxu0 0.0
    %1900 = vmatpush.msra.mxu0 0.0
    %1901 = vmatpush.msra.mxu0 0.0
    %1902 = vmatpush.msra.mxu0 0.0
    %1903 = vmatpush.msra.mxu0 0.0
    %1904 = vmatpush.msra.mxu0 0.0
    %1905 = vmatpush.msra.mxu0 0.0
    %1906 = vmatpush.msra.mxu0 0.0
    %1907 = vmatpush.msra.mxu0 0.0
    %1908 = vmatpush.msra.mxu0 0.0
    %1909 = vmatpush.msra.mxu0 %v1440
    %1910 = vmatpush.msra.mxu0 %v1439
    %1911 = vmatpush.msra.mxu0 %v1438
    %1912 = vmatpush.msra.mxu0 %v1437
    %1913 = vmatmul.f32.gmra.mxu0 %v1895
    %v1914 = vpop.f32.mrf.mxu0
    %v1915 = vadd.f32 0.0, %v1914
    %1916 = vdwg.mxu0
    %v1917 = vadd.f32 %v1430, %v1915
    %v1918 = vxor.u32 %v1891, 2147483648
    %v1919 = vmul.f32 %v1918, 1.442695
    %v1920 = vpow.pop %v1919
    %v1921 = vadd.f32 %v1920, 1.0
    %v1922 = vrcp.pop %v1921
    %v1923 = vmul.f32 %v1921, %v1922
    %v1924 = vsub.f32 1.0, %v1923
    %v1925 = vmul.f32 %v1922, %v1924
    %v1926 = vadd.f32 %v1922, %v1925
    %vm1927 = vweird.f32 %v1921
    %vm1928 = vweird.f32 %v1922
    %vm1929 = vmor %vm1927, %vm1928
    %v1930 = vsel %vm1929, %v1922, %v1926
    %v1931 = vand.u32 2147483647, %v1921
    %vm1932 = vcmp.eq.f32.partialorder %v1931, 8.507059e+37
    %v1933 = vand.u32 %v1921, 2147483648
    %v1934 = vor.u32 1.1754944e-38, %v1933
    %v1935 = vsel %vm1932, %v1934, %v1930
    %v1936 = vmul.f32 1.0, %v1935
    %v1937 = vtanh.pop %v1891
    %v1939 = vrot.slane %v1806, 6
    %v1941 = vmul.f32 %v1936, %v1939
    %1943 = vrot.lane.b32.xlu0 %v1937, 64
    %v1944 = vpop.permute.xlu0 %1943
    %v1946 = vmul.f32 %v1936, %v1944
    %1948 = vrot.lane.b32.xlu0 %v1946, 32
    %v1949 = vpop.permute.xlu0 %1948
    %v1951 = vadd.f32 %v1941, %v1949
    %v1952 = vtanh.pop %v1951
    %1954 = vrot.lane.b32.xlu0 %v1952, 64
    %v1955 = vpop.permute.xlu0 %1954
    %v1957 = vmul.f32 %v1936, %v1955
    %v1958 = vxor.u32 %v1917, 2147483648
    %v1959 = vmul.f32 %v1958, 1.442695
    %v1960 = vpow.pop %v1959
    %v1961 = vadd.f32 %v1960, 1.0
    %v1962 = vrcp.pop %v1961
    %v1963 = vmul.f32 %v1961, %v1962
    %v1964 = vsub.f32 1.0, %v1963
    %v1965 = vmul.f32 %v1962, %v1964
    %v1966 = vadd.f32 %v1962, %v1965
    %vm1967 = vweird.f32 %v1961
    %vm1968 = vweird.f32 %v1962
    %vm1969 = vmor %vm1967, %vm1968
    %v1970 = vsel %vm1969, %v1962, %v1966
    %v1971 = vand.u32 2147483647, %v1961
    %vm1972 = vcmp.eq.f32.partialorder %v1971, 8.507059e+37
    %v1973 = vand.u32 %v1961, 2147483648
    %v1974 = vor.u32 1.1754944e-38, %v1973
    %v1975 = vsel %vm1972, %v1974, %v1970
    %v1976 = vmul.f32 1.0, %v1975
    %v1977 = vtanh.pop %v1917
    %v1979 = vrot.slane %v1846, 2
    %v1981 = vmul.f32 %v1976, %v1979
    %1983 = vrot.lane.b32.xlu0 %v1977, 64
    %v1984 = vpop.permute.xlu0 %1983
    %v1986 = vmul.f32 %v1976, %v1984
    %1988 = vrot.lane.b32.xlu0 %v1986, 32
    %v1989 = vpop.permute.xlu0 %1988
    %v1991 = vadd.f32 %v1981, %v1989
    %v1992 = vtanh.pop %v1991
    %1994 = vrot.lane.b32.xlu0 %v1992, 64
    %v1995 = vpop.permute.xlu0 %1994
    %v1997 = vmul.f32 %v1976, %v1995
    %1999 = vrot.lane.b32.xlu0 %v1957, 32
    %v2000 = vpop.permute.xlu0 %1999
    %2002 = vst.msk [vmem:[#allocation2] sm:$0xc0] %vm765, %v2000
    %2004 = vrot.lane.b32.xlu0 %v1997, 64
    %v2005 = vpop.permute.xlu0 %2004
    %2007 = vst.msk [vmem:[#allocation2 + $0x8] sm:$0x3] %vm771, %v2005
    %v2008 = vrot.slane %v1957, 6
    %2009 = vrot.lane.b32.xlu0 %v2008, 32
    %v2010 = vpop.permute.xlu0 %2009
    %v2011 = vsel %vm194, %v2010, 0
    %2013 = vmatpush.msra.mxu0 0.0
    %2014 = vmatpush.msra.mxu0 0.0
    %2015 = vmatpush.msra.mxu0 0.0
    %2016 = vmatpush.msra.mxu0 0.0
    %2017 = vmatpush.msra.mxu0 0.0
    %2018 = vmatpush.msra.mxu0 0.0
    %2019 = vmatpush.msra.mxu0 0.0
    %2020 = vmatpush.msra.mxu0 0.0
    %2021 = vmatpush.msra.mxu0 0.0
    %2022 = vmatpush.msra.mxu0 0.0
    %2023 = vmatpush.msra.mxu0 0.0
    %2024 = vmatpush.msra.mxu0 0.0
    %2025 = vmatpush.msra.mxu0 %v1435
    %2026 = vmatpush.msra.mxu0 %v1434
    %2027 = vmatpush.msra.mxu0 %v1433
    %2028 = vmatpush.msra.mxu0 %v1432
    %2029 = vmatmul.f32.gmra.mxu0 %v2011
    %v2030 = vpop.f32.mrf.mxu0
    %v2031 = vadd.f32 0.0, %v2030
    %2032 = vdwg.mxu0
    %v2033 = vadd.f32 %v1407, %v2031
    %2034 = vrot.lane.b32.xlu0 %v1997, 32
    %v2035 = vpop.permute.xlu0 %2034
    %v2036 = vsel %vm194, %v2035, 0
    %2038 = vmatpush.msra.mxu0 0.0
    %2039 = vmatpush.msra.mxu0 0.0
    %2040 = vmatpush.msra.mxu0 0.0
    %2041 = vmatpush.msra.mxu0 0.0
    %2042 = vmatpush.msra.mxu0 0.0
    %2043 = vmatpush.msra.mxu0 0.0
    %2044 = vmatpush.msra.mxu0 0.0
    %2045 = vmatpush.msra.mxu0 0.0
    %2046 = vmatpush.msra.mxu0 0.0
    %2047 = vmatpush.msra.mxu0 0.0
    %2048 = vmatpush.msra.mxu0 0.0
    %2049 = vmatpush.msra.mxu0 0.0
    %2050 = vmatpush.msra.mxu0 %v1440
    %2051 = vmatpush.msra.mxu0 %v1439
    %2052 = vmatpush.msra.mxu0 %v1438
    %2053 = vmatpush.msra.mxu0 %v1437
    %2054 = vmatmul.f32.gmra.mxu0 %v2036
    %v2055 = vpop.f32.mrf.mxu0
    %v2056 = vadd.f32 0.0, %v2055
    %2057 = vdwg.mxu0
    %v2059 = vrot.slane %v2056, 2
    %v2061 = vadd.f32 %v1427, %v2059
    %v2062 = vxor.u32 %v2033, 2147483648
    %v2063 = vmul.f32 %v2062, 1.442695
    %v2064 = vpow.pop %v2063
    %v2065 = vadd.f32 %v2064, 1.0
    %v2066 = vrcp.pop %v2065
    %v2067 = vmul.f32 %v2065, %v2066
    %v2068 = vsub.f32 1.0, %v2067
    %v2069 = vmul.f32 %v2066, %v2068
    %v2070 = vadd.f32 %v2066, %v2069
    %vm2071 = vweird.f32 %v2065
    %vm2072 = vweird.f32 %v2066
    %vm2073 = vmor %vm2071, %vm2072
    %v2074 = vsel %vm2073, %v2066, %v2070
    %v2075 = vand.u32 2147483647, %v2065
    %vm2076 = vcmp.eq.f32.partialorder %v2075, 8.507059e+37
    %v2077 = vand.u32 %v2065, 2147483648
    %v2078 = vor.u32 1.1754944e-38, %v2077
    %v2079 = vsel %vm2076, %v2078, %v2074
    %v2080 = vmul.f32 1.0, %v2079
    %v2081 = vtanh.pop %v2033
    %v2083 = vrot.slane %v1951, 6
    %v2085 = vmul.f32 %v2080, %v2083
    %2087 = vrot.lane.b32.xlu0 %v2081, 64
    %v2088 = vpop.permute.xlu0 %2087
    %v2090 = vmul.f32 %v2080, %v2088
    %2092 = vrot.lane.b32.xlu0 %v2090, 32
    %v2093 = vpop.permute.xlu0 %2092
    %v2095 = vadd.f32 %v2085, %v2093
    %v2096 = vtanh.pop %v2095
    %2098 = vrot.lane.b32.xlu0 %v2096, 64
    %v2099 = vpop.permute.xlu0 %2098
    %v2101 = vmul.f32 %v2080, %v2099
    %v2102 = vxor.u32 %v2061, 2147483648
    %v2103 = vmul.f32 %v2102, 1.442695
    %v2104 = vpow.pop %v2103
    %v2105 = vadd.f32 %v2104, 1.0
    %v2106 = vrcp.pop %v2105
    %v2107 = vmul.f32 %v2105, %v2106
    %v2108 = vsub.f32 1.0, %v2107
    %v2109 = vmul.f32 %v2106, %v2108
    %v2110 = vadd.f32 %v2106, %v2109
    %vm2111 = vweird.f32 %v2105
    %vm2112 = vweird.f32 %v2106
    %vm2113 = vmor %vm2111, %vm2112
    %v2114 = vsel %vm2113, %v2106, %v2110
    %v2115 = vand.u32 2147483647, %v2105
    %vm2116 = vcmp.eq.f32.partialorder %v2115, 8.507059e+37
    %v2117 = vand.u32 %v2105, 2147483648
    %v2118 = vor.u32 1.1754944e-38, %v2117
    %v2119 = vsel %vm2116, %v2118, %v2114
    %v2120 = vmul.f32 1.0, %v2119
    %v2121 = vtanh.pop %v2061
    %v2123 = vrot.slane %v1991, 2
    %v2125 = vmul.f32 %v2120, %v2123
    %2127 = vrot.lane.b32.xlu0 %v2121, 64
    %v2128 = vpop.permute.xlu0 %2127
    %v2130 = vmul.f32 %v2120, %v2128
    %2132 = vrot.lane.b32.xlu0 %v2130, 32
    %v2133 = vpop.permute.xlu0 %2132
    %v2135 = vadd.f32 %v2125, %v2133
    %v2136 = vtanh.pop %v2135
    %2138 = vrot.lane.b32.xlu0 %v2136, 64
    %v2139 = vpop.permute.xlu0 %2138
    %v2141 = vmul.f32 %v2120, %v2139
    %2143 = vrot.lane.b32.xlu0 %v2101, 32
    %v2144 = vpop.permute.xlu0 %2143
    %2146 = vst.msk [vmem:[#allocation2 + $0x8] sm:$0x3] %vm321, %v2144
    %2148 = vrot.lane.b32.xlu0 %v2141, 64
    %v2149 = vpop.permute.xlu0 %2148
    %2151 = vst.msk [vmem:[#allocation2] sm:$0xc0] %vm327, %v2149
    %v2152 = vsel %vm194, %v2144, 0
    %2154 = vmatpush.msra.mxu0 0.0
    %2155 = vmatpush.msra.mxu0 0.0
    %2156 = vmatpush.msra.mxu0 0.0
    %2157 = vmatpush.msra.mxu0 0.0
    %2158 = vmatpush.msra.mxu0 0.0
    %2159 = vmatpush.msra.mxu0 0.0
    %2160 = vmatpush.msra.mxu0 0.0
    %2161 = vmatpush.msra.mxu0 0.0
    %2162 = vmatpush.msra.mxu0 0.0
    %2163 = vmatpush.msra.mxu0 0.0
    %2164 = vmatpush.msra.mxu0 0.0
    %2165 = vmatpush.msra.mxu0 0.0
    %2166 = vmatpush.msra.mxu0 %v1435
    %2167 = vmatpush.msra.mxu0 %v1434
    %2168 = vmatpush.msra.mxu0 %v1433
    %2169 = vmatpush.msra.mxu0 %v1432
    %2170 = vmatmul.f32.gmra.mxu0 %v2152
    %v2171 = vpop.f32.mrf.mxu0
    %v2172 = vadd.f32 0.0, %v2171
    %2173 = vdwg.mxu0
    %v2175 = vrot.slane %v2172, 6
    %v2177 = vadd.f32 %v1407, %v2175
    %v2178 = vrot.slane %v2141, 6
    %2179 = vrot.lane.b32.xlu0 %v2178, 32
    %v2180 = vpop.permute.xlu0 %2179
    %v2181 = vsel %vm194, %v2180, 0
    %2183 = vmatpush.msra.mxu0 0.0
    %2184 = vmatpush.msra.mxu0 0.0
    %2185 = vmatpush.msra.mxu0 0.0
    %2186 = vmatpush.msra.mxu0 0.0
    %2187 = vmatpush.msra.mxu0 0.0
    %2188 = vmatpush.msra.mxu0 0.0
    %2189 = vmatpush.msra.mxu0 0.0
    %2190 = vmatpush.msra.mxu0 0.0
    %2191 = vmatpush.msra.mxu0 0.0
    %2192 = vmatpush.msra.mxu0 0.0
    %2193 = vmatpush.msra.mxu0 0.0
    %2194 = vmatpush.msra.mxu0 0.0
    %2195 = vmatpush.msra.mxu0 %v1440
    %2196 = vmatpush.msra.mxu0 %v1439
    %2197 = vmatpush.msra.mxu0 %v1438
    %2198 = vmatpush.msra.mxu0 %v1437
    %2199 = vmatmul.f32.gmra.mxu0 %v2181
    %v2200 = vpop.f32.mrf.mxu0
    %v2201 = vadd.f32 0.0, %v2200
    %2202 = vdwg.mxu0
    %v2204 = vrot.slane %v2201, 4
    %v2206 = vadd.f32 %v1427, %v2204
    %v2207 = vxor.u32 %v2177, 2147483648
    %v2208 = vmul.f32 %v2207, 1.442695
    %v2209 = vpow.pop %v2208
    %v2210 = vadd.f32 %v2209, 1.0
    %v2211 = vrcp.pop %v2210
    %v2212 = vmul.f32 %v2210, %v2211
    %v2213 = vsub.f32 1.0, %v2212
    %v2214 = vmul.f32 %v2211, %v2213
    %v2215 = vadd.f32 %v2211, %v2214
    %vm2216 = vweird.f32 %v2210
    %vm2217 = vweird.f32 %v2211
    %vm2218 = vmor %vm2216, %vm2217
    %v2219 = vsel %vm2218, %v2211, %v2215
    %v2220 = vand.u32 2147483647, %v2210
    %vm2221 = vcmp.eq.f32.partialorder %v2220, 8.507059e+37
    %v2222 = vand.u32 %v2210, 2147483648
    %v2223 = vor.u32 1.1754944e-38, %v2222
    %v2224 = vsel %vm2221, %v2223, %v2219
    %v2225 = vmul.f32 1.0, %v2224
    %v2226 = vtanh.pop %v2177
    %v2228 = vrot.slane %v2095, 6
    %v2230 = vmul.f32 %v2225, %v2228
    %2232 = vrot.lane.b32.xlu0 %v2226, 64
    %v2233 = vpop.permute.xlu0 %2232
    %v2235 = vmul.f32 %v2225, %v2233
    %2237 = vrot.lane.b32.xlu0 %v2235, 32
    %v2238 = vpop.permute.xlu0 %2237
    %v2240 = vadd.f32 %v2230, %v2238
    %v2241 = vtanh.pop %v2240
    %2243 = vrot.lane.b32.xlu0 %v2241, 64
    %v2244 = vpop.permute.xlu0 %2243
    %v2246 = vmul.f32 %v2225, %v2244
    %v2247 = vxor.u32 %v2206, 2147483648
    %v2248 = vmul.f32 %v2247, 1.442695
    %v2249 = vpow.pop %v2248
    %v2250 = vadd.f32 %v2249, 1.0
    %v2251 = vrcp.pop %v2250
    %v2252 = vmul.f32 %v2250, %v2251
    %v2253 = vsub.f32 1.0, %v2252
    %v2254 = vmul.f32 %v2251, %v2253
    %v2255 = vadd.f32 %v2251, %v2254
    %vm2256 = vweird.f32 %v2250
    %vm2257 = vweird.f32 %v2251
    %vm2258 = vmor %vm2256, %vm2257
    %v2259 = vsel %vm2258, %v2251, %v2255
    %v2260 = vand.u32 2147483647, %v2250
    %vm2261 = vcmp.eq.f32.partialorder %v2260, 8.507059e+37
    %v2262 = vand.u32 %v2250, 2147483648
    %v2263 = vor.u32 1.1754944e-38, %v2262
    %v2264 = vsel %vm2261, %v2263, %v2259
    %v2265 = vmul.f32 1.0, %v2264
    %v2266 = vtanh.pop %v2206
    %v2268 = vrot.slane %v2135, 2
    %v2270 = vmul.f32 %v2265, %v2268
    %2272 = vrot.lane.b32.xlu0 %v2266, 64
    %v2273 = vpop.permute.xlu0 %2272
    %v2275 = vmul.f32 %v2265, %v2273
    %2277 = vrot.lane.b32.xlu0 %v2275, 32
    %v2278 = vpop.permute.xlu0 %2277
    %v2280 = vadd.f32 %v2270, %v2278
    %v2281 = vtanh.pop %v2280
    %2283 = vrot.lane.b32.xlu0 %v2281, 64
    %v2284 = vpop.permute.xlu0 %2283
    %v2286 = vmul.f32 %v2265, %v2284
    %2288 = vrot.lane.b32.xlu0 %v2246, 32
    %v2289 = vpop.permute.xlu0 %2288
    %2291 = vst.msk [vmem:[#allocation2 + $0x8] sm:$0xc] %vm468, %v2289
    %2293 = vrot.lane.b32.xlu0 %v2286, 64
    %v2294 = vpop.permute.xlu0 %2293
    %2296 = vst.msk [vmem:[#allocation2] sm:$0x30] %vm474, %v2294
    %v2297 = vrot.slane %v2246, 2
    %2298 = vrot.lane.b32.xlu0 %v2297, 32
    %v2299 = vpop.permute.xlu0 %2298
    %v2300 = vsel %vm194, %v2299, 0
    %2302 = vmatpush.msra.mxu0 0.0
    %2303 = vmatpush.msra.mxu0 0.0
    %2304 = vmatpush.msra.mxu0 0.0
    %2305 = vmatpush.msra.mxu0 0.0
    %2306 = vmatpush.msra.mxu0 0.0
    %2307 = vmatpush.msra.mxu0 0.0
    %2308 = vmatpush.msra.mxu0 0.0
    %2309 = vmatpush.msra.mxu0 0.0
    %2310 = vmatpush.msra.mxu0 0.0
    %2311 = vmatpush.msra.mxu0 0.0
    %2312 = vmatpush.msra.mxu0 0.0
    %2313 = vmatpush.msra.mxu0 0.0
    %2314 = vmatpush.msra.mxu0 %v1435
    %2315 = vmatpush.msra.mxu0 %v1434
    %2316 = vmatpush.msra.mxu0 %v1433
    %2317 = vmatpush.msra.mxu0 %v1432
    %2318 = vmatmul.f32.gmra.mxu0 %v2300
    %v2319 = vpop.f32.mrf.mxu0
    %v2320 = vadd.f32 0.0, %v2319
    %2321 = vdwg.mxu0
    %v2323 = vrot.slane %v2320, 4
    %v2325 = vadd.f32 %v1407, %v2323
    %v2326 = vrot.slane %v2286, 4
    %2327 = vrot.lane.b32.xlu0 %v2326, 32
    %v2328 = vpop.permute.xlu0 %2327
    %v2329 = vsel %vm194, %v2328, 0
    %2331 = vmatpush.msra.mxu0 0.0
    %2332 = vmatpush.msra.mxu0 0.0
    %2333 = vmatpush.msra.mxu0 0.0
    %2334 = vmatpush.msra.mxu0 0.0
    %2335 = vmatpush.msra.mxu0 0.0
    %2336 = vmatpush.msra.mxu0 0.0
    %2337 = vmatpush.msra.mxu0 0.0
    %2338 = vmatpush.msra.mxu0 0.0
    %2339 = vmatpush.msra.mxu0 0.0
    %2340 = vmatpush.msra.mxu0 0.0
    %2341 = vmatpush.msra.mxu0 0.0
    %2342 = vmatpush.msra.mxu0 0.0
    %2343 = vmatpush.msra.mxu0 %v1440
    %2344 = vmatpush.msra.mxu0 %v1439
    %2345 = vmatpush.msra.mxu0 %v1438
    %2346 = vmatpush.msra.mxu0 %v1437
    %2347 = vmatmul.f32.gmra.mxu0 %v2329
    %v2348 = vpop.f32.mrf.mxu0
    %v2349 = vadd.f32 0.0, %v2348
    %2350 = vdwg.mxu0
    %v2352 = vrot.slane %v2349, 6
    %v2354 = vadd.f32 %v1427, %v2352
    %v2355 = vxor.u32 %v2325, 2147483648
    %v2356 = vmul.f32 %v2355, 1.442695
    %v2357 = vpow.pop %v2356
    %v2358 = vadd.f32 %v2357, 1.0
    %v2359 = vrcp.pop %v2358
    %v2360 = vmul.f32 %v2358, %v2359
    %v2361 = vsub.f32 1.0, %v2360
    %v2362 = vmul.f32 %v2359, %v2361
    %v2363 = vadd.f32 %v2359, %v2362
    %vm2364 = vweird.f32 %v2358
    %vm2365 = vweird.f32 %v2359
    %vm2366 = vmor %vm2364, %vm2365
    %v2367 = vsel %vm2366, %v2359, %v2363
    %v2368 = vand.u32 2147483647, %v2358
    %vm2369 = vcmp.eq.f32.partialorder %v2368, 8.507059e+37
    %v2370 = vand.u32 %v2358, 2147483648
    %v2371 = vor.u32 1.1754944e-38, %v2370
    %v2372 = vsel %vm2369, %v2371, %v2367
    %v2373 = vmul.f32 1.0, %v2372
    %v2374 = vtanh.pop %v2325
    %v2376 = vrot.slane %v2240, 6
    %v2378 = vmul.f32 %v2373, %v2376
    %2380 = vrot.lane.b32.xlu0 %v2374, 64
    %v2381 = vpop.permute.xlu0 %2380
    %v2383 = vmul.f32 %v2373, %v2381
    %2385 = vrot.lane.b32.xlu0 %v2383, 32
    %v2386 = vpop.permute.xlu0 %2385
    %v2388 = vadd.f32 %v2378, %v2386
    %v2389 = vtanh.pop %v2388
    %2391 = vrot.lane.b32.xlu0 %v2389, 64
    %v2392 = vpop.permute.xlu0 %2391
    %v2394 = vmul.f32 %v2373, %v2392
    %v2395 = vxor.u32 %v2354, 2147483648
    %v2396 = vmul.f32 %v2395, 1.442695
    %v2397 = vpow.pop %v2396
    %v2398 = vadd.f32 %v2397, 1.0
    %v2399 = vrcp.pop %v2398
    %v2400 = vmul.f32 %v2398, %v2399
    %v2401 = vsub.f32 1.0, %v2400
    %v2402 = vmul.f32 %v2399, %v2401
    %v2403 = vadd.f32 %v2399, %v2402
    %vm2404 = vweird.f32 %v2398
    %vm2405 = vweird.f32 %v2399
    %vm2406 = vmor %vm2404, %vm2405
    %v2407 = vsel %vm2406, %v2399, %v2403
    %v2408 = vand.u32 2147483647, %v2398
    %vm2409 = vcmp.eq.f32.partialorder %v2408, 8.507059e+37
    %v2410 = vand.u32 %v2398, 2147483648
    %v2411 = vor.u32 1.1754944e-38, %v2410
    %v2412 = vsel %vm2409, %v2411, %v2407
    %v2413 = vmul.f32 1.0, %v2412
    %v2414 = vtanh.pop %v2354
    %v2416 = vrot.slane %v2280, 2
    %v2418 = vmul.f32 %v2413, %v2416
    %2420 = vrot.lane.b32.xlu0 %v2414, 64
    %v2421 = vpop.permute.xlu0 %2420
    %v2423 = vmul.f32 %v2413, %v2421
    %2425 = vrot.lane.b32.xlu0 %v2423, 32
    %v2426 = vpop.permute.xlu0 %2425
    %v2428 = vadd.f32 %v2418, %v2426
    %v2429 = vtanh.pop %v2428
    %2431 = vrot.lane.b32.xlu0 %v2429, 64
    %v2432 = vpop.permute.xlu0 %2431
    %v2434 = vmul.f32 %v2413, %v2432
    %2436 = vrot.lane.b32.xlu0 %v2394, 32
    %v2437 = vpop.permute.xlu0 %2436
    %2439 = vst.msk [vmem:[#allocation2 + $0x8] sm:$0x30] %vm618, %v2437
    %2441 = vrot.lane.b32.xlu0 %v2434, 64
    %v2442 = vpop.permute.xlu0 %2441
    %2444 = vst.msk [vmem:[#allocation2] sm:$0xc] %vm624, %v2442
    %v2445 = vrot.slane %v2394, 4
    %2446 = vrot.lane.b32.xlu0 %v2445, 32
    %v2447 = vpop.permute.xlu0 %2446
    %v2448 = vsel %vm194, %v2447, 0
    %2450 = vmatpush.msra.mxu0 0.0
    %2451 = vmatpush.msra.mxu0 0.0
    %2452 = vmatpush.msra.mxu0 0.0
    %2453 = vmatpush.msra.mxu0 0.0
    %2454 = vmatpush.msra.mxu0 0.0
    %2455 = vmatpush.msra.mxu0 0.0
    %2456 = vmatpush.msra.mxu0 0.0
    %2457 = vmatpush.msra.mxu0 0.0
    %2458 = vmatpush.msra.mxu0 0.0
    %2459 = vmatpush.msra.mxu0 0.0
    %2460 = vmatpush.msra.mxu0 0.0
    %2461 = vmatpush.msra.mxu0 0.0
    %2462 = vmatpush.msra.mxu0 %v1435
    %2463 = vmatpush.msra.mxu0 %v1434
    %2464 = vmatpush.msra.mxu0 %v1433
    %2465 = vmatpush.msra.mxu0 %v1432
    %2466 = vmatmul.f32.gmra.mxu0 %v2448
    %v2467 = vpop.f32.mrf.mxu0
    %v2468 = vadd.f32 0.0, %v2467
    %2469 = vdwg.mxu0
    %v2471 = vrot.slane %v2468, 2
    %v2473 = vadd.f32 %v1407, %v2471
    %v2474 = vrot.slane %v2434, 2
    %2475 = vrot.lane.b32.xlu0 %v2474, 32
    %v2476 = vpop.permute.xlu0 %2475
    %v2477 = vsel %vm194, %v2476, 0
    %2479 = vmatpush.msra.mxu0 0.0
    %2480 = vmatpush.msra.mxu0 0.0
    %2481 = vmatpush.msra.mxu0 0.0
    %2482 = vmatpush.msra.mxu0 0.0
    %2483 = vmatpush.msra.mxu0 0.0
    %2484 = vmatpush.msra.mxu0 0.0
    %2485 = vmatpush.msra.mxu0 0.0
    %2486 = vmatpush.msra.mxu0 0.0
    %2487 = vmatpush.msra.mxu0 0.0
    %2488 = vmatpush.msra.mxu0 0.0
    %2489 = vmatpush.msra.mxu0 0.0
    %2490 = vmatpush.msra.mxu0 0.0
    %2491 = vmatpush.msra.mxu0 %v1440
    %2492 = vmatpush.msra.mxu0 %v1439
    %2493 = vmatpush.msra.mxu0 %v1438
    %2494 = vmatpush.msra.mxu0 %v1437
    %2495 = vmatmul.f32.gmra.mxu0 %v2477
    %v2496 = vpop.f32.mrf.mxu0
    %v2497 = vadd.f32 0.0, %v2496
    %2498 = vdwg.mxu0
    %v2499 = vadd.f32 %v1427, %v2497
    %v2500 = vxor.u32 %v2473, 2147483648
    %v2501 = vmul.f32 %v2500, 1.442695
    %v2502 = vpow.pop %v2501
    %v2503 = vadd.f32 %v2502, 1.0
    %v2504 = vrcp.pop %v2503
    %v2505 = vmul.f32 %v2503, %v2504
    %v2506 = vsub.f32 1.0, %v2505
    %v2507 = vmul.f32 %v2504, %v2506
    %v2508 = vadd.f32 %v2504, %v2507
    %vm2509 = vweird.f32 %v2503
    %vm2510 = vweird.f32 %v2504
    %vm2511 = vmor %vm2509, %vm2510
    %v2512 = vsel %vm2511, %v2504, %v2508
    %v2513 = vand.u32 2147483647, %v2503
    %vm2514 = vcmp.eq.f32.partialorder %v2513, 8.507059e+37
    %v2515 = vand.u32 %v2503, 2147483648
    %v2516 = vor.u32 1.1754944e-38, %v2515
    %v2517 = vsel %vm2514, %v2516, %v2512
    %v2518 = vmul.f32 1.0, %v2517
    %v2519 = vtanh.pop %v2473
    %v2521 = vrot.slane %v2388, 6
    %v2523 = vmul.f32 %v2518, %v2521
    %2525 = vrot.lane.b32.xlu0 %v2519, 64
    %v2526 = vpop.permute.xlu0 %2525
    %v2528 = vmul.f32 %v2518, %v2526
    %2530 = vrot.lane.b32.xlu0 %v2528, 32
    %v2531 = vpop.permute.xlu0 %2530
    %v2533 = vadd.f32 %v2523, %v2531
    %v2534 = vtanh.pop %v2533
    %2536 = vrot.lane.b32.xlu0 %v2534, 64
    %v2537 = vpop.permute.xlu0 %2536
    %v2539 = vmul.f32 %v2518, %v2537
    %v2540 = vxor.u32 %v2499, 2147483648
    %v2541 = vmul.f32 %v2540, 1.442695
    %v2542 = vpow.pop %v2541
    %v2543 = vadd.f32 %v2542, 1.0
    %v2544 = vrcp.pop %v2543
    %v2545 = vmul.f32 %v2543, %v2544
    %v2546 = vsub.f32 1.0, %v2545
    %v2547 = vmul.f32 %v2544, %v2546
    %v2548 = vadd.f32 %v2544, %v2547
    %vm2549 = vweird.f32 %v2543
    %vm2550 = vweird.f32 %v2544
    %vm2551 = vmor %vm2549, %vm2550
    %v2552 = vsel %vm2551, %v2544, %v2548
    %v2553 = vand.u32 2147483647, %v2543
    %vm2554 = vcmp.eq.f32.partialorder %v2553, 8.507059e+37
    %v2555 = vand.u32 %v2543, 2147483648
    %v2556 = vor.u32 1.1754944e-38, %v2555
    %v2557 = vsel %vm2554, %v2556, %v2552
    %v2558 = vmul.f32 1.0, %v2557
    %v2559 = vtanh.pop %v2499
    %v2561 = vrot.slane %v2428, 2
    %v2563 = vmul.f32 %v2558, %v2561
    %2565 = vrot.lane.b32.xlu0 %v2559, 64
    %v2566 = vpop.permute.xlu0 %2565
    %v2568 = vmul.f32 %v2558, %v2566
    %2570 = vrot.lane.b32.xlu0 %v2568, 32
    %v2571 = vpop.permute.xlu0 %2570
    %v2573 = vadd.f32 %v2563, %v2571
    %v2574 = vtanh.pop %v2573
    %2576 = vrot.lane.b32.xlu0 %v2574, 64
    %v2577 = vpop.permute.xlu0 %2576
    %v2579 = vmul.f32 %v2558, %v2577
    %2581 = vrot.lane.b32.xlu0 %v2539, 32
    %v2582 = vpop.permute.xlu0 %2581
    %2584 = vst.msk [vmem:[#allocation2 + $0x8] sm:$0xc0] %vm765, %v2582
    %2586 = vrot.lane.b32.xlu0 %v2579, 64
    %v2587 = vpop.permute.xlu0 %2586
    %2589 = vst.msk [vmem:[#allocation2] sm:$0x3] %vm771, %v2587
    %v2590 = vld [vmem:[#allocation2] sm:$0xff]
    %v2591 = vld [vmem:[#allocation2 + $0x8] sm:$0xff]
    %v2592 = vld [vmem:[#allocation9] sm:$0xff]
    %v2593 = vld [vmem:[#allocation9 + $0x8] sm:$0xff]
    %v2594 = vld [vmem:[#allocation9 + $0x10] sm:$0xff]
    %v2595 = vld [vmem:[#allocation9 + $0x18] sm:$0xff]
    %v2596 = vld [vmem:[#allocation9 + $0x20] sm:$0xff]
    %v2597 = vld [vmem:[#allocation9 + $0x28] sm:$0xff]
    %v2598 = vld [vmem:[#allocation9 + $0x30] sm:$0xff]
    %v2599 = vld [vmem:[#allocation9 + $0x38] sm:$0xff]
    %v2600 = vld [vmem:[#allocation9 + $0x40] sm:$0xff]
    %v2601 = vld [vmem:[#allocation9 + $0x48] sm:$0xff]
    %v2602 = vld [vmem:[#allocation9 + $0x50] sm:$0xff]
    %v2603 = vld [vmem:[#allocation9 + $0x58] sm:$0xff]
    %v2604 = vld [vmem:[#allocation9 + $0x60] sm:$0xff]
    %v2605 = vld [vmem:[#allocation9 + $0x68] sm:$0xff]
    %v2606 = vld [vmem:[#allocation9 + $0x70] sm:$0xff]
    %v2607 = vld [vmem:[#allocation9 + $0x78] sm:$0xff]
    %v2608 = vld [vmem:[%s8] sm:$0x3]
    %v2610 = vperm.slane %v2608, 0
    %v2611 = vperm.slane %v2608, 1
    %v2615 = vsel %vm1379, %v2590, 0
    %v2618 = vsel %vm1379, %v2591, 0
    %2620 = vmatpush.msra.mxu0 0.0
    %2621 = vmatpush.msra.mxu0 0.0
    %2622 = vmatpush.msra.mxu0 0.0
    %2623 = vmatpush.msra.mxu0 0.0
    %2624 = vmatpush.msra.mxu0 0.0
    %2625 = vmatpush.msra.mxu0 0.0
    %2626 = vmatpush.msra.mxu0 0.0
    %2627 = vmatpush.msra.mxu0 0.0
    %2628 = vmatpush.msra.mxu0 %v2606
    %2629 = vmatpush.msra.mxu0 %v2604
    %2630 = vmatpush.msra.mxu0 %v2602
    %2631 = vmatpush.msra.mxu0 %v2600
    %2632 = vmatpush.msra.mxu0 %v2598
    %2633 = vmatpush.msra.mxu0 %v2596
    %2634 = vmatpush.msra.mxu0 %v2594
    %2635 = vmatpush.msra.mxu0 %v2592
    %2636 = vmatmul.f32.gmra.mxu0 %v2615
    %v2637 = vpop.f32.mrf.mxu0
    %v2638 = vadd.f32 %v2610, %v2637
    %2639 = vmatmul.f32.gmra.mxu0 %v2618
    %v2640 = vpop.f32.mrf.mxu0
    %v2641 = vadd.f32 %v2610, %v2640
    %2642 = vdwg.mxu0
    %2643 = vmatpush.msra.mxu0 0.0
    %2644 = vmatpush.msra.mxu0 0.0
    %2645 = vmatpush.msra.mxu0 0.0
    %2646 = vmatpush.msra.mxu0 0.0
    %2647 = vmatpush.msra.mxu0 0.0
    %2648 = vmatpush.msra.mxu0 0.0
    %2649 = vmatpush.msra.mxu0 0.0
    %2650 = vmatpush.msra.mxu0 0.0
    %2651 = vmatpush.msra.mxu0 %v2607
    %2652 = vmatpush.msra.mxu0 %v2605
    %2653 = vmatpush.msra.mxu0 %v2603
    %2654 = vmatpush.msra.mxu0 %v2601
    %2655 = vmatpush.msra.mxu0 %v2599
    %2656 = vmatpush.msra.mxu0 %v2597
    %2657 = vmatpush.msra.mxu0 %v2595
    %2658 = vmatpush.msra.mxu0 %v2593
    %2659 = vmatmul.f32.gmra.mxu0 %v2615
    %v2660 = vpop.f32.mrf.mxu0
    %v2661 = vadd.f32 %v2611, %v2660
    %2662 = vmatmul.f32.gmra.mxu0 %v2618
    %v2663 = vpop.f32.mrf.mxu0
    %v2664 = vadd.f32 %v2611, %v2663
    %2665 = vdwg.mxu0
    %v2666 = vld [vmem:[#allocation11] sm:$0xff]
    %v2667 = vld [vmem:[#allocation11 + $0x8] sm:$0xff]
    %v2668 = vld [vmem:[#allocation11 + $0x10] sm:$0xff]
    %v2669 = vld [vmem:[#allocation11 + $0x18] sm:$0xff]
    %s2670 = scalar_lea.vmem [#allocation11], 32
    %v2671 = vld [vmem:[%s2670] sm:$0xff]
    %v2672 = vld [vmem:[%s2670 + $0x8] sm:$0xff]
    %v2673 = vld [vmem:[%s2670 + $0x10] sm:$0xff]
    %v2674 = vld [vmem:[%s2670 + $0x18] sm:$0xff]
    %2675 = vmatpush.msra.mxu0 0.0
    %2676 = vmatpush.msra.mxu0 0.0
    %2677 = vmatpush.msra.mxu0 0.0
    %2678 = vmatpush.msra.mxu0 0.0
    %2679 = vmatpush.msra.mxu0 0.0
    %2680 = vmatpush.msra.mxu0 0.0
    %2681 = vmatpush.msra.mxu0 0.0
    %2682 = vmatpush.msra.mxu0 0.0
    %2683 = vmatpush.msra.mxu0 0.0
    %2684 = vmatpush.msra.mxu0 0.0
    %2685 = vmatpush.msra.mxu0 0.0
    %2686 = vmatpush.msra.mxu0 0.0
    %2687 = vmatpush.msra.mxu0 %v2669
    %2688 = vmatpush.msra.mxu0 %v2668
    %2689 = vmatpush.msra.mxu0 %v2667
    %2690 = vmatpush.msra.mxu0 %v2666
    %2691 = vmatmul.f32.gmra.mxu0 %v196
    %v2692 = vpop.f32.mrf.mxu0
    %v2693 = vadd.f32 0.0, %v2692
    %2694 = vdwg.mxu0
    %v2695 = vadd.f32 %v2638, %v2693
    %2696 = vmatpush.msra.mxu0 0.0
    %2697 = vmatpush.msra.mxu0 0.0
    %2698 = vmatpush.msra.mxu0 0.0
    %2699 = vmatpush.msra.mxu0 0.0
    %2700 = vmatpush.msra.mxu0 0.0
    %2701 = vmatpush.msra.mxu0 0.0
    %2702 = vmatpush.msra.mxu0 0.0
    %2703 = vmatpush.msra.mxu0 0.0
    %2704 = vmatpush.msra.mxu0 0.0
    %2705 = vmatpush.msra.mxu0 0.0
    %2706 = vmatpush.msra.mxu0 0.0
    %2707 = vmatpush.msra.mxu0 0.0
    %2708 = vmatpush.msra.mxu0 %v2674
    %2709 = vmatpush.msra.mxu0 %v2673
    %2710 = vmatpush.msra.mxu0 %v2672
    %2711 = vmatpush.msra.mxu0 %v2671
    %2712 = vmatmul.f32.gmra.mxu0 %v196
    %v2713 = vpop.f32.mrf.mxu0
    %v2714 = vadd.f32 0.0, %v2713
    %2715 = vdwg.mxu0
    %v2717 = vrot.slane %v2714, 2
    %v2719 = vadd.f32 %v2664, %v2717
    %v2720 = vxor.u32 %v2695, 2147483648
    %v2721 = vmul.f32 %v2720, 1.442695
    %v2722 = vpow.pop %v2721
    %v2723 = vadd.f32 %v2722, 1.0
    %v2724 = vrcp.pop %v2723
    %v2725 = vmul.f32 %v2723, %v2724
    %v2726 = vsub.f32 1.0, %v2725
    %v2727 = vmul.f32 %v2724, %v2726
    %v2728 = vadd.f32 %v2724, %v2727
    %vm2729 = vweird.f32 %v2723
    %vm2730 = vweird.f32 %v2724
    %vm2731 = vmor %vm2729, %vm2730
    %v2732 = vsel %vm2731, %v2724, %v2728
    %v2733 = vand.u32 2147483647, %v2723
    %vm2734 = vcmp.eq.f32.partialorder %v2733, 8.507059e+37
    %v2735 = vand.u32 %v2723, 2147483648
    %v2736 = vor.u32 1.1754944e-38, %v2735
    %v2737 = vsel %vm2734, %v2736, %v2732
    %v2738 = vmul.f32 1.0, %v2737
    %v2739 = vtanh.pop %v2695
    %v2740 = vmul.f32 %v2738, 0.0
    %2742 = vrot.lane.b32.xlu0 %v2739, 64
    %v2743 = vpop.permute.xlu0 %2742
    %v2745 = vmul.f32 %v2738, %v2743
    %2747 = vrot.lane.b32.xlu0 %v2745, 32
    %v2748 = vpop.permute.xlu0 %2747
    %v2750 = vadd.f32 %v2740, %v2748
    %v2751 = vtanh.pop %v2750
    %2753 = vrot.lane.b32.xlu0 %v2751, 64
    %v2754 = vpop.permute.xlu0 %2753
    %v2756 = vmul.f32 %v2738, %v2754
    %v2757 = vxor.u32 %v2719, 2147483648
    %v2758 = vmul.f32 %v2757, 1.442695
    %v2759 = vpow.pop %v2758
    %v2760 = vadd.f32 %v2759, 1.0
    %v2761 = vrcp.pop %v2760
    %v2762 = vmul.f32 %v2760, %v2761
    %v2763 = vsub.f32 1.0, %v2762
    %v2764 = vmul.f32 %v2761, %v2763
    %v2765 = vadd.f32 %v2761, %v2764
    %vm2766 = vweird.f32 %v2760
    %vm2767 = vweird.f32 %v2761
    %vm2768 = vmor %vm2766, %vm2767
    %v2769 = vsel %vm2768, %v2761, %v2765
    %v2770 = vand.u32 2147483647, %v2760
    %vm2771 = vcmp.eq.f32.partialorder %v2770, 8.507059e+37
    %v2772 = vand.u32 %v2760, 2147483648
    %v2773 = vor.u32 1.1754944e-38, %v2772
    %v2774 = vsel %vm2771, %v2773, %v2769
    %v2775 = vmul.f32 1.0, %v2774
    %v2776 = vtanh.pop %v2719
    %v2777 = vmul.f32 %v2775, 0.0
    %2779 = vrot.lane.b32.xlu0 %v2776, 64
    %v2780 = vpop.permute.xlu0 %2779
    %v2782 = vmul.f32 %v2775, %v2780
    %2784 = vrot.lane.b32.xlu0 %v2782, 32
    %v2785 = vpop.permute.xlu0 %2784
    %v2787 = vadd.f32 %v2777, %v2785
    %v2788 = vtanh.pop %v2787
    %2790 = vrot.lane.b32.xlu0 %v2788, 64
    %v2791 = vpop.permute.xlu0 %2790
    %v2793 = vmul.f32 %v2775, %v2791
    %2795 = vrot.lane.b32.xlu0 %v2756, 32
    %v2796 = vpop.permute.xlu0 %2795
    %2798 = vst.msk [vmem:[#allocation2] sm:$0x3] %vm321, %v2796
    %2800 = vrot.lane.b32.xlu0 %v2793, 64
    %v2801 = vpop.permute.xlu0 %2800
    %2803 = vst.msk [vmem:[#allocation2 + $0x8] sm:$0xc0] %vm327, %v2801
    %v2804 = vsel %vm194, %v2796, 0
    %2806 = vmatpush.msra.mxu0 0.0
    %2807 = vmatpush.msra.mxu0 0.0
    %2808 = vmatpush.msra.mxu0 0.0
    %2809 = vmatpush.msra.mxu0 0.0
    %2810 = vmatpush.msra.mxu0 0.0
    %2811 = vmatpush.msra.mxu0 0.0
    %2812 = vmatpush.msra.mxu0 0.0
    %2813 = vmatpush.msra.mxu0 0.0
    %2814 = vmatpush.msra.mxu0 0.0
    %2815 = vmatpush.msra.mxu0 0.0
    %2816 = vmatpush.msra.mxu0 0.0
    %2817 = vmatpush.msra.mxu0 0.0
    %2818 = vmatpush.msra.mxu0 %v2669
    %2819 = vmatpush.msra.mxu0 %v2668
    %2820 = vmatpush.msra.mxu0 %v2667
    %2821 = vmatpush.msra.mxu0 %v2666
    %2822 = vmatmul.f32.gmra.mxu0 %v2804
    %v2823 = vpop.f32.mrf.mxu0
    %v2824 = vadd.f32 0.0, %v2823
    %2825 = vdwg.mxu0
    %v2827 = vrot.slane %v2824, 6
    %v2829 = vadd.f32 %v2638, %v2827
    %v2830 = vrot.slane %v2793, 6
    %2831 = vrot.lane.b32.xlu0 %v2830, 32
    %v2832 = vpop.permute.xlu0 %2831
    %v2833 = vsel %vm194, %v2832, 0
    %2835 = vmatpush.msra.mxu0 0.0
    %2836 = vmatpush.msra.mxu0 0.0
    %2837 = vmatpush.msra.mxu0 0.0
    %2838 = vmatpush.msra.mxu0 0.0
    %2839 = vmatpush.msra.mxu0 0.0
    %2840 = vmatpush.msra.mxu0 0.0
    %2841 = vmatpush.msra.mxu0 0.0
    %2842 = vmatpush.msra.mxu0 0.0
    %2843 = vmatpush.msra.mxu0 0.0
    %2844 = vmatpush.msra.mxu0 0.0
    %2845 = vmatpush.msra.mxu0 0.0
    %2846 = vmatpush.msra.mxu0 0.0
    %2847 = vmatpush.msra.mxu0 %v2674
    %2848 = vmatpush.msra.mxu0 %v2673
    %2849 = vmatpush.msra.mxu0 %v2672
    %2850 = vmatpush.msra.mxu0 %v2671
    %2851 = vmatmul.f32.gmra.mxu0 %v2833
    %v2852 = vpop.f32.mrf.mxu0
    %v2853 = vadd.f32 0.0, %v2852
    %2854 = vdwg.mxu0
    %v2856 = vrot.slane %v2853, 4
    %v2858 = vadd.f32 %v2664, %v2856
    %v2859 = vxor.u32 %v2829, 2147483648
    %v2860 = vmul.f32 %v2859, 1.442695
    %v2861 = vpow.pop %v2860
    %v2862 = vadd.f32 %v2861, 1.0
    %v2863 = vrcp.pop %v2862
    %v2864 = vmul.f32 %v2862, %v2863
    %v2865 = vsub.f32 1.0, %v2864
    %v2866 = vmul.f32 %v2863, %v2865
    %v2867 = vadd.f32 %v2863, %v2866
    %vm2868 = vweird.f32 %v2862
    %vm2869 = vweird.f32 %v2863
    %vm2870 = vmor %vm2868, %vm2869
    %v2871 = vsel %vm2870, %v2863, %v2867
    %v2872 = vand.u32 2147483647, %v2862
    %vm2873 = vcmp.eq.f32.partialorder %v2872, 8.507059e+37
    %v2874 = vand.u32 %v2862, 2147483648
    %v2875 = vor.u32 1.1754944e-38, %v2874
    %v2876 = vsel %vm2873, %v2875, %v2871
    %v2877 = vmul.f32 1.0, %v2876
    %v2878 = vtanh.pop %v2829
    %v2880 = vrot.slane %v2750, 6
    %v2882 = vmul.f32 %v2877, %v2880
    %2884 = vrot.lane.b32.xlu0 %v2878, 64
    %v2885 = vpop.permute.xlu0 %2884
    %v2887 = vmul.f32 %v2877, %v2885
    %2889 = vrot.lane.b32.xlu0 %v2887, 32
    %v2890 = vpop.permute.xlu0 %2889
    %v2892 = vadd.f32 %v2882, %v2890
    %v2893 = vtanh.pop %v2892
    %2895 = vrot.lane.b32.xlu0 %v2893, 64
    %v2896 = vpop.permute.xlu0 %2895
    %v2898 = vmul.f32 %v2877, %v2896
    %v2899 = vxor.u32 %v2858, 2147483648
    %v2900 = vmul.f32 %v2899, 1.442695
    %v2901 = vpow.pop %v2900
    %v2902 = vadd.f32 %v2901, 1.0
    %v2903 = vrcp.pop %v2902
    %v2904 = vmul.f32 %v2902, %v2903
    %v2905 = vsub.f32 1.0, %v2904
    %v2906 = vmul.f32 %v2903, %v2905
    %v2907 = vadd.f32 %v2903, %v2906
    %vm2908 = vweird.f32 %v2902
    %vm2909 = vweird.f32 %v2903
    %vm2910 = vmor %vm2908, %vm2909
    %v2911 = vsel %vm2910, %v2903, %v2907
    %v2912 = vand.u32 2147483647, %v2902
    %vm2913 = vcmp.eq.f32.partialorder %v2912, 8.507059e+37
    %v2914 = vand.u32 %v2902, 2147483648
    %v2915 = vor.u32 1.1754944e-38, %v2914
    %v2916 = vsel %vm2913, %v2915, %v2911
    %v2917 = vmul.f32 1.0, %v2916
    %v2918 = vtanh.pop %v2858
    %v2920 = vrot.slane %v2787, 2
    %v2922 = vmul.f32 %v2917, %v2920
    %2924 = vrot.lane.b32.xlu0 %v2918, 64
    %v2925 = vpop.permute.xlu0 %2924
    %v2927 = vmul.f32 %v2917, %v2925
    %2929 = vrot.lane.b32.xlu0 %v2927, 32
    %v2930 = vpop.permute.xlu0 %2929
    %v2932 = vadd.f32 %v2922, %v2930
    %v2933 = vtanh.pop %v2932
    %2935 = vrot.lane.b32.xlu0 %v2933, 64
    %v2936 = vpop.permute.xlu0 %2935
    %v2938 = vmul.f32 %v2917, %v2936
    %2940 = vrot.lane.b32.xlu0 %v2898, 32
    %v2941 = vpop.permute.xlu0 %2940
    %2943 = vst.msk [vmem:[#allocation2] sm:$0xc] %vm468, %v2941
    %2945 = vrot.lane.b32.xlu0 %v2938, 64
    %v2946 = vpop.permute.xlu0 %2945
    %2948 = vst.msk [vmem:[#allocation2 + $0x8] sm:$0x30] %vm474, %v2946
    %v2949 = vrot.slane %v2898, 2
    %2950 = vrot.lane.b32.xlu0 %v2949, 32
    %v2951 = vpop.permute.xlu0 %2950
    %v2952 = vsel %vm194, %v2951, 0
    %2954 = vmatpush.msra.mxu0 0.0
    %2955 = vmatpush.msra.mxu0 0.0
    %2956 = vmatpush.msra.mxu0 0.0
    %2957 = vmatpush.msra.mxu0 0.0
    %2958 = vmatpush.msra.mxu0 0.0
    %2959 = vmatpush.msra.mxu0 0.0
    %2960 = vmatpush.msra.mxu0 0.0
    %2961 = vmatpush.msra.mxu0 0.0
    %2962 = vmatpush.msra.mxu0 0.0
    %2963 = vmatpush.msra.mxu0 0.0
    %2964 = vmatpush.msra.mxu0 0.0
    %2965 = vmatpush.msra.mxu0 0.0
    %2966 = vmatpush.msra.mxu0 %v2669
    %2967 = vmatpush.msra.mxu0 %v2668
    %2968 = vmatpush.msra.mxu0 %v2667
    %2969 = vmatpush.msra.mxu0 %v2666
    %2970 = vmatmul.f32.gmra.mxu0 %v2952
    %v2971 = vpop.f32.mrf.mxu0
    %v2972 = vadd.f32 0.0, %v2971
    %2973 = vdwg.mxu0
    %v2975 = vrot.slane %v2972, 4
    %v2977 = vadd.f32 %v2638, %v2975
    %v2978 = vrot.slane %v2938, 4
    %2979 = vrot.lane.b32.xlu0 %v2978, 32
    %v2980 = vpop.permute.xlu0 %2979
    %v2981 = vsel %vm194, %v2980, 0
    %2983 = vmatpush.msra.mxu0 0.0
    %2984 = vmatpush.msra.mxu0 0.0
    %2985 = vmatpush.msra.mxu0 0.0
    %2986 = vmatpush.msra.mxu0 0.0
    %2987 = vmatpush.msra.mxu0 0.0
    %2988 = vmatpush.msra.mxu0 0.0
    %2989 = vmatpush.msra.mxu0 0.0
    %2990 = vmatpush.msra.mxu0 0.0
    %2991 = vmatpush.msra.mxu0 0.0
    %2992 = vmatpush.msra.mxu0 0.0
    %2993 = vmatpush.msra.mxu0 0.0
    %2994 = vmatpush.msra.mxu0 0.0
    %2995 = vmatpush.msra.mxu0 %v2674
    %2996 = vmatpush.msra.mxu0 %v2673
    %2997 = vmatpush.msra.mxu0 %v2672
    %2998 = vmatpush.msra.mxu0 %v2671
    %2999 = vmatmul.f32.gmra.mxu0 %v2981
    %v3000 = vpop.f32.mrf.mxu0
    %v3001 = vadd.f32 0.0, %v3000
    %3002 = vdwg.mxu0
    %v3004 = vrot.slane %v3001, 6
    %v3006 = vadd.f32 %v2664, %v3004
    %v3007 = vxor.u32 %v2977, 2147483648
    %v3008 = vmul.f32 %v3007, 1.442695
    %v3009 = vpow.pop %v3008
    %v3010 = vadd.f32 %v3009, 1.0
    %v3011 = vrcp.pop %v3010
    %v3012 = vmul.f32 %v3010, %v3011
    %v3013 = vsub.f32 1.0, %v3012
    %v3014 = vmul.f32 %v3011, %v3013
    %v3015 = vadd.f32 %v3011, %v3014
    %vm3016 = vweird.f32 %v3010
    %vm3017 = vweird.f32 %v3011
    %vm3018 = vmor %vm3016, %vm3017
    %v3019 = vsel %vm3018, %v3011, %v3015
    %v3020 = vand.u32 2147483647, %v3010
    %vm3021 = vcmp.eq.f32.partialorder %v3020, 8.507059e+37
    %v3022 = vand.u32 %v3010, 2147483648
    %v3023 = vor.u32 1.1754944e-38, %v3022
    %v3024 = vsel %vm3021, %v3023, %v3019
    %v3025 = vmul.f32 1.0, %v3024
    %v3026 = vtanh.pop %v2977
    %v3028 = vrot.slane %v2892, 6
    %v3030 = vmul.f32 %v3025, %v3028
    %3032 = vrot.lane.b32.xlu0 %v3026, 64
    %v3033 = vpop.permute.xlu0 %3032
    %v3035 = vmul.f32 %v3025, %v3033
    %3037 = vrot.lane.b32.xlu0 %v3035, 32
    %v3038 = vpop.permute.xlu0 %3037
    %v3040 = vadd.f32 %v3030, %v3038
    %v3041 = vtanh.pop %v3040
    %3043 = vrot.lane.b32.xlu0 %v3041, 64
    %v3044 = vpop.permute.xlu0 %3043
    %v3046 = vmul.f32 %v3025, %v3044
    %v3047 = vxor.u32 %v3006, 2147483648
    %v3048 = vmul.f32 %v3047, 1.442695
    %v3049 = vpow.pop %v3048
    %v3050 = vadd.f32 %v3049, 1.0
    %v3051 = vrcp.pop %v3050
    %v3052 = vmul.f32 %v3050, %v3051
    %v3053 = vsub.f32 1.0, %v3052
    %v3054 = vmul.f32 %v3051, %v3053
    %v3055 = vadd.f32 %v3051, %v3054
    %vm3056 = vweird.f32 %v3050
    %vm3057 = vweird.f32 %v3051
    %vm3058 = vmor %vm3056, %vm3057
    %v3059 = vsel %vm3058, %v3051, %v3055
    %v3060 = vand.u32 2147483647, %v3050
    %vm3061 = vcmp.eq.f32.partialorder %v3060, 8.507059e+37
    %v3062 = vand.u32 %v3050, 2147483648
    %v3063 = vor.u32 1.1754944e-38, %v3062
    %v3064 = vsel %vm3061, %v3063, %v3059
    %v3065 = vmul.f32 1.0, %v3064
    %v3066 = vtanh.pop %v3006
    %v3068 = vrot.slane %v2932, 2
    %v3070 = vmul.f32 %v3065, %v3068
    %3072 = vrot.lane.b32.xlu0 %v3066, 64
    %v3073 = vpop.permute.xlu0 %3072
    %v3075 = vmul.f32 %v3065, %v3073
    %3077 = vrot.lane.b32.xlu0 %v3075, 32
    %v3078 = vpop.permute.xlu0 %3077
    %v3080 = vadd.f32 %v3070, %v3078
    %v3081 = vtanh.pop %v3080
    %3083 = vrot.lane.b32.xlu0 %v3081, 64
    %v3084 = vpop.permute.xlu0 %3083
    %v3086 = vmul.f32 %v3065, %v3084
    %3088 = vrot.lane.b32.xlu0 %v3046, 32
    %v3089 = vpop.permute.xlu0 %3088
    %3091 = vst.msk [vmem:[#allocation2] sm:$0x30] %vm618, %v3089
    %3093 = vrot.lane.b32.xlu0 %v3086, 64
    %v3094 = vpop.permute.xlu0 %3093
    %3096 = vst.msk [vmem:[#allocation2 + $0x8] sm:$0xc] %vm624, %v3094
    %v3097 = vrot.slane %v3046, 4
    %3098 = vrot.lane.b32.xlu0 %v3097, 32
    %v3099 = vpop.permute.xlu0 %3098
    %v3100 = vsel %vm194, %v3099, 0
    %3102 = vmatpush.msra.mxu0 0.0
    %3103 = vmatpush.msra.mxu0 0.0
    %3104 = vmatpush.msra.mxu0 0.0
    %3105 = vmatpush.msra.mxu0 0.0
    %3106 = vmatpush.msra.mxu0 0.0
    %3107 = vmatpush.msra.mxu0 0.0
    %3108 = vmatpush.msra.mxu0 0.0
    %3109 = vmatpush.msra.mxu0 0.0
    %3110 = vmatpush.msra.mxu0 0.0
    %3111 = vmatpush.msra.mxu0 0.0
    %3112 = vmatpush.msra.mxu0 0.0
    %3113 = vmatpush.msra.mxu0 0.0
    %3114 = vmatpush.msra.mxu0 %v2669
    %3115 = vmatpush.msra.mxu0 %v2668
    %3116 = vmatpush.msra.mxu0 %v2667
    %3117 = vmatpush.msra.mxu0 %v2666
    %3118 = vmatmul.f32.gmra.mxu0 %v3100
    %v3119 = vpop.f32.mrf.mxu0
    %v3120 = vadd.f32 0.0, %v3119
    %3121 = vdwg.mxu0
    %v3123 = vrot.slane %v3120, 2
    %v3125 = vadd.f32 %v2638, %v3123
    %v3126 = vrot.slane %v3086, 2
    %3127 = vrot.lane.b32.xlu0 %v3126, 32
    %v3128 = vpop.permute.xlu0 %3127
    %v3129 = vsel %vm194, %v3128, 0
    %3131 = vmatpush.msra.mxu0 0.0
    %3132 = vmatpush.msra.mxu0 0.0
    %3133 = vmatpush.msra.mxu0 0.0
    %3134 = vmatpush.msra.mxu0 0.0
    %3135 = vmatpush.msra.mxu0 0.0
    %3136 = vmatpush.msra.mxu0 0.0
    %3137 = vmatpush.msra.mxu0 0.0
    %3138 = vmatpush.msra.mxu0 0.0
    %3139 = vmatpush.msra.mxu0 0.0
    %3140 = vmatpush.msra.mxu0 0.0
    %3141 = vmatpush.msra.mxu0 0.0
    %3142 = vmatpush.msra.mxu0 0.0
    %3143 = vmatpush.msra.mxu0 %v2674
    %3144 = vmatpush.msra.mxu0 %v2673
    %3145 = vmatpush.msra.mxu0 %v2672
    %3146 = vmatpush.msra.mxu0 %v2671
    %3147 = vmatmul.f32.gmra.mxu0 %v3129
    %v3148 = vpop.f32.mrf.mxu0
    %v3149 = vadd.f32 0.0, %v3148
    %3150 = vdwg.mxu0
    %v3151 = vadd.f32 %v2664, %v3149
    %v3152 = vxor.u32 %v3125, 2147483648
    %v3153 = vmul.f32 %v3152, 1.442695
    %v3154 = vpow.pop %v3153
    %v3155 = vadd.f32 %v3154, 1.0
    %v3156 = vrcp.pop %v3155
    %v3157 = vmul.f32 %v3155, %v3156
    %v3158 = vsub.f32 1.0, %v3157
    %v3159 = vmul.f32 %v3156, %v3158
    %v3160 = vadd.f32 %v3156, %v3159
    %vm3161 = vweird.f32 %v3155
    %vm3162 = vweird.f32 %v3156
    %vm3163 = vmor %vm3161, %vm3162
    %v3164 = vsel %vm3163, %v3156, %v3160
    %v3165 = vand.u32 2147483647, %v3155
    %vm3166 = vcmp.eq.f32.partialorder %v3165, 8.507059e+37
    %v3167 = vand.u32 %v3155, 2147483648
    %v3168 = vor.u32 1.1754944e-38, %v3167
    %v3169 = vsel %vm3166, %v3168, %v3164
    %v3170 = vmul.f32 1.0, %v3169
    %v3171 = vtanh.pop %v3125
    %v3173 = vrot.slane %v3040, 6
    %v3175 = vmul.f32 %v3170, %v3173
    %3177 = vrot.lane.b32.xlu0 %v3171, 64
    %v3178 = vpop.permute.xlu0 %3177
    %v3180 = vmul.f32 %v3170, %v3178
    %3182 = vrot.lane.b32.xlu0 %v3180, 32
    %v3183 = vpop.permute.xlu0 %3182
    %v3185 = vadd.f32 %v3175, %v3183
    %v3186 = vtanh.pop %v3185
    %3188 = vrot.lane.b32.xlu0 %v3186, 64
    %v3189 = vpop.permute.xlu0 %3188
    %v3191 = vmul.f32 %v3170, %v3189
    %v3192 = vxor.u32 %v3151, 2147483648
    %v3193 = vmul.f32 %v3192, 1.442695
    %v3194 = vpow.pop %v3193
    %v3195 = vadd.f32 %v3194, 1.0
    %v3196 = vrcp.pop %v3195
    %v3197 = vmul.f32 %v3195, %v3196
    %v3198 = vsub.f32 1.0, %v3197
    %v3199 = vmul.f32 %v3196, %v3198
    %v3200 = vadd.f32 %v3196, %v3199
    %vm3201 = vweird.f32 %v3195
    %vm3202 = vweird.f32 %v3196
    %vm3203 = vmor %vm3201, %vm3202
    %v3204 = vsel %vm3203, %v3196, %v3200
    %v3205 = vand.u32 2147483647, %v3195
    %vm3206 = vcmp.eq.f32.partialorder %v3205, 8.507059e+37
    %v3207 = vand.u32 %v3195, 2147483648
    %v3208 = vor.u32 1.1754944e-38, %v3207
    %v3209 = vsel %vm3206, %v3208, %v3204
    %v3210 = vmul.f32 1.0, %v3209
    %v3211 = vtanh.pop %v3151
    %v3213 = vrot.slane %v3080, 2
    %v3215 = vmul.f32 %v3210, %v3213
    %3217 = vrot.lane.b32.xlu0 %v3211, 64
    %v3218 = vpop.permute.xlu0 %3217
    %v3220 = vmul.f32 %v3210, %v3218
    %3222 = vrot.lane.b32.xlu0 %v3220, 32
    %v3223 = vpop.permute.xlu0 %3222
    %v3225 = vadd.f32 %v3215, %v3223
    %v3226 = vtanh.pop %v3225
    %3228 = vrot.lane.b32.xlu0 %v3226, 64
    %v3229 = vpop.permute.xlu0 %3228
    %v3231 = vmul.f32 %v3210, %v3229
    %3233 = vrot.lane.b32.xlu0 %v3191, 32
    %v3234 = vpop.permute.xlu0 %3233
    %3236 = vst.msk [vmem:[#allocation2] sm:$0xc0] %vm765, %v3234
    %3238 = vrot.lane.b32.xlu0 %v3231, 64
    %v3239 = vpop.permute.xlu0 %3238
    %3241 = vst.msk [vmem:[#allocation2 + $0x8] sm:$0x3] %vm771, %v3239
    %v3242 = vrot.slane %v3191, 6
    %3243 = vrot.lane.b32.xlu0 %v3242, 32
    %v3244 = vpop.permute.xlu0 %3243
    %v3245 = vsel %vm194, %v3244, 0
    %3247 = vmatpush.msra.mxu0 0.0
    %3248 = vmatpush.msra.mxu0 0.0
    %3249 = vmatpush.msra.mxu0 0.0
    %3250 = vmatpush.msra.mxu0 0.0
    %3251 = vmatpush.msra.mxu0 0.0
    %3252 = vmatpush.msra.mxu0 0.0
    %3253 = vmatpush.msra.mxu0 0.0
    %3254 = vmatpush.msra.mxu0 0.0
    %3255 = vmatpush.msra.mxu0 0.0
    %3256 = vmatpush.msra.mxu0 0.0
    %3257 = vmatpush.msra.mxu0 0.0
    %3258 = vmatpush.msra.mxu0 0.0
    %3259 = vmatpush.msra.mxu0 %v2669
    %3260 = vmatpush.msra.mxu0 %v2668
    %3261 = vmatpush.msra.mxu0 %v2667
    %3262 = vmatpush.msra.mxu0 %v2666
    %3263 = vmatmul.f32.gmra.mxu0 %v3245
    %v3264 = vpop.f32.mrf.mxu0
    %v3265 = vadd.f32 0.0, %v3264
    %3266 = vdwg.mxu0
    %v3267 = vadd.f32 %v2641, %v3265
    %3268 = vrot.lane.b32.xlu0 %v3231, 32
    %v3269 = vpop.permute.xlu0 %3268
    %v3270 = vsel %vm194, %v3269, 0
    %3272 = vmatpush.msra.mxu0 0.0
    %3273 = vmatpush.msra.mxu0 0.0
    %3274 = vmatpush.msra.mxu0 0.0
    %3275 = vmatpush.msra.mxu0 0.0
    %3276 = vmatpush.msra.mxu0 0.0
    %3277 = vmatpush.msra.mxu0 0.0
    %3278 = vmatpush.msra.mxu0 0.0
    %3279 = vmatpush.msra.mxu0 0.0
    %3280 = vmatpush.msra.mxu0 0.0
    %3281 = vmatpush.msra.mxu0 0.0
    %3282 = vmatpush.msra.mxu0 0.0
    %3283 = vmatpush.msra.mxu0 0.0
    %3284 = vmatpush.msra.mxu0 %v2674
    %3285 = vmatpush.msra.mxu0 %v2673
    %3286 = vmatpush.msra.mxu0 %v2672
    %3287 = vmatpush.msra.mxu0 %v2671
    %3288 = vmatmul.f32.gmra.mxu0 %v3270
    %v3289 = vpop.f32.mrf.mxu0
    %v3290 = vadd.f32 0.0, %v3289
    %3291 = vdwg.mxu0
    %v3293 = vrot.slane %v3290, 2
    %v3295 = vadd.f32 %v2661, %v3293
    %v3296 = vxor.u32 %v3267, 2147483648
    %v3297 = vmul.f32 %v3296, 1.442695
    %v3298 = vpow.pop %v3297
    %v3299 = vadd.f32 %v3298, 1.0
    %v3300 = vrcp.pop %v3299
    %v3301 = vmul.f32 %v3299, %v3300
    %v3302 = vsub.f32 1.0, %v3301
    %v3303 = vmul.f32 %v3300, %v3302
    %v3304 = vadd.f32 %v3300, %v3303
    %vm3305 = vweird.f32 %v3299
    %vm3306 = vweird.f32 %v3300
    %vm3307 = vmor %vm3305, %vm3306
    %v3308 = vsel %vm3307, %v3300, %v3304
    %v3309 = vand.u32 2147483647, %v3299
    %vm3310 = vcmp.eq.f32.partialorder %v3309, 8.507059e+37
    %v3311 = vand.u32 %v3299, 2147483648
    %v3312 = vor.u32 1.1754944e-38, %v3311
    %v3313 = vsel %vm3310, %v3312, %v3308
    %v3314 = vmul.f32 1.0, %v3313
    %v3315 = vtanh.pop %v3267
    %v3317 = vrot.slane %v3185, 6
    %v3319 = vmul.f32 %v3314, %v3317
    %3321 = vrot.lane.b32.xlu0 %v3315, 64
    %v3322 = vpop.permute.xlu0 %3321
    %v3324 = vmul.f32 %v3314, %v3322
    %3326 = vrot.lane.b32.xlu0 %v3324, 32
    %v3327 = vpop.permute.xlu0 %3326
    %v3329 = vadd.f32 %v3319, %v3327
    %v3330 = vtanh.pop %v3329
    %3332 = vrot.lane.b32.xlu0 %v3330, 64
    %v3333 = vpop.permute.xlu0 %3332
    %v3335 = vmul.f32 %v3314, %v3333
    %v3336 = vxor.u32 %v3295, 2147483648
    %v3337 = vmul.f32 %v3336, 1.442695
    %v3338 = vpow.pop %v3337
    %v3339 = vadd.f32 %v3338, 1.0
    %v3340 = vrcp.pop %v3339
    %v3341 = vmul.f32 %v3339, %v3340
    %v3342 = vsub.f32 1.0, %v3341
    %v3343 = vmul.f32 %v3340, %v3342
    %v3344 = vadd.f32 %v3340, %v3343
    %vm3345 = vweird.f32 %v3339
    %vm3346 = vweird.f32 %v3340
    %vm3347 = vmor %vm3345, %vm3346
    %v3348 = vsel %vm3347, %v3340, %v3344
    %v3349 = vand.u32 2147483647, %v3339
    %vm3350 = vcmp.eq.f32.partialorder %v3349, 8.507059e+37
    %v3351 = vand.u32 %v3339, 2147483648
    %v3352 = vor.u32 1.1754944e-38, %v3351
    %v3353 = vsel %vm3350, %v3352, %v3348
    %v3354 = vmul.f32 1.0, %v3353
    %v3355 = vtanh.pop %v3295
    %v3357 = vrot.slane %v3225, 2
    %v3359 = vmul.f32 %v3354, %v3357
    %3361 = vrot.lane.b32.xlu0 %v3355, 64
    %v3362 = vpop.permute.xlu0 %3361
    %v3364 = vmul.f32 %v3354, %v3362
    %3366 = vrot.lane.b32.xlu0 %v3364, 32
    %v3367 = vpop.permute.xlu0 %3366
    %v3369 = vadd.f32 %v3359, %v3367
    %v3370 = vtanh.pop %v3369
    %3372 = vrot.lane.b32.xlu0 %v3370, 64
    %v3373 = vpop.permute.xlu0 %3372
    %v3375 = vmul.f32 %v3354, %v3373
    %3377 = vrot.lane.b32.xlu0 %v3335, 32
    %v3378 = vpop.permute.xlu0 %3377
    %3380 = vst.msk [vmem:[#allocation2 + $0x8] sm:$0x3] %vm321, %v3378
    %3382 = vrot.lane.b32.xlu0 %v3375, 64
    %v3383 = vpop.permute.xlu0 %3382
    %3385 = vst.msk [vmem:[#allocation2] sm:$0xc0] %vm327, %v3383
    %v3386 = vsel %vm194, %v3378, 0
    %3388 = vmatpush.msra.mxu0 0.0
    %3389 = vmatpush.msra.mxu0 0.0
    %3390 = vmatpush.msra.mxu0 0.0
    %3391 = vmatpush.msra.mxu0 0.0
    %3392 = vmatpush.msra.mxu0 0.0
    %3393 = vmatpush.msra.mxu0 0.0
    %3394 = vmatpush.msra.mxu0 0.0
    %3395 = vmatpush.msra.mxu0 0.0
    %3396 = vmatpush.msra.mxu0 0.0
    %3397 = vmatpush.msra.mxu0 0.0
    %3398 = vmatpush.msra.mxu0 0.0
    %3399 = vmatpush.msra.mxu0 0.0
    %3400 = vmatpush.msra.mxu0 %v2669
    %3401 = vmatpush.msra.mxu0 %v2668
    %3402 = vmatpush.msra.mxu0 %v2667
    %3403 = vmatpush.msra.mxu0 %v2666
    %3404 = vmatmul.f32.gmra.mxu0 %v3386
    %v3405 = vpop.f32.mrf.mxu0
    %v3406 = vadd.f32 0.0, %v3405
    %3407 = vdwg.mxu0
    %v3409 = vrot.slane %v3406, 6
    %v3411 = vadd.f32 %v2641, %v3409
    %v3412 = vrot.slane %v3375, 6
    %3413 = vrot.lane.b32.xlu0 %v3412, 32
    %v3414 = vpop.permute.xlu0 %3413
    %v3415 = vsel %vm194, %v3414, 0
    %3417 = vmatpush.msra.mxu0 0.0
    %3418 = vmatpush.msra.mxu0 0.0
    %3419 = vmatpush.msra.mxu0 0.0
    %3420 = vmatpush.msra.mxu0 0.0
    %3421 = vmatpush.msra.mxu0 0.0
    %3422 = vmatpush.msra.mxu0 0.0
    %3423 = vmatpush.msra.mxu0 0.0
    %3424 = vmatpush.msra.mxu0 0.0
    %3425 = vmatpush.msra.mxu0 0.0
    %3426 = vmatpush.msra.mxu0 0.0
    %3427 = vmatpush.msra.mxu0 0.0
    %3428 = vmatpush.msra.mxu0 0.0
    %3429 = vmatpush.msra.mxu0 %v2674
    %3430 = vmatpush.msra.mxu0 %v2673
    %3431 = vmatpush.msra.mxu0 %v2672
    %3432 = vmatpush.msra.mxu0 %v2671
    %3433 = vmatmul.f32.gmra.mxu0 %v3415
    %v3434 = vpop.f32.mrf.mxu0
    %v3435 = vadd.f32 0.0, %v3434
    %3436 = vdwg.mxu0
    %v3438 = vrot.slane %v3435, 4
    %v3440 = vadd.f32 %v2661, %v3438
    %v3441 = vxor.u32 %v3411, 2147483648
    %v3442 = vmul.f32 %v3441, 1.442695
    %v3443 = vpow.pop %v3442
    %v3444 = vadd.f32 %v3443, 1.0
    %v3445 = vrcp.pop %v3444
    %v3446 = vmul.f32 %v3444, %v3445
    %v3447 = vsub.f32 1.0, %v3446
    %v3448 = vmul.f32 %v3445, %v3447
    %v3449 = vadd.f32 %v3445, %v3448
    %vm3450 = vweird.f32 %v3444
    %vm3451 = vweird.f32 %v3445
    %vm3452 = vmor %vm3450, %vm3451
    %v3453 = vsel %vm3452, %v3445, %v3449
    %v3454 = vand.u32 2147483647, %v3444
    %vm3455 = vcmp.eq.f32.partialorder %v3454, 8.507059e+37
    %v3456 = vand.u32 %v3444, 2147483648
    %v3457 = vor.u32 1.1754944e-38, %v3456
    %v3458 = vsel %vm3455, %v3457, %v3453
    %v3459 = vmul.f32 1.0, %v3458
    %v3460 = vtanh.pop %v3411
    %v3462 = vrot.slane %v3329, 6
    %v3464 = vmul.f32 %v3459, %v3462
    %3466 = vrot.lane.b32.xlu0 %v3460, 64
    %v3467 = vpop.permute.xlu0 %3466
    %v3469 = vmul.f32 %v3459, %v3467
    %3471 = vrot.lane.b32.xlu0 %v3469, 32
    %v3472 = vpop.permute.xlu0 %3471
    %v3474 = vadd.f32 %v3464, %v3472
    %v3475 = vtanh.pop %v3474
    %3477 = vrot.lane.b32.xlu0 %v3475, 64
    %v3478 = vpop.permute.xlu0 %3477
    %v3480 = vmul.f32 %v3459, %v3478
    %v3481 = vxor.u32 %v3440, 2147483648
    %v3482 = vmul.f32 %v3481, 1.442695
    %v3483 = vpow.pop %v3482
    %v3484 = vadd.f32 %v3483, 1.0
    %v3485 = vrcp.pop %v3484
    %v3486 = vmul.f32 %v3484, %v3485
    %v3487 = vsub.f32 1.0, %v3486
    %v3488 = vmul.f32 %v3485, %v3487
    %v3489 = vadd.f32 %v3485, %v3488
    %vm3490 = vweird.f32 %v3484
    %vm3491 = vweird.f32 %v3485
    %vm3492 = vmor %vm3490, %vm3491
    %v3493 = vsel %vm3492, %v3485, %v3489
    %v3494 = vand.u32 2147483647, %v3484
    %vm3495 = vcmp.eq.f32.partialorder %v3494, 8.507059e+37
    %v3496 = vand.u32 %v3484, 2147483648
    %v3497 = vor.u32 1.1754944e-38, %v3496
    %v3498 = vsel %vm3495, %v3497, %v3493
    %v3499 = vmul.f32 1.0, %v3498
    %v3500 = vtanh.pop %v3440
    %v3502 = vrot.slane %v3369, 2
    %v3504 = vmul.f32 %v3499, %v3502
    %3506 = vrot.lane.b32.xlu0 %v3500, 64
    %v3507 = vpop.permute.xlu0 %3506
    %v3509 = vmul.f32 %v3499, %v3507
    %3511 = vrot.lane.b32.xlu0 %v3509, 32
    %v3512 = vpop.permute.xlu0 %3511
    %v3514 = vadd.f32 %v3504, %v3512
    %v3515 = vtanh.pop %v3514
    %3517 = vrot.lane.b32.xlu0 %v3515, 64
    %v3518 = vpop.permute.xlu0 %3517
    %v3520 = vmul.f32 %v3499, %v3518
    %3522 = vrot.lane.b32.xlu0 %v3480, 32
    %v3523 = vpop.permute.xlu0 %3522
    %3525 = vst.msk [vmem:[#allocation2 + $0x8] sm:$0xc] %vm468, %v3523
    %3527 = vrot.lane.b32.xlu0 %v3520, 64
    %v3528 = vpop.permute.xlu0 %3527
    %3530 = vst.msk [vmem:[#allocation2] sm:$0x30] %vm474, %v3528
    %v3531 = vrot.slane %v3480, 2
    %3532 = vrot.lane.b32.xlu0 %v3531, 32
    %v3533 = vpop.permute.xlu0 %3532
    %v3534 = vsel %vm194, %v3533, 0
    %3536 = vmatpush.msra.mxu0 0.0
    %3537 = vmatpush.msra.mxu0 0.0
    %3538 = vmatpush.msra.mxu0 0.0
    %3539 = vmatpush.msra.mxu0 0.0
    %3540 = vmatpush.msra.mxu0 0.0
    %3541 = vmatpush.msra.mxu0 0.0
    %3542 = vmatpush.msra.mxu0 0.0
    %3543 = vmatpush.msra.mxu0 0.0
    %3544 = vmatpush.msra.mxu0 0.0
    %3545 = vmatpush.msra.mxu0 0.0
    %3546 = vmatpush.msra.mxu0 0.0
    %3547 = vmatpush.msra.mxu0 0.0
    %3548 = vmatpush.msra.mxu0 %v2669
    %3549 = vmatpush.msra.mxu0 %v2668
    %3550 = vmatpush.msra.mxu0 %v2667
    %3551 = vmatpush.msra.mxu0 %v2666
    %3552 = vmatmul.f32.gmra.mxu0 %v3534
    %v3553 = vpop.f32.mrf.mxu0
    %v3554 = vadd.f32 0.0, %v3553
    %3555 = vdwg.mxu0
    %v3557 = vrot.slane %v3554, 4
    %v3559 = vadd.f32 %v2641, %v3557
    %v3560 = vrot.slane %v3520, 4
    %3561 = vrot.lane.b32.xlu0 %v3560, 32
    %v3562 = vpop.permute.xlu0 %3561
    %v3563 = vsel %vm194, %v3562, 0
    %3565 = vmatpush.msra.mxu0 0.0
    %3566 = vmatpush.msra.mxu0 0.0
    %3567 = vmatpush.msra.mxu0 0.0
    %3568 = vmatpush.msra.mxu0 0.0
    %3569 = vmatpush.msra.mxu0 0.0
    %3570 = vmatpush.msra.mxu0 0.0
    %3571 = vmatpush.msra.mxu0 0.0
    %3572 = vmatpush.msra.mxu0 0.0
    %3573 = vmatpush.msra.mxu0 0.0
    %3574 = vmatpush.msra.mxu0 0.0
    %3575 = vmatpush.msra.mxu0 0.0
    %3576 = vmatpush.msra.mxu0 0.0
    %3577 = vmatpush.msra.mxu0 %v2674
    %3578 = vmatpush.msra.mxu0 %v2673
    %3579 = vmatpush.msra.mxu0 %v2672
    %3580 = vmatpush.msra.mxu0 %v2671
    %3581 = vmatmul.f32.gmra.mxu0 %v3563
    %v3582 = vpop.f32.mrf.mxu0
    %v3583 = vadd.f32 0.0, %v3582
    %3584 = vdwg.mxu0
    %v3586 = vrot.slane %v3583, 6
    %v3588 = vadd.f32 %v2661, %v3586
    %v3589 = vxor.u32 %v3559, 2147483648
    %v3590 = vmul.f32 %v3589, 1.442695
    %v3591 = vpow.pop %v3590
    %v3592 = vadd.f32 %v3591, 1.0
    %v3593 = vrcp.pop %v3592
    %v3594 = vmul.f32 %v3592, %v3593
    %v3595 = vsub.f32 1.0, %v3594
    %v3596 = vmul.f32 %v3593, %v3595
    %v3597 = vadd.f32 %v3593, %v3596
    %vm3598 = vweird.f32 %v3592
    %vm3599 = vweird.f32 %v3593
    %vm3600 = vmor %vm3598, %vm3599
    %v3601 = vsel %vm3600, %v3593, %v3597
    %v3602 = vand.u32 2147483647, %v3592
    %vm3603 = vcmp.eq.f32.partialorder %v3602, 8.507059e+37
    %v3604 = vand.u32 %v3592, 2147483648
    %v3605 = vor.u32 1.1754944e-38, %v3604
    %v3606 = vsel %vm3603, %v3605, %v3601
    %v3607 = vmul.f32 1.0, %v3606
    %v3608 = vtanh.pop %v3559
    %v3610 = vrot.slane %v3474, 6
    %v3612 = vmul.f32 %v3607, %v3610
    %3614 = vrot.lane.b32.xlu0 %v3608, 64
    %v3615 = vpop.permute.xlu0 %3614
    %v3617 = vmul.f32 %v3607, %v3615
    %3619 = vrot.lane.b32.xlu0 %v3617, 32
    %v3620 = vpop.permute.xlu0 %3619
    %v3622 = vadd.f32 %v3612, %v3620
    %v3623 = vtanh.pop %v3622
    %3625 = vrot.lane.b32.xlu0 %v3623, 64
    %v3626 = vpop.permute.xlu0 %3625
    %v3628 = vmul.f32 %v3607, %v3626
    %v3629 = vxor.u32 %v3588, 2147483648
    %v3630 = vmul.f32 %v3629, 1.442695
    %v3631 = vpow.pop %v3630
    %v3632 = vadd.f32 %v3631, 1.0
    %v3633 = vrcp.pop %v3632
    %v3634 = vmul.f32 %v3632, %v3633
    %v3635 = vsub.f32 1.0, %v3634
    %v3636 = vmul.f32 %v3633, %v3635
    %v3637 = vadd.f32 %v3633, %v3636
    %vm3638 = vweird.f32 %v3632
    %vm3639 = vweird.f32 %v3633
    %vm3640 = vmor %vm3638, %vm3639
    %v3641 = vsel %vm3640, %v3633, %v3637
    %v3642 = vand.u32 2147483647, %v3632
    %vm3643 = vcmp.eq.f32.partialorder %v3642, 8.507059e+37
    %v3644 = vand.u32 %v3632, 2147483648
    %v3645 = vor.u32 1.1754944e-38, %v3644
    %v3646 = vsel %vm3643, %v3645, %v3641
    %v3647 = vmul.f32 1.0, %v3646
    %v3648 = vtanh.pop %v3588
    %v3650 = vrot.slane %v3514, 2
    %v3652 = vmul.f32 %v3647, %v3650
    %3654 = vrot.lane.b32.xlu0 %v3648, 64
    %v3655 = vpop.permute.xlu0 %3654
    %v3657 = vmul.f32 %v3647, %v3655
    %3659 = vrot.lane.b32.xlu0 %v3657, 32
    %v3660 = vpop.permute.xlu0 %3659
    %v3662 = vadd.f32 %v3652, %v3660
    %v3663 = vtanh.pop %v3662
    %3665 = vrot.lane.b32.xlu0 %v3663, 64
    %v3666 = vpop.permute.xlu0 %3665
    %v3668 = vmul.f32 %v3647, %v3666
    %3670 = vrot.lane.b32.xlu0 %v3628, 32
    %v3671 = vpop.permute.xlu0 %3670
    %3673 = vst.msk [vmem:[#allocation2 + $0x8] sm:$0x30] %vm618, %v3671
    %3675 = vrot.lane.b32.xlu0 %v3668, 64
    %v3676 = vpop.permute.xlu0 %3675
    %3678 = vst.msk [vmem:[#allocation2] sm:$0xc] %vm624, %v3676
    %v3679 = vrot.slane %v3628, 4
    %3680 = vrot.lane.b32.xlu0 %v3679, 32
    %v3681 = vpop.permute.xlu0 %3680
    %v3682 = vsel %vm194, %v3681, 0
    %3684 = vmatpush.msra.mxu0 0.0
    %3685 = vmatpush.msra.mxu0 0.0
    %3686 = vmatpush.msra.mxu0 0.0
    %3687 = vmatpush.msra.mxu0 0.0
    %3688 = vmatpush.msra.mxu0 0.0
    %3689 = vmatpush.msra.mxu0 0.0
    %3690 = vmatpush.msra.mxu0 0.0
    %3691 = vmatpush.msra.mxu0 0.0
    %3692 = vmatpush.msra.mxu0 0.0
    %3693 = vmatpush.msra.mxu0 0.0
    %3694 = vmatpush.msra.mxu0 0.0
    %3695 = vmatpush.msra.mxu0 0.0
    %3696 = vmatpush.msra.mxu0 %v2669
    %3697 = vmatpush.msra.mxu0 %v2668
    %3698 = vmatpush.msra.mxu0 %v2667
    %3699 = vmatpush.msra.mxu0 %v2666
    %3700 = vmatmul.f32.gmra.mxu0 %v3682
    %v3701 = vpop.f32.mrf.mxu0
    %v3702 = vadd.f32 0.0, %v3701
    %3703 = vdwg.mxu0
    %v3705 = vrot.slane %v3702, 2
    %v3707 = vadd.f32 %v2641, %v3705
    %v3708 = vrot.slane %v3668, 2
    %3709 = vrot.lane.b32.xlu0 %v3708, 32
    %v3710 = vpop.permute.xlu0 %3709
    %v3711 = vsel %vm194, %v3710, 0
    %3713 = vmatpush.msra.mxu0 0.0
    %3714 = vmatpush.msra.mxu0 0.0
    %3715 = vmatpush.msra.mxu0 0.0
    %3716 = vmatpush.msra.mxu0 0.0
    %3717 = vmatpush.msra.mxu0 0.0
    %3718 = vmatpush.msra.mxu0 0.0
    %3719 = vmatpush.msra.mxu0 0.0
    %3720 = vmatpush.msra.mxu0 0.0
    %3721 = vmatpush.msra.mxu0 0.0
    %3722 = vmatpush.msra.mxu0 0.0
    %3723 = vmatpush.msra.mxu0 0.0
    %3724 = vmatpush.msra.mxu0 0.0
    %3725 = vmatpush.msra.mxu0 %v2674
    %3726 = vmatpush.msra.mxu0 %v2673
    %3727 = vmatpush.msra.mxu0 %v2672
    %3728 = vmatpush.msra.mxu0 %v2671
    %3729 = vmatmul.f32.gmra.mxu0 %v3711
    %v3730 = vpop.f32.mrf.mxu0
    %v3731 = vadd.f32 0.0, %v3730
    %3732 = vdwg.mxu0
    %v3733 = vadd.f32 %v2661, %v3731
    %v3734 = vxor.u32 %v3707, 2147483648
    %v3735 = vmul.f32 %v3734, 1.442695
    %v3736 = vpow.pop %v3735
    %v3737 = vadd.f32 %v3736, 1.0
    %v3738 = vrcp.pop %v3737
    %v3739 = vmul.f32 %v3737, %v3738
    %v3740 = vsub.f32 1.0, %v3739
    %v3741 = vmul.f32 %v3738, %v3740
    %v3742 = vadd.f32 %v3738, %v3741
    %vm3743 = vweird.f32 %v3737
    %vm3744 = vweird.f32 %v3738
    %vm3745 = vmor %vm3743, %vm3744
    %v3746 = vsel %vm3745, %v3738, %v3742
    %v3747 = vand.u32 2147483647, %v3737
    %vm3748 = vcmp.eq.f32.partialorder %v3747, 8.507059e+37
    %v3749 = vand.u32 %v3737, 2147483648
    %v3750 = vor.u32 1.1754944e-38, %v3749
    %v3751 = vsel %vm3748, %v3750, %v3746
    %v3752 = vmul.f32 1.0, %v3751
    %v3753 = vtanh.pop %v3707
    %v3755 = vrot.slane %v3622, 6
    %v3757 = vmul.f32 %v3752, %v3755
    %3759 = vrot.lane.b32.xlu0 %v3753, 64
    %v3760 = vpop.permute.xlu0 %3759
    %v3762 = vmul.f32 %v3752, %v3760
    %3764 = vrot.lane.b32.xlu0 %v3762, 32
    %v3765 = vpop.permute.xlu0 %3764
    %v3767 = vadd.f32 %v3757, %v3765
    %v3768 = vtanh.pop %v3767
    %3770 = vrot.lane.b32.xlu0 %v3768, 64
    %v3771 = vpop.permute.xlu0 %3770
    %v3773 = vmul.f32 %v3752, %v3771
    %v3774 = vxor.u32 %v3733, 2147483648
    %v3775 = vmul.f32 %v3774, 1.442695
    %v3776 = vpow.pop %v3775
    %v3777 = vadd.f32 %v3776, 1.0
    %v3778 = vrcp.pop %v3777
    %v3779 = vmul.f32 %v3777, %v3778
    %v3780 = vsub.f32 1.0, %v3779
    %v3781 = vmul.f32 %v3778, %v3780
    %v3782 = vadd.f32 %v3778, %v3781
    %vm3783 = vweird.f32 %v3777
    %vm3784 = vweird.f32 %v3778
    %vm3785 = vmor %vm3783, %vm3784
    %v3786 = vsel %vm3785, %v3778, %v3782
    %v3787 = vand.u32 2147483647, %v3777
    %vm3788 = vcmp.eq.f32.partialorder %v3787, 8.507059e+37
    %v3789 = vand.u32 %v3777, 2147483648
    %v3790 = vor.u32 1.1754944e-38, %v3789
    %v3791 = vsel %vm3788, %v3790, %v3786
    %v3792 = vmul.f32 1.0, %v3791
    %v3793 = vtanh.pop %v3733
    %v3795 = vrot.slane %v3662, 2
    %v3797 = vmul.f32 %v3792, %v3795
    %3799 = vrot.lane.b32.xlu0 %v3793, 64
    %v3800 = vpop.permute.xlu0 %3799
    %v3802 = vmul.f32 %v3792, %v3800
    %3804 = vrot.lane.b32.xlu0 %v3802, 32
    %v3805 = vpop.permute.xlu0 %3804
    %v3807 = vadd.f32 %v3797, %v3805
    %v3808 = vtanh.pop %v3807
    %3810 = vrot.lane.b32.xlu0 %v3808, 64
    %v3811 = vpop.permute.xlu0 %3810
    %v3813 = vmul.f32 %v3792, %v3811
    %3815 = vrot.lane.b32.xlu0 %v3773, 32
    %v3816 = vpop.permute.xlu0 %3815
    %3818 = vst.msk [vmem:[#allocation2 + $0x8] sm:$0xc0] %vm765, %v3816
    %3820 = vrot.lane.b32.xlu0 %v3813, 64
    %v3821 = vpop.permute.xlu0 %3820
    %3823 = vst.msk [vmem:[#allocation2] sm:$0x3] %vm771, %v3821
    %v3824 = vld [vmem:[#allocation2] sm:$0xff]
    %v3825 = vld [vmem:[#allocation2 + $0x8] sm:$0xff]
    %v3826 = vld [vmem:[%s10] sm:$0xff]
    %v3827 = vld [vmem:[%s10 + $0x8] sm:$0xff]
    %v3828 = vld [vmem:[%s10 + $0x10] sm:$0xff]
    %v3829 = vld [vmem:[%s10 + $0x18] sm:$0xff]
    %v3830 = vld [vmem:[%s10 + $0x20] sm:$0xff]
    %v3831 = vld [vmem:[%s10 + $0x28] sm:$0xff]
    %v3832 = vld [vmem:[%s10 + $0x30] sm:$0xff]
    %v3833 = vld [vmem:[%s10 + $0x38] sm:$0xff]
    %v3834 = vld [vmem:[%s11] sm:$0x1]
    %v3836 = vperm.slane %v3834, 0
    %v3839 = vsel %vm1379, %v3824, 0
    %v3842 = vsel %vm1379, %v3825, 0
    %3844 = vmatpush.msra.mxu0 0.0
    %3845 = vmatpush.msra.mxu0 0.0
    %3846 = vmatpush.msra.mxu0 0.0
    %3847 = vmatpush.msra.mxu0 0.0
    %3848 = vmatpush.msra.mxu0 0.0
    %3849 = vmatpush.msra.mxu0 0.0
    %3850 = vmatpush.msra.mxu0 0.0
    %3851 = vmatpush.msra.mxu0 0.0
    %3852 = vmatpush.msra.mxu0 %v3833
    %3853 = vmatpush.msra.mxu0 %v3832
    %3854 = vmatpush.msra.mxu0 %v3831
    %3855 = vmatpush.msra.mxu0 %v3830
    %3856 = vmatpush.msra.mxu0 %v3829
    %3857 = vmatpush.msra.mxu0 %v3828
    %3858 = vmatpush.msra.mxu0 %v3827
    %3859 = vmatpush.msra.mxu0 %v3826
    %3860 = vmatmul.f32.gmra.mxu0 %v3839
    %v3861 = vpop.f32.mrf.mxu0
    %v3862 = vadd.f32 %v3836, %v3861
    %3863 = vmatmul.f32.gmra.mxu0 %v3842
    %v3864 = vpop.f32.mrf.mxu0
    %v3865 = vadd.f32 %v3836, %v3864
    %3866 = vdwg.mxu0
    %vm3867 = vcmask 97280
    %3868 = vst.msk [vmem:[#allocation12] sm:$0xff] %vm3867, %v3862
    %3869 = vst.msk [vmem:[#allocation12 + $0x8] sm:$0xff] %vm3867, %v3865
    // Predicated region
    $region70: #{tpu_custom_call.1} parent=1 // pred_check
      _
    $region71: #{tpu_custom_call.1} parent=1 // pred_check_branch
      %3871 = sbr.rel (0) target = $region73
    $region72: #{tpu_custom_call.1} parent=1 // pred_region
      %3873 = vsyncadd [#allocation5], 0
      %s3874 = sshll.u32 [#allocation12], 4
      %s3875 = int_to_ptr.vmem [resolvable:$true] %s3874
      %s3876 = sshll.u32 %s12, 4
      %s3877 = int_to_ptr.hbm [resolvable:$true] %s3876
      %3882 = dma.vmem_to_hbm [thread:$0]  %s3875, 256, %s3877, [#allocation5], 128, 128, 8
    $region73: #{tpu_custom_call.1} parent=1 // pred_fallthru
      _
    // Predicated region
    $region74: #{tpu_custom_call.1} parent=1 // pred_check
      _
    $region75: #{tpu_custom_call.1} parent=1 // pred_check_branch
      %3884 = sbr.rel (0) target = $region77
    $region76: #{tpu_custom_call.1} parent=1 // pred_region
      %3886 = dma.done [#allocation5], 256
    $region77: #{tpu_custom_call.1} parent=1 // pred_fallthru
      _
    %3887 = vsyncpa [#allocation4], 1
    %3888 = vsyncpa [#allocation7], 1
    %3889 = vsyncpa [#allocation10], 1
    %3890 = vsyncpa [#allocation5], 1

</llo_original>
